<compile_context>
chip_gen: v6e
topology: v6e:2x2x1
jax: 0.10.0
libtpu: 0.0.40
codegen_flags: <defaults>
</compile_context>

<pallas_src>
import functools

import numpy as np

import jax
import jax.numpy as jnp
from jax.experimental import pallas as pl
from jax.experimental.pallas import tpu as pltpu


def _round_up(x, m):
    return (x + m - 1) // m * m


def _vmem_budget_bytes():
    """Generation-aware VMEM budget: ~40 MiB on v7x (64 MiB/TC), ~80 MiB on
    v5e/v6e (128 MiB)."""
    cap = 128 << 20
    try:
        cap = int(getattr(pltpu.get_tpu_info(), "vmem_capacity_bytes", cap))
    except Exception:
        pass
    return max((cap * 5) // 8, 32 << 20)


def _pick_images_per_tile(B, H, W, cin, cout, in_itemsize, out_itemsize, budget):
    """Largest whole-image tile (G images per grid step) that fits the VMEM
    budget, preferring >=2 grid steps so the parallel grid axis can shard
    across v7x's two TensorCores."""
    wp = _round_up(W + 2, 8)

    def vmem_need(g):
        m = g * H * W
        return (2 * g * H * W * cin * in_itemsize    # double-buffered input blocks
                + g * (H + 2) * wp * cin * 2         # padded bf16 slab scratch
                + m * 9 * cin * 2                    # im2col operand
                + m * cout * 4                       # f32 GEMM result / epilogue
                + 2 * m * cout * out_itemsize        # double-buffered output blocks
                + 2 * 9 * cin * cout * 2             # weights
                + (2 << 20))                         # headroom

    divisors = [g for g in range(1, B + 1) if B % g == 0]
    fits = [g for g in divisors if vmem_need(g) <= budget]
    if not fits:
        # TODO(synk): add halo row-tiling (overlapping windows / manual DMA) for
        # images whose full spatial extent does not fit the VMEM budget.
        raise ValueError(f"spatial extent H*W={H * W} too large for whole-image tiling")
    multi = [g for g in fits if B // g >= 2]
    return max(multi) if multi else max(fits)


# ----------------------------------------------------------------------------
# Fused Conv3x3(pad=1, no bias) + folded BatchNorm + ReLU kernel
# ----------------------------------------------------------------------------

def _conv3x3_bn_relu_kernel(x_ref, w_ref, b_ref, o_ref, slab_ref, *, G, H, W, Cin):
    """One grid step: G whole images.
    x_ref: (G,H,W,Cin) unpadded activations (f32 or bf16, auto-pipelined);
    w_ref: (9*Cin,Cout) bf16 weights with BN scale folded in;
    b_ref: (1,Cout) f32 folded BN bias; o_ref: (G*H*W,Cout) output block;
    slab_ref: (G,H+2,WP,Cin) bf16 zero-padded slab scratch."""
    # Conv's padding=1 lives only in VMEM: memset the slab (only the halo
    # strictly needs zeros; the full memset keeps it branch-free and safe under
    # megacore grid sharding) and drop the unpadded block at offset (1, 1).
    # The bf16 cast for the MXU happens here (no separate HBM cast pass).
    slab_ref[...] = jnp.zeros_like(slab_ref)
    slab_ref[:, 1:H + 1, 1:W + 1, :] = x_ref[...].astype(slab_ref.dtype)

    x = slab_ref[...]                                   # (G, H+2, WP, Cin) bf16

    # im2col: one (M, 9*Cin) operand -> a single big-K MXU GEMM with f32
    # accumulation carried in values (no scratch-accumulator round-trips,
    # no per-tap MXU push/pop drains).
    taps = [x[:, di:di + H, dj:dj + W, :] for di in range(3) for dj in range(3)]
    patch = jnp.concatenate(taps, axis=-1).reshape(G * H * W, 9 * Cin)
    acc = jnp.dot(patch, w_ref[...], preferred_element_type=jnp.float32)

    # BN scale is pre-folded into w; epilogue = bias + ReLU, one lane-dense store.
    o_ref[...] = jnp.maximum(acc + b_ref[...], 0.0).astype(o_ref.dtype)


def conv3x3_bn_relu(x, w, bias, *, out_dtype=jnp.float32):
    """x: (B,H,W,Cin) NHWC (f32 or bf16); w: (3,3,Cin,Cout) with the BN scale
    already folded in; bias: (Cout,). Returns (B,H,W,Cout) in out_dtype."""
    B, H, W, Cin = x.shape
    Cout = w.shape[-1]
    out_itemsize = np.dtype(out_dtype).itemsize
    budget = _vmem_budget_bytes()
    G = _pick_images_per_tile(B, H, W, Cin, Cout,
                              x.dtype.itemsize, out_itemsize, budget)
    M = G * H * W
    granule = 32 // out_itemsize          # 8 sublanes for f32 blocks, 16 for bf16
    if M % granule:
        # TODO(synk): masked-store epilogue for spatial sizes that miss the
        # sublane granule of the output dtype.
        raise ValueError(f"G*H*W={M} must be a multiple of {granule}")
    WP = _round_up(W + 2, 8)              # sublane-aligned padded slab width

    # Weight contraction order matches the tap order (di, dj, cin).
    w9 = w.reshape(9 * Cin, Cout).astype(jnp.bfloat16)
    bi = bias.reshape(1, Cout).astype(jnp.float32)

    out = pl.pallas_call(
        functools.partial(_conv3x3_bn_relu_kernel, G=G, H=H, W=W, Cin=Cin),
        out_shape=jax.ShapeDtypeStruct((B * H * W, Cout), out_dtype),
        grid_spec=pltpu.PrefetchScalarGridSpec(
            num_scalar_prefetch=0,
            grid=(B // G,),
            in_specs=[
                pl.BlockSpec((G, H, W, Cin), lambda t: (t, 0, 0, 0)),
                pl.BlockSpec((9 * Cin, Cout), lambda t: (0, 0)),
                pl.BlockSpec((1, Cout), lambda t: (0, 0)),
            ],
            out_specs=pl.BlockSpec((M, Cout), lambda t: (t, 0)),
            scratch_shapes=[pltpu.VMEM((G, H + 2, WP, Cin), jnp.bfloat16)],
        ),
        compiler_params=pltpu.CompilerParams(
            dimension_semantics=("parallel",),
            vmem_limit_bytes=int(budget),
        ),
    )(x, w9, bi)
    return out.reshape(B, H, W, Cout)


# ----------------------------------------------------------------------------
# DoubleConv parameters (deterministic, synthetic); inference-mode BN folded:
# scale merged into the conv weights, bias kept for the kernel epilogue.
# ----------------------------------------------------------------------------

def init_double_conv(key, cin, cout, cmid=None, eps=1e-5):
    cmid = cmid if cmid is not None else cout
    ks = jax.random.split(key, 4)

    def conv_w(kk, ci, co):
        return (jax.random.normal(kk, (3, 3, ci, co), jnp.float32)
                * np.sqrt(2.0 / (9 * ci)))

    def bn_fold(kk, c):
        kg, kb, km, kv = jax.random.split(kk, 4)
        gamma = 1.0 + 0.1 * jax.random.normal(kg, (c,), jnp.float32)
        beta = 0.1 * jax.random.normal(kb, (c,), jnp.float32)
        mean = 0.1 * jax.random.normal(km, (c,), jnp.float32)
        var = 1.0 + 0.1 * jax.random.uniform(kv, (c,), jnp.float32)
        scale = gamma * jax.lax.rsqrt(var + eps)
        return scale, beta - mean * scale

    s1, b1 = bn_fold(ks[1], cmid)
    s2, b2 = bn_fold(ks[3], cout)
    return {"w1": conv_w(ks[0], cin, cmid) * s1, "b1": b1,
            "w2": conv_w(ks[2], cmid, cout) * s2, "b2": b2}


# ----------------------------------------------------------------------------
# Forward pass (== DoubleConv.forward), fully under one jax.jit
# ----------------------------------------------------------------------------

@jax.jit
def double_conv_forward(x_nchw, params):
    x = jnp.transpose(x_nchw, (0, 2, 3, 1))            # NCHW -> NHWC
    # conv1 consumes the f32 input directly (bf16 cast happens in-kernel while
    # building the VMEM slab); the inter-conv activation is carried in bf16.
    x = conv3x3_bn_relu(x, params["w1"], params["b1"], out_dtype=jnp.bfloat16)
    x = conv3x3_bn_relu(x, params["w2"], params["b2"], out_dtype=jnp.float32)
    return jnp.transpose(x, (0, 3, 1, 2))              # NHWC -> NCHW


def double_conv_reference(x_nchw, params):
    """Pure-JAX f32 reference (lax.conv) on the same BN-folded parameters."""
    x = jnp.transpose(x_nchw, (0, 2, 3, 1)).astype(jnp.float32)

    def layer(v, w, b):
        y = jax.lax.conv_general_dilated(
            v, w, window_strides=(1, 1), padding="SAME",
            dimension_numbers=("NHWC", "HWIO", "NHWC"))
        return jnp.maximum(y + b, 0.0)

    x = layer(x, params["w1"], params["b1"])
    x = layer(x, params["w2"], params["b2"])
    return jnp.transpose(x, (0, 3, 1, 2))


# ----------------------------------------------------------------------------

if __name__ == "__main__":
    B, C_IN, H, W = 2, 4, 16, 16
    C_OUT = 128   # mid_channels defaults to out_channels in DoubleConv

    root = jax.random.PRNGKey(0)
    kp, kx = jax.random.split(root)
    params = init_double_conv(kp, C_IN, C_OUT)
    x = jax.random.normal(kx, (B, C_IN, H, W), jnp.float32)

    y = jax.block_until_ready(double_conv_forward(x, params))

    assert y.shape == (B, C_OUT, H, W), y.shape
    assert bool(jnp.all(jnp.isfinite(y)))

    y_ref = double_conv_reference(x, params)
    np.testing.assert_allclose(np.asarray(y), np.asarray(y_ref),
                               rtol=1e-1, atol=1e-1)

    print("KERNEL_OK")
</pallas_src>

<mosaic_0001>
module attributes {stable_mosaic.version = 11 : i64} {
  func.func @_conv3x3_bn_relu_kernel(%arg0: i32, %arg1: memref<1x16x16x4xf32, #tpu.memory_space<vmem>>, %arg2: memref<36x128xbf16, #tpu.memory_space<vmem>>, %arg3: memref<1x128xf32, #tpu.memory_space<vmem>>, %arg4: memref<256x128xbf16, #tpu.memory_space<vmem>>, %arg5: memref<1x18x24x4xbf16, #tpu.memory_space<vmem>>) attributes {dimension_semantics = [#tpu.dimension_semantics<parallel>], iteration_bounds = array<i64: 2>, scalar_prefetch = 0 : i64, scratch_operands = 1 : i64, tpu.core_type = #tpu.core_type<tc>, window_params = [{transform_indices = @transform_0, window_bounds = array<i64: 1, 16, 16, 4>}, {pipeline_mode = #tpu.pipeline_mode<synchronous>, transform_indices = @transform_1, window_bounds = array<i64: 36, 128>}, {pipeline_mode = #tpu.pipeline_mode<synchronous>, transform_indices = @transform_2, window_bounds = array<i64: 1, 128>}, {transform_indices = @transform_3, window_bounds = array<i64: 256, 128>}]} {
    %cst = arith.constant 0.000000e+00 : bf16
    %0 = vector.broadcast %cst : bf16 to vector<1x18x24x4xbf16>
    %c0 = arith.constant 0 : index
    %c0_0 = arith.constant 0 : index
    %c0_1 = arith.constant 0 : index
    %c0_2 = arith.constant 0 : index
    %1 = vector.load %arg5[%c0, %c0_0, %c0_1, %c0_2] : memref<1x18x24x4xbf16, #tpu.memory_space<vmem>>, vector<1x18x24x4xbf16>
    tpu.vector_store %arg5[%c0, %c0_0, %c0_1, %c0_2], %0 {strides = array<i32>} : memref<1x18x24x4xbf16, #tpu.memory_space<vmem>>, vector<1x18x24x4xbf16>,
    %c0_3 = arith.constant 0 : index
    %c0_4 = arith.constant 0 : index
    %c0_5 = arith.constant 0 : index
    %c0_6 = arith.constant 0 : index
    %2 = vector.load %arg1[%c0_3, %c0_4, %c0_5, %c0_6] : memref<1x16x16x4xf32, #tpu.memory_space<vmem>>, vector<1x16x16x4xf32>
    %3 = arith.truncf %2 : vector<1x16x16x4xf32> to vector<1x16x16x4xbf16>
    %c0_7 = arith.constant 0 : index
    %c1 = arith.constant 1 : index
    %c1_8 = arith.constant 1 : index
    %c0_9 = arith.constant 0 : index
    %4 = vector.load %arg5[%c0_7, %c1, %c1_8, %c0_9] : memref<1x18x24x4xbf16, #tpu.memory_space<vmem>>, vector<1x16x16x4xbf16>
    tpu.vector_store %arg5[%c0_7, %c1, %c1_8, %c0_9], %3 {strides = array<i32>} : memref<1x18x24x4xbf16, #tpu.memory_space<vmem>>, vector<1x16x16x4xbf16>,
    %c0_10 = arith.constant 0 : index
    %c0_11 = arith.constant 0 : index
    %c0_12 = arith.constant 0 : index
    %c0_13 = arith.constant 0 : index
    %5 = vector.load %arg5[%c0_10, %c0_11, %c0_12, %c0_13] : memref<1x18x24x4xbf16, #tpu.memory_space<vmem>>, vector<1x18x24x4xbf16>
    %6 = vector.extract_strided_slice %5 {offsets = [0, 0, 0, 0], sizes = [1, 16, 16, 4], strides = [1, 1, 1, 1]} : vector<1x18x24x4xbf16> to vector<1x16x16x4xbf16>
    %7 = vector.extract_strided_slice %5 {offsets = [0, 0, 1, 0], sizes = [1, 16, 16, 4], strides = [1, 1, 1, 1]} : vector<1x18x24x4xbf16> to vector<1x16x16x4xbf16>
    %8 = vector.extract_strided_slice %5 {offsets = [0, 0, 2, 0], sizes = [1, 16, 16, 4], strides = [1, 1, 1, 1]} : vector<1x18x24x4xbf16> to vector<1x16x16x4xbf16>
    %9 = vector.extract_strided_slice %5 {offsets = [0, 1, 0, 0], sizes = [1, 16, 16, 4], strides = [1, 1, 1, 1]} : vector<1x18x24x4xbf16> to vector<1x16x16x4xbf16>
    %10 = vector.extract_strided_slice %5 {offsets = [0, 1, 1, 0], sizes = [1, 16, 16, 4], strides = [1, 1, 1, 1]} : vector<1x18x24x4xbf16> to vector<1x16x16x4xbf16>
    %11 = vector.extract_strided_slice %5 {offsets = [0, 1, 2, 0], sizes = [1, 16, 16, 4], strides = [1, 1, 1, 1]} : vector<1x18x24x4xbf16> to vector<1x16x16x4xbf16>
    %12 = vector.extract_strided_slice %5 {offsets = [0, 2, 0, 0], sizes = [1, 16, 16, 4], strides = [1, 1, 1, 1]} : vector<1x18x24x4xbf16> to vector<1x16x16x4xbf16>
    %13 = vector.extract_strided_slice %5 {offsets = [0, 2, 1, 0], sizes = [1, 16, 16, 4], strides = [1, 1, 1, 1]} : vector<1x18x24x4xbf16> to vector<1x16x16x4xbf16>
    %14 = vector.extract_strided_slice %5 {offsets = [0, 2, 2, 0], sizes = [1, 16, 16, 4], strides = [1, 1, 1, 1]} : vector<1x18x24x4xbf16> to vector<1x16x16x4xbf16>
    %15 = tpu.concatenate %6, %7, %8, %9, %10, %11, %12, %13, %14 in 3 : vector<1x16x16x4xbf16>, vector<1x16x16x4xbf16>, vector<1x16x16x4xbf16>, vector<1x16x16x4xbf16>, vector<1x16x16x4xbf16>, vector<1x16x16x4xbf16>, vector<1x16x16x4xbf16>, vector<1x16x16x4xbf16>, vector<1x16x16x4xbf16> -> vector<1x16x16x36xbf16>
    %16 = vector.shape_cast %15 : vector<1x16x16x36xbf16> to vector<256x36xbf16>
    %c0_14 = arith.constant 0 : index
    %c0_15 = arith.constant 0 : index
    %17 = vector.load %arg2[%c0_14, %c0_15] : memref<36x128xbf16, #tpu.memory_space<vmem>>, vector<36x128xbf16>
    %cst_16 = arith.constant dense<0.000000e+00> : vector<256x128xf32>
    %18 = tpu.matmul %16, %17, %cst_16 {dimension_numbers = #tpu.dot_dimension_numbers<[1], [0], [0], [1], [0, 0, 1, 1], [], []>} : vector<256x36xbf16>, vector<36x128xbf16>, vector<256x128xf32> -> vector<256x128xf32>
    %c0_17 = arith.constant 0 : index
    %c0_18 = arith.constant 0 : index
    %19 = vector.load %arg3[%c0_17, %c0_18] : memref<1x128xf32, #tpu.memory_space<vmem>>, vector<1x128xf32>
    %20 = vector.broadcast %19 : vector<1x128xf32> to vector<256x128xf32>
    %21 = arith.addf %18, %20 : vector<256x128xf32>
    %cst_19 = arith.constant 0.000000e+00 : f32
    %22 = vector.broadcast %cst_19 : f32 to vector<256x128xf32>
    %23 = arith.maximumf %21, %22 : vector<256x128xf32>
    %24 = arith.truncf %23 : vector<256x128xf32> to vector<256x128xbf16>
    %c0_20 = arith.constant 0 : index
    %c0_21 = arith.constant 0 : index
    %25 = vector.load %arg4[%c0_20, %c0_21] : memref<256x128xbf16, #tpu.memory_space<vmem>>, vector<256x128xbf16>
    tpu.vector_store %arg4[%c0_20, %c0_21], %24 {strides = array<i32>} : memref<256x128xbf16, #tpu.memory_space<vmem>>, vector<256x128xbf16>,
    return
  }
  func.func @transform_0(%arg0: i32) -> (i32, i32, i32, i32) {
    %c0_i32 = arith.constant 0 : i32
    %c0_i32_0 = arith.constant 0 : i32
    %c0_i32_1 = arith.constant 0 : i32
    %c0_i32_2 = arith.constant 0 : i32
    return %arg0, %c0_i32, %c0_i32_0, %c0_i32_1 : i32, i32, i32, i32
  }
  func.func @transform_1(%arg0: i32) -> (i32, i32) {
    %c0_i32 = arith.constant 0 : i32
    %c0_i32_0 = arith.constant 0 : i32
    %c0_i32_1 = arith.constant 0 : i32
    return %c0_i32, %c0_i32_0 : i32, i32
  }
  func.func @transform_2(%arg0: i32) -> (i32, i32) {
    %c0_i32 = arith.constant 0 : i32
    %c0_i32_0 = arith.constant 0 : i32
    %c0_i32_1 = arith.constant 0 : i32
    return %c0_i32, %c0_i32_0 : i32, i32
  }
  func.func @transform_3(%arg0: i32) -> (i32, i32) {
    %c0_i32 = arith.constant 0 : i32
    %c0_i32_0 = arith.constant 0 : i32
    return %arg0, %c0_i32 : i32, i32
  }
}

module attributes {stable_mosaic.version = 11 : i64} {
  func.func @_conv3x3_bn_relu_kernel(%arg0: i32, %arg1: memref<1x16x16x128xbf16, #tpu.memory_space<vmem>>, %arg2: memref<1152x128xbf16, #tpu.memory_space<vmem>>, %arg3: memref<1x128xf32, #tpu.memory_space<vmem>>, %arg4: memref<256x128xf32, #tpu.memory_space<vmem>>, %arg5: memref<1x18x24x128xbf16, #tpu.memory_space<vmem>>) attributes {dimension_semantics = [#tpu.dimension_semantics<parallel>], iteration_bounds = array<i64: 2>, scalar_prefetch = 0 : i64, scratch_operands = 1 : i64, tpu.core_type = #tpu.core_type<tc>, window_params = [{transform_indices = @transform_0, window_bounds = array<i64: 1, 16, 16, 128>}, {pipeline_mode = #tpu.pipeline_mode<synchronous>, transform_indices = @transform_1, window_bounds = array<i64: 1152, 128>}, {pipeline_mode = #tpu.pipeline_mode<synchronous>, transform_indices = @transform_2, window_bounds = array<i64: 1, 128>}, {transform_indices = @transform_3, window_bounds = array<i64: 256, 128>}]} {
    %cst = arith.constant 0.000000e+00 : bf16
    %0 = vector.broadcast %cst : bf16 to vector<1x18x24x128xbf16>
    %c0 = arith.constant 0 : index
    %c0_0 = arith.constant 0 : index
    %c0_1 = arith.constant 0 : index
    %c0_2 = arith.constant 0 : index
    %1 = vector.load %arg5[%c0, %c0_0, %c0_1, %c0_2] : memref<1x18x24x128xbf16, #tpu.memory_space<vmem>>, vector<1x18x24x128xbf16>
    tpu.vector_store %arg5[%c0, %c0_0, %c0_1, %c0_2], %0 {strides = array<i32>} : memref<1x18x24x128xbf16, #tpu.memory_space<vmem>>, vector<1x18x24x128xbf16>,
    %c0_3 = arith.constant 0 : index
    %c0_4 = arith.constant 0 : index
    %c0_5 = arith.constant 0 : index
    %c0_6 = arith.constant 0 : index
    %2 = vector.load %arg1[%c0_3, %c0_4, %c0_5, %c0_6] : memref<1x16x16x128xbf16, #tpu.memory_space<vmem>>, vector<1x16x16x128xbf16>
    %c0_7 = arith.constant 0 : index
    %c1 = arith.constant 1 : index
    %c1_8 = arith.constant 1 : index
    %c0_9 = arith.constant 0 : index
    %3 = vector.load %arg5[%c0_7, %c1, %c1_8, %c0_9] : memref<1x18x24x128xbf16, #tpu.memory_space<vmem>>, vector<1x16x16x128xbf16>
    tpu.vector_store %arg5[%c0_7, %c1, %c1_8, %c0_9], %2 {strides = array<i32>} : memref<1x18x24x128xbf16, #tpu.memory_space<vmem>>, vector<1x16x16x128xbf16>,
    %c0_10 = arith.constant 0 : index
    %c0_11 = arith.constant 0 : index
    %c0_12 = arith.constant 0 : index
    %c0_13 = arith.constant 0 : index
    %4 = vector.load %arg5[%c0_10, %c0_11, %c0_12, %c0_13] : memref<1x18x24x128xbf16, #tpu.memory_space<vmem>>, vector<1x18x24x128xbf16>
    %5 = vector.extract_strided_slice %4 {offsets = [0, 0, 0, 0], sizes = [1, 16, 16, 128], strides = [1, 1, 1, 1]} : vector<1x18x24x128xbf16> to vector<1x16x16x128xbf16>
    %6 = vector.extract_strided_slice %4 {offsets = [0, 0, 1, 0], sizes = [1, 16, 16, 128], strides = [1, 1, 1, 1]} : vector<1x18x24x128xbf16> to vector<1x16x16x128xbf16>
    %7 = vector.extract_strided_slice %4 {offsets = [0, 0, 2, 0], sizes = [1, 16, 16, 128], strides = [1, 1, 1, 1]} : vector<1x18x24x128xbf16> to vector<1x16x16x128xbf16>
    %8 = vector.extract_strided_slice %4 {offsets = [0, 1, 0, 0], sizes = [1, 16, 16, 128], strides = [1, 1, 1, 1]} : vector<1x18x24x128xbf16> to vector<1x16x16x128xbf16>
    %9 = vector.extract_strided_slice %4 {offsets = [0, 1, 1, 0], sizes = [1, 16, 16, 128], strides = [1, 1, 1, 1]} : vector<1x18x24x128xbf16> to vector<1x16x16x128xbf16>
    %10 = vector.extract_strided_slice %4 {offsets = [0, 1, 2, 0], sizes = [1, 16, 16, 128], strides = [1, 1, 1, 1]} : vector<1x18x24x128xbf16> to vector<1x16x16x128xbf16>
    %11 = vector.extract_strided_slice %4 {offsets = [0, 2, 0, 0], sizes = [1, 16, 16, 128], strides = [1, 1, 1, 1]} : vector<1x18x24x128xbf16> to vector<1x16x16x128xbf16>
    %12 = vector.extract_strided_slice %4 {offsets = [0, 2, 1, 0], sizes = [1, 16, 16, 128], strides = [1, 1, 1, 1]} : vector<1x18x24x128xbf16> to vector<1x16x16x128xbf16>
    %13 = vector.extract_strided_slice %4 {offsets = [0, 2, 2, 0], sizes = [1, 16, 16, 128], strides = [1, 1, 1, 1]} : vector<1x18x24x128xbf16> to vector<1x16x16x128xbf16>
    %14 = tpu.concatenate %5, %6, %7, %8, %9, %10, %11, %12, %13 in 3 : vector<1x16x16x128xbf16>, vector<1x16x16x128xbf16>, vector<1x16x16x128xbf16>, vector<1x16x16x128xbf16>, vector<1x16x16x128xbf16>, vector<1x16x16x128xbf16>, vector<1x16x16x128xbf16>, vector<1x16x16x128xbf16>, vector<1x16x16x128xbf16> -> vector<1x16x16x1152xbf16>
    %15 = vector.shape_cast %14 : vector<1x16x16x1152xbf16> to vector<256x1152xbf16>
    %c0_14 = arith.constant 0 : index
    %c0_15 = arith.constant 0 : index
    %16 = vector.load %arg2[%c0_14, %c0_15] : memref<1152x128xbf16, #tpu.memory_space<vmem>>, vector<1152x128xbf16>
    %cst_16 = arith.constant dense<0.000000e+00> : vector<256x128xf32>
    %17 = tpu.matmul %15, %16, %cst_16 {dimension_numbers = #tpu.dot_dimension_numbers<[1], [0], [0], [1], [0, 0, 1, 1], [], []>} : vector<256x1152xbf16>, vector<1152x128xbf16>, vector<256x128xf32> -> vector<256x128xf32>
    %c0_17 = arith.constant 0 : index
    %c0_18 = arith.constant 0 : index
    %18 = vector.load %arg3[%c0_17, %c0_18] : memref<1x128xf32, #tpu.memory_space<vmem>>, vector<1x128xf32>
    %19 = vector.broadcast %18 : vector<1x128xf32> to vector<256x128xf32>
    %20 = arith.addf %17, %19 : vector<256x128xf32>
    %cst_19 = arith.constant 0.000000e+00 : f32
    %21 = vector.broadcast %cst_19 : f32 to vector<256x128xf32>
    %22 = arith.maximumf %20, %21 : vector<256x128xf32>
    %c0_20 = arith.constant 0 : index
    %c0_21 = arith.constant 0 : index
    %23 = vector.load %arg4[%c0_20, %c0_21] : memref<256x128xf32, #tpu.memory_space<vmem>>, vector<256x128xf32>
    tpu.vector_store %arg4[%c0_20, %c0_21], %22 {strides = array<i32>} : memref<256x128xf32, #tpu.memory_space<vmem>>, vector<256x128xf32>,
    return
  }
  func.func @transform_0(%arg0: i32) -> (i32, i32, i32, i32) {
    %c0_i32 = arith.constant 0 : i32
    %c0_i32_0 = arith.constant 0 : i32
    %c0_i32_1 = arith.constant 0 : i32
    %c0_i32_2 = arith.constant 0 : i32
    return %arg0, %c0_i32, %c0_i32_0, %c0_i32_1 : i32, i32, i32, i32
  }
  func.func @transform_1(%arg0: i32) -> (i32, i32) {
    %c0_i32 = arith.constant 0 : i32
    %c0_i32_0 = arith.constant 0 : i32
    %c0_i32_1 = arith.constant 0 : i32
    return %c0_i32, %c0_i32_0 : i32, i32
  }
  func.func @transform_2(%arg0: i32) -> (i32, i32) {
    %c0_i32 = arith.constant 0 : i32
    %c0_i32_0 = arith.constant 0 : i32
    %c0_i32_1 = arith.constant 0 : i32
    return %c0_i32, %c0_i32_0 : i32, i32
  }
  func.func @transform_3(%arg0: i32) -> (i32, i32) {
    %c0_i32 = arith.constant 0 : i32
    %c0_i32_0 = arith.constant 0 : i32
    return %arg0, %c0_i32 : i32, i32
  }
}

</mosaic_0001>

<llo_original>
// kernel: double_conv_forward.2
$region0: #{double_conv_forward.2}
  #allocation0 [shape = 'u32[]', space=smem, size = 0x4, offset = 0x4, fixed_abs, tag = 'smem constant byte address 0x4 - core index']
  #allocation1 [shape = 'u32[144,128]{1,0:T(1,128)}', space=vmem, size = 0x12000, scoped, tag = 'internal scratch']
  #allocation2 [shape = 'bf16[1,18,24,4]{3,2,1,0:T(8,128)(2,1)}', space=vmem, size = 0x1b000, scoped, tag = 'scratch operand']
  %s0 = inlined_call_operand.vmem [shape: f32[2,16,16,4], index: 0, kind: input, shape index: {}]
  %s1 = inlined_call_operand.vmem [shape: bf16[36,128], index: 1, kind: input, shape index: {}]
  %s2 = inlined_call_operand.hbm [shape: f32[1,128], index: 2, kind: input, shape index: {}]
  %s3 = inlined_call_operand.vmem [shape: bf16[512,128], index: 3, kind: output, shape index: {}]
  %s4 = sld [smem:[#allocation0]]
  $region49: #{double_conv_forward.2} parent=0
    _
  %s6 = ssub.s32 1, %s4
  %s7 = scalar_select 0, %s6, %s4
  $region1: #{double_conv_forward.2} parent=0
    #allocation3 [shape = 'u8[512]{0}', space=vmem, size = 0x400, scoped, tag = 'input window, operand 2, single buffered']
    #allocation4 [shape = 's32[2]{0}', space=sflag, size = 0x8, scoped, tag = 'scoped memory for double_conv_forward.2']
    %8 = vsyncpa [#allocation4], 0
    loop: start=0, step=1, limit=4
    $region2: #{double_conv_forward.2} parent=1 // loop_pre_header
      _
    $region3: #{double_conv_forward.2} parent=1 // loop_header
      %s10 = sphi 0, %s14
      %p11 = scmp.ge.s32.totalorder %s10, 4
      %s20 = sphi 0, %s22
      %s23 = sphi 0, %s20
      %s24 = sphi 0, %s23
      %s40 = sphi 0, %s24
      %s44 = sphi 0, %s44
      %s46 = sphi 0, %s44
      %s47 = sphi 0, %s46
      %s61 = sphi 0, %s47
      %s65 = sphi 0, %s65
      %s67 = sphi 0, %s65
      %s68 = sphi 0, %s67
      %s82 = sphi 0, %s68
      %s88 = sphi 0, %s90
      %s91 = sphi 0, %s88
      %s92 = sphi 0, %s91
      %s108 = sphi 0, %s92
    $region4: #{double_conv_forward.2} parent=1 // loop_header_branch
      %13 = sbr.rel (%p11) target = $region8
    $region5: #{double_conv_forward.2} parent=1 // loop_body
      %s15 = ssub.s32 %s10, 1
      %s16 = ssub.s32 %s10, 2
      %s17 = sadd.s32 %s10, 1
      %s18 = ssub.s32 %s10, %s17
      %p19 = scmp.eq.s32.totalorder %s18, 0
      %s21 = sadd.s32 %s20, 1
      %s22 = scalar_select %p19, %s20, %s21
      %p25 = pneg %p19
      %p26 = scmp.eq.s32.totalorder %s10, 1
      %p27 = por %p25, %p26
      %p28 = scmp.ne.s32.totalorder %s20, %s23
      %p29 = scmp.eq.s32.totalorder %s10, 0
      %p30 = por %p28, %p29
      %p31 = scmp.ne.s32.totalorder %s20, %s23
      %p32 = scmp.eq.s32.totalorder %s15, 1
      %p33 = por %p31, %p32
      %p34 = scmp.ne.s32.totalorder %s23, %s24
      %p35 = scmp.eq.s32.totalorder %s15, 0
      %p36 = por %p34, %p35
      %p37 = scmp.ne.s32.totalorder %s23, %s24
      %p38 = scmp.eq.s32.totalorder %s16, 1
      %p39 = por %p37, %p38
      %p41 = scmp.ne.s32.totalorder %s24, %s40
      %p42 = scmp.eq.s32.totalorder %s16, 0
      %p43 = por %p41, %p42
      %s45 = sadd.s32 %s44, 1
      %p48 = scmp.eq.s32.totalorder %s10, 1
      %p49 = scmp.ne.s32.totalorder %s44, %s46
      %p50 = scmp.eq.s32.totalorder %s10, 0
      %p51 = por %p49, %p50
      %p52 = scmp.ne.s32.totalorder %s44, %s46
      %p53 = scmp.eq.s32.totalorder %s15, 1
      %p54 = por %p52, %p53
      %p55 = scmp.ne.s32.totalorder %s46, %s47
      %p56 = scmp.eq.s32.totalorder %s15, 0
      %p57 = por %p55, %p56
      %p58 = scmp.ne.s32.totalorder %s46, %s47
      %p59 = scmp.eq.s32.totalorder %s16, 1
      %p60 = por %p58, %p59
      %p62 = scmp.ne.s32.totalorder %s47, %s61
      %p63 = scmp.eq.s32.totalorder %s16, 0
      %p64 = por %p62, %p63
      %s66 = sadd.s32 %s65, 1
      %p69 = scmp.eq.s32.totalorder %s10, 1
      %p70 = scmp.ne.s32.totalorder %s65, %s67
      %p71 = scmp.eq.s32.totalorder %s10, 0
      %p72 = por %p70, %p71
      %p73 = scmp.ne.s32.totalorder %s65, %s67
      %p74 = scmp.eq.s32.totalorder %s15, 1
      %p75 = por %p73, %p74
      %p76 = scmp.ne.s32.totalorder %s67, %s68
      %p77 = scmp.eq.s32.totalorder %s15, 0
      %p78 = por %p76, %p77
      %p79 = scmp.ne.s32.totalorder %s67, %s68
      %p80 = scmp.eq.s32.totalorder %s16, 1
      %p81 = por %p79, %p80
      %p83 = scmp.ne.s32.totalorder %s68, %s82
      %p84 = scmp.eq.s32.totalorder %s16, 0
      %p85 = por %p83, %p84
      %s86 = ssub.s32 %s10, %s17
      %p87 = scmp.eq.s32.totalorder %s86, 0
      %s89 = sadd.s32 %s88, 1
      %s90 = scalar_select %p87, %s88, %s89
      %p93 = pneg %p87
      %p94 = scmp.eq.s32.totalorder %s10, 1
      %p95 = por %p93, %p94
      %p96 = scmp.ne.s32.totalorder %s88, %s91
      %p97 = scmp.eq.s32.totalorder %s10, 0
      %p98 = por %p96, %p97
      %p99 = scmp.ne.s32.totalorder %s88, %s91
      %p100 = scmp.eq.s32.totalorder %s15, 1
      %p101 = por %p99, %p100
      %p102 = scmp.ne.s32.totalorder %s91, %s92
      %p103 = scmp.eq.s32.totalorder %s15, 0
      %p104 = por %p102, %p103
      %p105 = scmp.ne.s32.totalorder %s91, %s92
      %p106 = scmp.eq.s32.totalorder %s16, 1
      %p107 = por %p105, %p106
      %p109 = scmp.ne.s32.totalorder %s92, %s108
      %p110 = scmp.eq.s32.totalorder %s16, 0
      %p111 = por %p109, %p110
      %p112 = scmp.le.s32.totalorder 1, %s10
      %p113 = scmp.lt.s32.totalorder %s10, 3
      %p114 = pnand %p112, %p113
      %p115 = pneg %p114
      // Predicated region
      $region9: #{double_conv_forward.2} parent=5 // pred_check
        _
      $region10: #{double_conv_forward.2} parent=5 // pred_check_branch
        %117 = sbr.rel (%p114) target = $region12
      $region11: #{double_conv_forward.2} parent=5 // pred_region
        %s118 = ssub.s32 %s10, 1
        // Predicated region
        $region13: #{double_conv_forward.2} parent=11 // pred_check
          %p119 = pneg %p57
        $region14: #{double_conv_forward.2} parent=11 // pred_check_branch
          %121 = sbr.rel (%p119) target = $region16
        $region15: #{double_conv_forward.2} parent=11 // pred_region
          _
        $region16: #{double_conv_forward.2} parent=11 // pred_fallthru
          _
        // Predicated region
        $region17: #{double_conv_forward.2} parent=11 // pred_check
          %p122 = pneg %p78
        $region18: #{double_conv_forward.2} parent=11 // pred_check_branch
          %124 = sbr.rel (%p122) target = $region20
        $region19: #{double_conv_forward.2} parent=11 // pred_region
          %s126 = ssub.s32 16, 16
          %127 = vsyncadd [#allocation4], %s126
          %s129 = sshll.u32 [#allocation3], 4
          %s130 = int_to_ptr.vmem [resolvable:$true] %s129
          %132 = dma.hbm_to_vmem [thread:$0]  %s2, 16, %s130, [#allocation4]
        $region20: #{double_conv_forward.2} parent=11 // pred_fallthru
          _
      $region12: #{double_conv_forward.2} parent=5 // pred_fallthru
        _
      %p133 = scmp.lt.s32.totalorder %s10, 2
      // Predicated region
      $region21: #{double_conv_forward.2} parent=5 // pred_check
        %p134 = pneg %p133
      $region22: #{double_conv_forward.2} parent=5 // pred_check_branch
        %136 = sbr.rel (%p134) target = $region24
      $region23: #{double_conv_forward.2} parent=5 // pred_region
        // Predicated region
        $region25: #{double_conv_forward.2} parent=23 // pred_check
          %p137 = pneg %p30
        $region26: #{double_conv_forward.2} parent=23 // pred_check_branch
          %139 = sbr.rel (%p137) target = $region28
        $region27: #{double_conv_forward.2} parent=23 // pred_region
          %p140 = scmp.lt.s32.totalorder %s10, 1
          %s141 = scalar_select %p140, %s10, 1
          %s142 = smul.addr %s141, 32
          %s143 = smul.addr %s142, 8
          %s144 = scalar_lea.vmem %s0, %s143
        $region28: #{double_conv_forward.2} parent=23 // pred_fallthru
          _
      $region24: #{double_conv_forward.2} parent=5 // pred_fallthru
        _
      %p145 = scmp.le.s32.totalorder 1, %s10
      %p146 = scmp.lt.s32.totalorder %s10, 3
      %p147 = pnand %p145, %p146
      %p148 = pneg %p147
      // Predicated region
      $region29: #{double_conv_forward.2} parent=5 // pred_check
        _
      $region30: #{double_conv_forward.2} parent=5 // pred_check_branch
        %150 = sbr.rel (%p147) target = $region32
      $region31: #{double_conv_forward.2} parent=5 // pred_region
        %s151 = ssub.s32 %s10, 1
        // Predicated region
        $region33: #{double_conv_forward.2} parent=31 // pred_check
          %p152 = pneg %p78
        $region34: #{double_conv_forward.2} parent=31 // pred_check_branch
          %154 = sbr.rel (%p152) target = $region36
        $region35: #{double_conv_forward.2} parent=31 // pred_region
          %155 = dma.done [#allocation4], 16
        $region36: #{double_conv_forward.2} parent=31 // pred_fallthru
          _
        %p156 = scmp.lt.s32.totalorder %s15, 1
        %s157 = scalar_select %p156, %s15, 1
        %s158 = smul.addr %s157, 32
        %s159 = smul.addr %s158, 8
        %s160 = scalar_lea.vmem %s0, %s159
        %p161 = pneg %p36
        %p162 = pneg %p33
        %p163 = pneg %p57
        %p164 = pneg %p54
        %p165 = pneg %p78
        %p166 = pneg %p75
        %p167 = pneg %p104
        %p168 = pneg %p101
        %s169 = smul.u32 32, %s15
        %p170 = scmp.lt.s32.totalorder %s169, 63
        %s171 = scalar_select %p170, %s169, 63
        %s172 = smul.addr %s171, 4
        %s173 = scalar_lea.vmem %s3, %s172
        %p174 = scmp.lt.s32.totalorder %s15, 1
        %s175 = scalar_select %p174, %s15, 1
        %s176 = smul.addr %s175, 32
        %s177 = smul.addr %s176, 8
        %s178 = scalar_lea.vmem %s0, %s177
        %s179 = smul.u32 32, %s15
        %p180 = scmp.lt.s32.totalorder %s179, 63
        %s181 = scalar_select %p180, %s179, 63
        %s182 = smul.addr %s181, 4
        %s183 = scalar_lea.vmem %s3, %s182
        %s184 = smul.u32 32, %s15
        %vm186 = vcmask 27648
        %187 = vst.msk [vmem:[#allocation2] sm:$0xf] %vm186, 0
        %188 = vst.msk [vmem:[#allocation2 + $0x4] sm:$0xf] %vm186, 0
        %189 = vst.msk [vmem:[#allocation2 + $0x8] sm:$0xf] %vm186, 0
        %190 = vst.msk [vmem:[#allocation2 + $0xc] sm:$0xf] %vm186, 0
        %191 = vst.msk [vmem:[#allocation2 + $0x10] sm:$0xf] %vm186, 0
        %192 = vst.msk [vmem:[#allocation2 + $0x14] sm:$0xf] %vm186, 0
        %193 = vst.msk [vmem:[#allocation2 + $0x18] sm:$0xf] %vm186, 0
        %194 = vst.msk [vmem:[#allocation2 + $0x1c] sm:$0xf] %vm186, 0
        %195 = vst.msk [vmem:[#allocation2 + $0x20] sm:$0xf] %vm186, 0
        %196 = vst.msk [vmem:[#allocation2 + $0x24] sm:$0xf] %vm186, 0
        %197 = vst.msk [vmem:[#allocation2 + $0x28] sm:$0xf] %vm186, 0
        %198 = vst.msk [vmem:[#allocation2 + $0x2c] sm:$0xf] %vm186, 0
        %199 = vst.msk [vmem:[#allocation2 + $0x30] sm:$0xf] %vm186, 0
        %200 = vst.msk [vmem:[#allocation2 + $0x34] sm:$0xf] %vm186, 0
        %201 = vst.msk [vmem:[#allocation2 + $0x38] sm:$0xf] %vm186, 0
        %202 = vst.msk [vmem:[#allocation2 + $0x3c] sm:$0xf] %vm186, 0
        %203 = vst.msk [vmem:[#allocation2 + $0x40] sm:$0xf] %vm186, 0
        %204 = vst.msk [vmem:[#allocation2 + $0x44] sm:$0xf] %vm186, 0
        %205 = vst.msk [vmem:[#allocation2 + $0x48] sm:$0xf] %vm186, 0
        %206 = vst.msk [vmem:[#allocation2 + $0x4c] sm:$0xf] %vm186, 0
        %207 = vst.msk [vmem:[#allocation2 + $0x50] sm:$0xf] %vm186, 0
        %208 = vst.msk [vmem:[#allocation2 + $0x54] sm:$0xf] %vm186, 0
        %209 = vst.msk [vmem:[#allocation2 + $0x58] sm:$0xf] %vm186, 0
        %210 = vst.msk [vmem:[#allocation2 + $0x5c] sm:$0xf] %vm186, 0
        %211 = vst.msk [vmem:[#allocation2 + $0x60] sm:$0xf] %vm186, 0
        %212 = vst.msk [vmem:[#allocation2 + $0x64] sm:$0xf] %vm186, 0
        %213 = vst.msk [vmem:[#allocation2 + $0x68] sm:$0xf] %vm186, 0
        %214 = vst.msk [vmem:[#allocation2 + $0x6c] sm:$0xf] %vm186, 0
        %215 = vst.msk [vmem:[#allocation2 + $0x70] sm:$0xf] %vm186, 0
        %216 = vst.msk [vmem:[#allocation2 + $0x74] sm:$0xf] %vm186, 0
        %217 = vst.msk [vmem:[#allocation2 + $0x78] sm:$0xf] %vm186, 0
        %218 = vst.msk [vmem:[#allocation2 + $0x7c] sm:$0xf] %vm186, 0
        %219 = vst.msk [vmem:[#allocation2 + $0x80] sm:$0xf] %vm186, 0
        %220 = vst.msk [vmem:[#allocation2 + $0x84] sm:$0xf] %vm186, 0
        %221 = vst.msk [vmem:[#allocation2 + $0x88] sm:$0xf] %vm186, 0
        %222 = vst.msk [vmem:[#allocation2 + $0x8c] sm:$0xf] %vm186, 0
        %223 = vst.msk [vmem:[#allocation2 + $0x90] sm:$0xf] %vm186, 0
        %224 = vst.msk [vmem:[#allocation2 + $0x94] sm:$0xf] %vm186, 0
        %225 = vst.msk [vmem:[#allocation2 + $0x98] sm:$0xf] %vm186, 0
        %226 = vst.msk [vmem:[#allocation2 + $0x9c] sm:$0xf] %vm186, 0
        %227 = vst.msk [vmem:[#allocation2 + $0xa0] sm:$0xf] %vm186, 0
        %228 = vst.msk [vmem:[#allocation2 + $0xa4] sm:$0xf] %vm186, 0
        %229 = vst.msk [vmem:[#allocation2 + $0xa8] sm:$0xf] %vm186, 0
        %230 = vst.msk [vmem:[#allocation2 + $0xac] sm:$0xf] %vm186, 0
        %231 = vst.msk [vmem:[#allocation2 + $0xb0] sm:$0xf] %vm186, 0
        %232 = vst.msk [vmem:[#allocation2 + $0xb4] sm:$0xf] %vm186, 0
        %233 = vst.msk [vmem:[#allocation2 + $0xb8] sm:$0xf] %vm186, 0
        %234 = vst.msk [vmem:[#allocation2 + $0xbc] sm:$0xf] %vm186, 0
        %235 = vst.msk [vmem:[#allocation2 + $0xc0] sm:$0xf] %vm186, 0
        %236 = vst.msk [vmem:[#allocation2 + $0xc4] sm:$0xf] %vm186, 0
        %237 = vst.msk [vmem:[#allocation2 + $0xc8] sm:$0xf] %vm186, 0
        %238 = vst.msk [vmem:[#allocation2 + $0xcc] sm:$0xf] %vm186, 0
        %239 = vst.msk [vmem:[#allocation2 + $0xd0] sm:$0xf] %vm186, 0
        %240 = vst.msk [vmem:[#allocation2 + $0xd4] sm:$0xf] %vm186, 0
        %v241 = vld [vmem:[%s178] sm:$0xff]
        %v242 = vld [vmem:[%s178 + $0x8] sm:$0xff]
        %v243 = vld [vmem:[%s178 + $0x10] sm:$0xff]
        %v244 = vld [vmem:[%s178 + $0x18] sm:$0xff]
        %v245 = vld [vmem:[%s178 + $0x20] sm:$0xff]
        %v246 = vld [vmem:[%s178 + $0x28] sm:$0xff]
        %v247 = vld [vmem:[%s178 + $0x30] sm:$0xff]
        %v248 = vld [vmem:[%s178 + $0x38] sm:$0xff]
        %v249 = vld [vmem:[%s178 + $0x40] sm:$0xff]
        %v250 = vld [vmem:[%s178 + $0x48] sm:$0xff]
        %v251 = vld [vmem:[%s178 + $0x50] sm:$0xff]
        %v252 = vld [vmem:[%s178 + $0x58] sm:$0xff]
        %v253 = vld [vmem:[%s178 + $0x60] sm:$0xff]
        %v254 = vld [vmem:[%s178 + $0x68] sm:$0xff]
        %v255 = vld [vmem:[%s178 + $0x70] sm:$0xff]
        %v256 = vld [vmem:[%s178 + $0x78] sm:$0xff]
        %v257 = vld [vmem:[%s178 + $0x80] sm:$0xff]
        %v258 = vld [vmem:[%s178 + $0x88] sm:$0xff]
        %v259 = vld [vmem:[%s178 + $0x90] sm:$0xff]
        %v260 = vld [vmem:[%s178 + $0x98] sm:$0xff]
        %v261 = vld [vmem:[%s178 + $0xa0] sm:$0xff]
        %v262 = vld [vmem:[%s178 + $0xa8] sm:$0xff]
        %v263 = vld [vmem:[%s178 + $0xb0] sm:$0xff]
        %v264 = vld [vmem:[%s178 + $0xb8] sm:$0xff]
        %v265 = vld [vmem:[%s178 + $0xc0] sm:$0xff]
        %v266 = vld [vmem:[%s178 + $0xc8] sm:$0xff]
        %v267 = vld [vmem:[%s178 + $0xd0] sm:$0xff]
        %v268 = vld [vmem:[%s178 + $0xd8] sm:$0xff]
        %v269 = vld [vmem:[%s178 + $0xe0] sm:$0xff]
        %v270 = vld [vmem:[%s178 + $0xe8] sm:$0xff]
        %v271 = vld [vmem:[%s178 + $0xf0] sm:$0xff]
        %v272 = vld [vmem:[%s178 + $0xf8] sm:$0xff]
        %v273 = vpack.c.bf16 %v242, %v241
        %v274 = vpack.c.bf16 %v244, %v243
        %v275 = vpack.c.bf16 %v246, %v245
        %v276 = vpack.c.bf16 %v248, %v247
        %v277 = vpack.c.bf16 %v250, %v249
        %v278 = vpack.c.bf16 %v252, %v251
        %v279 = vpack.c.bf16 %v254, %v253
        %v280 = vpack.c.bf16 %v256, %v255
        %v281 = vpack.c.bf16 %v258, %v257
        %v282 = vpack.c.bf16 %v260, %v259
        %v283 = vpack.c.bf16 %v262, %v261
        %v284 = vpack.c.bf16 %v264, %v263
        %v285 = vpack.c.bf16 %v266, %v265
        %v286 = vpack.c.bf16 %v268, %v267
        %v287 = vpack.c.bf16 %v270, %v269
        %v288 = vpack.c.bf16 %v272, %v271
        %v305 = vunpack.c.l.b16 %v273
        %v306 = vunpack.c.h.b16 %v273
        %v307 = vunpack.c.l.b16 %v274
        %v308 = vunpack.c.h.b16 %v274
        %v309 = vunpack.c.l.b16 %v275
        %v310 = vunpack.c.h.b16 %v275
        %v311 = vunpack.c.l.b16 %v276
        %v312 = vunpack.c.h.b16 %v276
        %v313 = vunpack.c.l.b16 %v277
        %v314 = vunpack.c.h.b16 %v277
        %v315 = vunpack.c.l.b16 %v278
        %v316 = vunpack.c.h.b16 %v278
        %v317 = vunpack.c.l.b16 %v279
        %v318 = vunpack.c.h.b16 %v279
        %v319 = vunpack.c.l.b16 %v280
        %v320 = vunpack.c.h.b16 %v280
        %v321 = vunpack.c.l.b16 %v281
        %v322 = vunpack.c.h.b16 %v281
        %v323 = vunpack.c.l.b16 %v282
        %v324 = vunpack.c.h.b16 %v282
        %v325 = vunpack.c.l.b16 %v283
        %v326 = vunpack.c.h.b16 %v283
        %v327 = vunpack.c.l.b16 %v284
        %v328 = vunpack.c.h.b16 %v284
        %v329 = vunpack.c.l.b16 %v285
        %v330 = vunpack.c.h.b16 %v285
        %v331 = vunpack.c.l.b16 %v286
        %v332 = vunpack.c.h.b16 %v286
        %v333 = vunpack.c.l.b16 %v287
        %v334 = vunpack.c.h.b16 %v287
        %v335 = vunpack.c.l.b16 %v288
        %v336 = vunpack.c.h.b16 %v288
        %v337 = vpack.c.b16 %v305, %v305
        %v338 = vpack.c.b16 %v306, %v306
        %v339 = vpack.c.b16 %v307, %v307
        %v340 = vpack.c.b16 %v308, %v308
        %v341 = vpack.c.b16 %v309, %v309
        %v342 = vpack.c.b16 %v310, %v310
        %v343 = vpack.c.b16 %v311, %v311
        %v344 = vpack.c.b16 %v312, %v312
        %v345 = vpack.c.b16 %v313, %v313
        %v346 = vpack.c.b16 %v314, %v314
        %v347 = vpack.c.b16 %v315, %v315
        %v348 = vpack.c.b16 %v316, %v316
        %v349 = vpack.c.b16 %v317, %v317
        %v350 = vpack.c.b16 %v318, %v318
        %v351 = vpack.c.b16 %v319, %v319
        %v352 = vpack.c.b16 %v320, %v320
        %v353 = vpack.c.b16 %v321, %v321
        %v354 = vpack.c.b16 %v322, %v322
        %v355 = vpack.c.b16 %v323, %v323
        %v356 = vpack.c.b16 %v324, %v324
        %v357 = vpack.c.b16 %v325, %v325
        %v358 = vpack.c.b16 %v326, %v326
        %v359 = vpack.c.b16 %v327, %v327
        %v360 = vpack.c.b16 %v328, %v328
        %v361 = vpack.c.b16 %v329, %v329
        %v362 = vpack.c.b16 %v330, %v330
        %v363 = vpack.c.b16 %v331, %v331
        %v364 = vpack.c.b16 %v332, %v332
        %v365 = vpack.c.b16 %v333, %v333
        %v366 = vpack.c.b16 %v334, %v334
        %v367 = vpack.c.b16 %v335, %v335
        %v368 = vpack.c.b16 %v336, %v336
        %vm369 = vsmask.f32 256
        %vm370 = vsmask.f32 4368
        %vm371 = vmor %vm369, %vm370
        %v373 = vshrl.u32 %v337, 16
        %v375 = vrot.slane %v373, 7
        %v376 = vshll.u32 %v337, 16
        %v378 = vor.u32 %v375, %v376
        %v379 = vrot.slane %v375, 4
        %v381 = vshrl.u32 %v338, 16
        %v383 = vrot.slane %v381, 7
        %v384 = vshll.u32 %v338, 16
        %v386 = vor.u32 %v383, %v384
        %v387 = vsel %vm371, %v379, %v386
        %v388 = vrot.slane %v383, 4
        %v390 = vshrl.u32 %v339, 16
        %v392 = vrot.slane %v390, 7
        %v393 = vshll.u32 %v339, 16
        %v395 = vor.u32 %v392, %v393
        %v396 = vrot.slane %v392, 4
        %v398 = vshrl.u32 %v340, 16
        %v400 = vrot.slane %v398, 7
        %v401 = vshll.u32 %v340, 16
        %v403 = vor.u32 %v400, %v401
        %v404 = vsel %vm371, %v396, %v403
        %v405 = vrot.slane %v400, 4
        %v407 = vshrl.u32 %v341, 16
        %v409 = vrot.slane %v407, 7
        %v410 = vshll.u32 %v341, 16
        %v412 = vor.u32 %v409, %v410
        %v413 = vrot.slane %v409, 4
        %v415 = vshrl.u32 %v342, 16
        %v417 = vrot.slane %v415, 7
        %v418 = vshll.u32 %v342, 16
        %v420 = vor.u32 %v417, %v418
        %v421 = vsel %vm371, %v413, %v420
        %v422 = vrot.slane %v417, 4
        %v424 = vshrl.u32 %v343, 16
        %v426 = vrot.slane %v424, 7
        %v427 = vshll.u32 %v343, 16
        %v429 = vor.u32 %v426, %v427
        %v430 = vrot.slane %v426, 4
        %v432 = vshrl.u32 %v344, 16
        %v434 = vrot.slane %v432, 7
        %v435 = vshll.u32 %v344, 16
        %v437 = vor.u32 %v434, %v435
        %v438 = vsel %vm371, %v430, %v437
        %v439 = vrot.slane %v434, 4
        %v441 = vshrl.u32 %v345, 16
        %v443 = vrot.slane %v441, 7
        %v444 = vshll.u32 %v345, 16
        %v446 = vor.u32 %v443, %v444
        %v447 = vrot.slane %v443, 4
        %v449 = vshrl.u32 %v346, 16
        %v451 = vrot.slane %v449, 7
        %v452 = vshll.u32 %v346, 16
        %v454 = vor.u32 %v451, %v452
        %v455 = vsel %vm371, %v447, %v454
        %v456 = vrot.slane %v451, 4
        %v458 = vshrl.u32 %v347, 16
        %v460 = vrot.slane %v458, 7
        %v461 = vshll.u32 %v347, 16
        %v463 = vor.u32 %v460, %v461
        %v464 = vrot.slane %v460, 4
        %v466 = vshrl.u32 %v348, 16
        %v468 = vrot.slane %v466, 7
        %v469 = vshll.u32 %v348, 16
        %v471 = vor.u32 %v468, %v469
        %v472 = vsel %vm371, %v464, %v471
        %v473 = vrot.slane %v468, 4
        %v475 = vshrl.u32 %v349, 16
        %v477 = vrot.slane %v475, 7
        %v478 = vshll.u32 %v349, 16
        %v480 = vor.u32 %v477, %v478
        %v481 = vrot.slane %v477, 4
        %v483 = vshrl.u32 %v350, 16
        %v485 = vrot.slane %v483, 7
        %v486 = vshll.u32 %v350, 16
        %v488 = vor.u32 %v485, %v486
        %v489 = vsel %vm371, %v481, %v488
        %v490 = vrot.slane %v485, 4
        %v492 = vshrl.u32 %v351, 16
        %v494 = vrot.slane %v492, 7
        %v495 = vshll.u32 %v351, 16
        %v497 = vor.u32 %v494, %v495
        %v498 = vrot.slane %v494, 4
        %v500 = vshrl.u32 %v352, 16
        %v502 = vrot.slane %v500, 7
        %v503 = vshll.u32 %v352, 16
        %v505 = vor.u32 %v502, %v503
        %v506 = vsel %vm371, %v498, %v505
        %v507 = vrot.slane %v502, 4
        %v509 = vshrl.u32 %v353, 16
        %v511 = vrot.slane %v509, 7
        %v512 = vshll.u32 %v353, 16
        %v514 = vor.u32 %v511, %v512
        %v515 = vrot.slane %v511, 4
        %v517 = vshrl.u32 %v354, 16
        %v519 = vrot.slane %v517, 7
        %v520 = vshll.u32 %v354, 16
        %v522 = vor.u32 %v519, %v520
        %v523 = vsel %vm371, %v515, %v522
        %v524 = vrot.slane %v519, 4
        %v526 = vshrl.u32 %v355, 16
        %v528 = vrot.slane %v526, 7
        %v529 = vshll.u32 %v355, 16
        %v531 = vor.u32 %v528, %v529
        %v532 = vrot.slane %v528, 4
        %v534 = vshrl.u32 %v356, 16
        %v536 = vrot.slane %v534, 7
        %v537 = vshll.u32 %v356, 16
        %v539 = vor.u32 %v536, %v537
        %v540 = vsel %vm371, %v532, %v539
        %v541 = vrot.slane %v536, 4
        %v543 = vshrl.u32 %v357, 16
        %v545 = vrot.slane %v543, 7
        %v546 = vshll.u32 %v357, 16
        %v548 = vor.u32 %v545, %v546
        %v549 = vrot.slane %v545, 4
        %v551 = vshrl.u32 %v358, 16
        %v553 = vrot.slane %v551, 7
        %v554 = vshll.u32 %v358, 16
        %v556 = vor.u32 %v553, %v554
        %v557 = vsel %vm371, %v549, %v556
        %v558 = vrot.slane %v553, 4
        %v560 = vshrl.u32 %v359, 16
        %v562 = vrot.slane %v560, 7
        %v563 = vshll.u32 %v359, 16
        %v565 = vor.u32 %v562, %v563
        %v566 = vrot.slane %v562, 4
        %v568 = vshrl.u32 %v360, 16
        %v570 = vrot.slane %v568, 7
        %v571 = vshll.u32 %v360, 16
        %v573 = vor.u32 %v570, %v571
        %v574 = vsel %vm371, %v566, %v573
        %v575 = vrot.slane %v570, 4
        %v577 = vshrl.u32 %v361, 16
        %v579 = vrot.slane %v577, 7
        %v580 = vshll.u32 %v361, 16
        %v582 = vor.u32 %v579, %v580
        %v583 = vrot.slane %v579, 4
        %v585 = vshrl.u32 %v362, 16
        %v587 = vrot.slane %v585, 7
        %v588 = vshll.u32 %v362, 16
        %v590 = vor.u32 %v587, %v588
        %v591 = vsel %vm371, %v583, %v590
        %v592 = vrot.slane %v587, 4
        %v594 = vshrl.u32 %v363, 16
        %v596 = vrot.slane %v594, 7
        %v597 = vshll.u32 %v363, 16
        %v599 = vor.u32 %v596, %v597
        %v600 = vrot.slane %v596, 4
        %v602 = vshrl.u32 %v364, 16
        %v604 = vrot.slane %v602, 7
        %v605 = vshll.u32 %v364, 16
        %v607 = vor.u32 %v604, %v605
        %v608 = vsel %vm371, %v600, %v607
        %v609 = vrot.slane %v604, 4
        %v611 = vshrl.u32 %v365, 16
        %v613 = vrot.slane %v611, 7
        %v614 = vshll.u32 %v365, 16
        %v616 = vor.u32 %v613, %v614
        %v617 = vrot.slane %v613, 4
        %v619 = vshrl.u32 %v366, 16
        %v621 = vrot.slane %v619, 7
        %v622 = vshll.u32 %v366, 16
        %v624 = vor.u32 %v621, %v622
        %v625 = vsel %vm371, %v617, %v624
        %v626 = vrot.slane %v621, 4
        %v628 = vshrl.u32 %v367, 16
        %v630 = vrot.slane %v628, 7
        %v631 = vshll.u32 %v367, 16
        %v633 = vor.u32 %v630, %v631
        %v634 = vrot.slane %v630, 4
        %v636 = vshrl.u32 %v368, 16
        %v638 = vrot.slane %v636, 7
        %v639 = vshll.u32 %v368, 16
        %v641 = vor.u32 %v638, %v639
        %v642 = vsel %vm371, %v634, %v641
        %v643 = vrot.slane %v638, 4
        %s692 = scalar_lea.vmem [#allocation2], 12
        %vm693 = vcmask 27648
        %vm694 = vsmask.f32 7938
        %vm695 = vmand %vm693, %vm694
        %v696 = vld [vmem:[%s692] sm:$0xf]
        %v697 = vsel %vm695, %v378, %v696
        %698 = vst [vmem:[%s692] sm:$0xf] %v697
        %699 = vst.msk [vmem:[%s692 + $0x4] sm:$0xf] %vm186, %v387
        %vm700 = vcmask 24576
        %vm701 = vmand %vm700, %vm369
        %v702 = vld [vmem:[%s692 + $0x8] sm:$0x1]
        %v703 = vsel %vm701, %v388, %v702
        %704 = vst [vmem:[%s692 + $0x8] sm:$0x1] %v703
        %v705 = vld [vmem:[%s692 + $0xc] sm:$0xf]
        %v706 = vsel %vm695, %v395, %v705
        %707 = vst [vmem:[%s692 + $0xc] sm:$0xf] %v706
        %708 = vst.msk [vmem:[%s692 + $0x10] sm:$0xf] %vm186, %v404
        %v709 = vld [vmem:[%s692 + $0x14] sm:$0x1]
        %v710 = vsel %vm701, %v405, %v709
        %711 = vst [vmem:[%s692 + $0x14] sm:$0x1] %v710
        %v712 = vld [vmem:[%s692 + $0x18] sm:$0xf]
        %v713 = vsel %vm695, %v412, %v712
        %714 = vst [vmem:[%s692 + $0x18] sm:$0xf] %v713
        %715 = vst.msk [vmem:[%s692 + $0x1c] sm:$0xf] %vm186, %v421
        %v716 = vld [vmem:[%s692 + $0x20] sm:$0x1]
        %v717 = vsel %vm701, %v422, %v716
        %718 = vst [vmem:[%s692 + $0x20] sm:$0x1] %v717
        %v719 = vld [vmem:[%s692 + $0x24] sm:$0xf]
        %v720 = vsel %vm695, %v429, %v719
        %721 = vst [vmem:[%s692 + $0x24] sm:$0xf] %v720
        %722 = vst.msk [vmem:[%s692 + $0x28] sm:$0xf] %vm186, %v438
        %v723 = vld [vmem:[%s692 + $0x2c] sm:$0x1]
        %v724 = vsel %vm701, %v439, %v723
        %725 = vst [vmem:[%s692 + $0x2c] sm:$0x1] %v724
        %v726 = vld [vmem:[%s692 + $0x30] sm:$0xf]
        %v727 = vsel %vm695, %v446, %v726
        %728 = vst [vmem:[%s692 + $0x30] sm:$0xf] %v727
        %729 = vst.msk [vmem:[%s692 + $0x34] sm:$0xf] %vm186, %v455
        %v730 = vld [vmem:[%s692 + $0x38] sm:$0x1]
        %v731 = vsel %vm701, %v456, %v730
        %732 = vst [vmem:[%s692 + $0x38] sm:$0x1] %v731
        %v733 = vld [vmem:[%s692 + $0x3c] sm:$0xf]
        %v734 = vsel %vm695, %v463, %v733
        %735 = vst [vmem:[%s692 + $0x3c] sm:$0xf] %v734
        %736 = vst.msk [vmem:[%s692 + $0x40] sm:$0xf] %vm186, %v472
        %v737 = vld [vmem:[%s692 + $0x44] sm:$0x1]
        %v738 = vsel %vm701, %v473, %v737
        %739 = vst [vmem:[%s692 + $0x44] sm:$0x1] %v738
        %v740 = vld [vmem:[%s692 + $0x48] sm:$0xf]
        %v741 = vsel %vm695, %v480, %v740
        %742 = vst [vmem:[%s692 + $0x48] sm:$0xf] %v741
        %743 = vst.msk [vmem:[%s692 + $0x4c] sm:$0xf] %vm186, %v489
        %v744 = vld [vmem:[%s692 + $0x50] sm:$0x1]
        %v745 = vsel %vm701, %v490, %v744
        %746 = vst [vmem:[%s692 + $0x50] sm:$0x1] %v745
        %v747 = vld [vmem:[%s692 + $0x54] sm:$0xf]
        %v748 = vsel %vm695, %v497, %v747
        %749 = vst [vmem:[%s692 + $0x54] sm:$0xf] %v748
        %750 = vst.msk [vmem:[%s692 + $0x58] sm:$0xf] %vm186, %v506
        %v751 = vld [vmem:[%s692 + $0x5c] sm:$0x1]
        %v752 = vsel %vm701, %v507, %v751
        %753 = vst [vmem:[%s692 + $0x5c] sm:$0x1] %v752
        %v754 = vld [vmem:[%s692 + $0x60] sm:$0xf]
        %v755 = vsel %vm695, %v514, %v754
        %756 = vst [vmem:[%s692 + $0x60] sm:$0xf] %v755
        %757 = vst.msk [vmem:[%s692 + $0x64] sm:$0xf] %vm186, %v523
        %v758 = vld [vmem:[%s692 + $0x68] sm:$0x1]
        %v759 = vsel %vm701, %v524, %v758
        %760 = vst [vmem:[%s692 + $0x68] sm:$0x1] %v759
        %v761 = vld [vmem:[%s692 + $0x6c] sm:$0xf]
        %v762 = vsel %vm695, %v531, %v761
        %763 = vst [vmem:[%s692 + $0x6c] sm:$0xf] %v762
        %764 = vst.msk [vmem:[%s692 + $0x70] sm:$0xf] %vm186, %v540
        %v765 = vld [vmem:[%s692 + $0x74] sm:$0x1]
        %v766 = vsel %vm701, %v541, %v765
        %767 = vst [vmem:[%s692 + $0x74] sm:$0x1] %v766
        %v768 = vld [vmem:[%s692 + $0x78] sm:$0xf]
        %v769 = vsel %vm695, %v548, %v768
        %770 = vst [vmem:[%s692 + $0x78] sm:$0xf] %v769
        %771 = vst.msk [vmem:[%s692 + $0x7c] sm:$0xf] %vm186, %v557
        %v772 = vld [vmem:[%s692 + $0x80] sm:$0x1]
        %v773 = vsel %vm701, %v558, %v772
        %774 = vst [vmem:[%s692 + $0x80] sm:$0x1] %v773
        %v775 = vld [vmem:[%s692 + $0x84] sm:$0xf]
        %v776 = vsel %vm695, %v565, %v775
        %777 = vst [vmem:[%s692 + $0x84] sm:$0xf] %v776
        %778 = vst.msk [vmem:[%s692 + $0x88] sm:$0xf] %vm186, %v574
        %v779 = vld [vmem:[%s692 + $0x8c] sm:$0x1]
        %v780 = vsel %vm701, %v575, %v779
        %781 = vst [vmem:[%s692 + $0x8c] sm:$0x1] %v780
        %v782 = vld [vmem:[%s692 + $0x90] sm:$0xf]
        %v783 = vsel %vm695, %v582, %v782
        %784 = vst [vmem:[%s692 + $0x90] sm:$0xf] %v783
        %785 = vst.msk [vmem:[%s692 + $0x94] sm:$0xf] %vm186, %v591
        %v786 = vld [vmem:[%s692 + $0x98] sm:$0x1]
        %v787 = vsel %vm701, %v592, %v786
        %788 = vst [vmem:[%s692 + $0x98] sm:$0x1] %v787
        %v789 = vld [vmem:[%s692 + $0x9c] sm:$0xf]
        %v790 = vsel %vm695, %v599, %v789
        %791 = vst [vmem:[%s692 + $0x9c] sm:$0xf] %v790
        %792 = vst.msk [vmem:[%s692 + $0xa0] sm:$0xf] %vm186, %v608
        %v793 = vld [vmem:[%s692 + $0xa4] sm:$0x1]
        %v794 = vsel %vm701, %v609, %v793
        %795 = vst [vmem:[%s692 + $0xa4] sm:$0x1] %v794
        %v796 = vld [vmem:[%s692 + $0xa8] sm:$0xf]
        %v797 = vsel %vm695, %v616, %v796
        %798 = vst [vmem:[%s692 + $0xa8] sm:$0xf] %v797
        %799 = vst.msk [vmem:[%s692 + $0xac] sm:$0xf] %vm186, %v625
        %v800 = vld [vmem:[%s692 + $0xb0] sm:$0x1]
        %v801 = vsel %vm701, %v626, %v800
        %802 = vst [vmem:[%s692 + $0xb0] sm:$0x1] %v801
        %v803 = vld [vmem:[%s692 + $0xb4] sm:$0xf]
        %v804 = vsel %vm695, %v633, %v803
        %805 = vst [vmem:[%s692 + $0xb4] sm:$0xf] %v804
        %806 = vst.msk [vmem:[%s692 + $0xb8] sm:$0xf] %vm186, %v642
        %v807 = vld [vmem:[%s692 + $0xbc] sm:$0x1]
        %v808 = vsel %vm701, %v643, %v807
        %809 = vst [vmem:[%s692 + $0xbc] sm:$0x1] %v808
        %v810 = vld [vmem:[#allocation2] sm:$0xf]
        %v811 = vld [vmem:[#allocation2 + $0x4] sm:$0xf]
        %v812 = vld [vmem:[#allocation2 + $0x8] sm:$0xf]
        %v813 = vld [vmem:[#allocation2 + $0xc] sm:$0xf]
        %v814 = vld [vmem:[#allocation2 + $0x10] sm:$0xf]
        %v815 = vld [vmem:[#allocation2 + $0x14] sm:$0xf]
        %v816 = vld [vmem:[#allocation2 + $0x18] sm:$0xf]
        %v817 = vld [vmem:[#allocation2 + $0x1c] sm:$0xf]
        %v818 = vld [vmem:[#allocation2 + $0x20] sm:$0xf]
        %v819 = vld [vmem:[#allocation2 + $0x24] sm:$0xf]
        %v820 = vld [vmem:[#allocation2 + $0x28] sm:$0xf]
        %v821 = vld [vmem:[#allocation2 + $0x2c] sm:$0xf]
        %v822 = vld [vmem:[#allocation2 + $0x30] sm:$0xf]
        %v823 = vld [vmem:[#allocation2 + $0x34] sm:$0xf]
        %v824 = vld [vmem:[#allocation2 + $0x38] sm:$0xf]
        %v825 = vld [vmem:[#allocation2 + $0x3c] sm:$0xf]
        %v826 = vld [vmem:[#allocation2 + $0x40] sm:$0xf]
        %v827 = vld [vmem:[#allocation2 + $0x44] sm:$0xf]
        %v828 = vld [vmem:[#allocation2 + $0x48] sm:$0xf]
        %v829 = vld [vmem:[#allocation2 + $0x4c] sm:$0xf]
        %v830 = vld [vmem:[#allocation2 + $0x50] sm:$0xf]
        %v831 = vld [vmem:[#allocation2 + $0x54] sm:$0xf]
        %v832 = vld [vmem:[#allocation2 + $0x58] sm:$0xf]
        %v833 = vld [vmem:[#allocation2 + $0x5c] sm:$0xf]
        %v834 = vld [vmem:[#allocation2 + $0x60] sm:$0xf]
        %v835 = vld [vmem:[#allocation2 + $0x64] sm:$0xf]
        %v836 = vld [vmem:[#allocation2 + $0x68] sm:$0xf]
        %v837 = vld [vmem:[#allocation2 + $0x6c] sm:$0xf]
        %v838 = vld [vmem:[#allocation2 + $0x70] sm:$0xf]
        %v839 = vld [vmem:[#allocation2 + $0x74] sm:$0xf]
        %v840 = vld [vmem:[#allocation2 + $0x78] sm:$0xf]
        %v841 = vld [vmem:[#allocation2 + $0x7c] sm:$0xf]
        %v842 = vld [vmem:[#allocation2 + $0x80] sm:$0xf]
        %v843 = vld [vmem:[#allocation2 + $0x84] sm:$0xf]
        %v844 = vld [vmem:[#allocation2 + $0x88] sm:$0xf]
        %v845 = vld [vmem:[#allocation2 + $0x8c] sm:$0xf]
        %v846 = vld [vmem:[#allocation2 + $0x90] sm:$0xf]
        %v847 = vld [vmem:[#allocation2 + $0x94] sm:$0xf]
        %v848 = vld [vmem:[#allocation2 + $0x98] sm:$0xf]
        %v849 = vld [vmem:[#allocation2 + $0x9c] sm:$0xf]
        %v850 = vld [vmem:[#allocation2 + $0xa0] sm:$0xf]
        %v851 = vld [vmem:[#allocation2 + $0xa4] sm:$0xf]
        %v852 = vld [vmem:[#allocation2 + $0xa8] sm:$0xf]
        %v853 = vld [vmem:[#allocation2 + $0xac] sm:$0xf]
        %v854 = vld [vmem:[#allocation2 + $0xb0] sm:$0xf]
        %v855 = vld [vmem:[#allocation2 + $0xb4] sm:$0xf]
        %v856 = vld [vmem:[#allocation2 + $0xb8] sm:$0xf]
        %v857 = vld [vmem:[#allocation2 + $0xbc] sm:$0xf]
        %v858 = vld [vmem:[#allocation2 + $0xc0] sm:$0xf]
        %v859 = vld [vmem:[#allocation2 + $0xc4] sm:$0xf]
        %v860 = vld [vmem:[#allocation2 + $0xc8] sm:$0xf]
        %v861 = vld [vmem:[#allocation2 + $0xcc] sm:$0xf]
        %v862 = vld [vmem:[#allocation2 + $0xd0] sm:$0xf]
        %v863 = vld [vmem:[#allocation2 + $0xd4] sm:$0xf]
        %v896 = vunpack.c.l.b16 %v810
        %v897 = vunpack.c.l.b16 %v811
        %v898 = vunpack.c.l.b16 %v813
        %v899 = vunpack.c.l.b16 %v814
        %v900 = vunpack.c.l.b16 %v816
        %v901 = vunpack.c.l.b16 %v817
        %v902 = vunpack.c.l.b16 %v819
        %v903 = vunpack.c.l.b16 %v820
        %v904 = vunpack.c.l.b16 %v822
        %v905 = vunpack.c.l.b16 %v823
        %v906 = vunpack.c.l.b16 %v825
        %v907 = vunpack.c.l.b16 %v826
        %v908 = vunpack.c.l.b16 %v828
        %v909 = vunpack.c.l.b16 %v829
        %v910 = vunpack.c.l.b16 %v831
        %v911 = vunpack.c.l.b16 %v832
        %v912 = vunpack.c.l.b16 %v834
        %v913 = vunpack.c.l.b16 %v835
        %v914 = vunpack.c.l.b16 %v837
        %v915 = vunpack.c.l.b16 %v838
        %v916 = vunpack.c.l.b16 %v840
        %v917 = vunpack.c.l.b16 %v841
        %v918 = vunpack.c.l.b16 %v843
        %v919 = vunpack.c.l.b16 %v844
        %v920 = vunpack.c.l.b16 %v846
        %v921 = vunpack.c.l.b16 %v847
        %v922 = vunpack.c.l.b16 %v849
        %v923 = vunpack.c.l.b16 %v850
        %v924 = vunpack.c.l.b16 %v852
        %v925 = vunpack.c.l.b16 %v853
        %v926 = vunpack.c.l.b16 %v855
        %v927 = vunpack.c.l.b16 %v856
        %v928 = vpack.c.b16 %v897, %v896
        %v929 = vpack.c.b16 %v899, %v898
        %v930 = vpack.c.b16 %v901, %v900
        %v931 = vpack.c.b16 %v903, %v902
        %v932 = vpack.c.b16 %v905, %v904
        %v933 = vpack.c.b16 %v907, %v906
        %v934 = vpack.c.b16 %v909, %v908
        %v935 = vpack.c.b16 %v911, %v910
        %v936 = vpack.c.b16 %v913, %v912
        %v937 = vpack.c.b16 %v915, %v914
        %v938 = vpack.c.b16 %v917, %v916
        %v939 = vpack.c.b16 %v919, %v918
        %v940 = vpack.c.b16 %v921, %v920
        %v941 = vpack.c.b16 %v923, %v922
        %v942 = vpack.c.b16 %v925, %v924
        %v943 = vpack.c.b16 %v927, %v926
        %v960 = vunpack.c.l.b16 %v812
        %v961 = vunpack.c.l.b16 %v815
        %v962 = vunpack.c.l.b16 %v818
        %v963 = vunpack.c.l.b16 %v821
        %v964 = vunpack.c.l.b16 %v824
        %v965 = vunpack.c.l.b16 %v827
        %v966 = vunpack.c.l.b16 %v830
        %v967 = vunpack.c.l.b16 %v833
        %v968 = vunpack.c.l.b16 %v836
        %v969 = vunpack.c.l.b16 %v839
        %v970 = vunpack.c.l.b16 %v842
        %v971 = vunpack.c.l.b16 %v845
        %v972 = vunpack.c.l.b16 %v848
        %v973 = vunpack.c.l.b16 %v851
        %v974 = vunpack.c.l.b16 %v854
        %v975 = vunpack.c.l.b16 %v857
        %v976 = vpack.c.b16 %v960, %v960
        %v977 = vpack.c.b16 %v961, %v961
        %v978 = vpack.c.b16 %v962, %v962
        %v979 = vpack.c.b16 %v963, %v963
        %v980 = vpack.c.b16 %v964, %v964
        %v981 = vpack.c.b16 %v965, %v965
        %v982 = vpack.c.b16 %v966, %v966
        %v983 = vpack.c.b16 %v967, %v967
        %v984 = vpack.c.b16 %v968, %v968
        %v985 = vpack.c.b16 %v969, %v969
        %v986 = vpack.c.b16 %v970, %v970
        %v987 = vpack.c.b16 %v971, %v971
        %v988 = vpack.c.b16 %v972, %v972
        %v989 = vpack.c.b16 %v973, %v973
        %v990 = vpack.c.b16 %v974, %v974
        %v991 = vpack.c.b16 %v975, %v975
        %vm992 = vsmask.f32 7424
        %v994 = vshrl.u32 %v928, 16
        %v996 = vshll.u32 %v928, 16
        %v998 = vrot.slane %v996, 1
        %v999 = vor.u32 %v994, %v998
        %v1001 = vshll.u32 %v976, 16
        %v1003 = vrot.slane %v1001, 1
        %v1004 = vsel %vm992, %v999, %v1003
        %v1006 = vshrl.u32 %v929, 16
        %v1008 = vshll.u32 %v929, 16
        %v1010 = vrot.slane %v1008, 1
        %v1011 = vor.u32 %v1006, %v1010
        %v1013 = vshll.u32 %v977, 16
        %v1015 = vrot.slane %v1013, 1
        %v1016 = vsel %vm992, %v1011, %v1015
        %v1018 = vshrl.u32 %v930, 16
        %v1020 = vshll.u32 %v930, 16
        %v1022 = vrot.slane %v1020, 1
        %v1023 = vor.u32 %v1018, %v1022
        %v1025 = vshll.u32 %v978, 16
        %v1027 = vrot.slane %v1025, 1
        %v1028 = vsel %vm992, %v1023, %v1027
        %v1030 = vshrl.u32 %v931, 16
        %v1032 = vshll.u32 %v931, 16
        %v1034 = vrot.slane %v1032, 1
        %v1035 = vor.u32 %v1030, %v1034
        %v1037 = vshll.u32 %v979, 16
        %v1039 = vrot.slane %v1037, 1
        %v1040 = vsel %vm992, %v1035, %v1039
        %v1042 = vshrl.u32 %v932, 16
        %v1044 = vshll.u32 %v932, 16
        %v1046 = vrot.slane %v1044, 1
        %v1047 = vor.u32 %v1042, %v1046
        %v1049 = vshll.u32 %v980, 16
        %v1051 = vrot.slane %v1049, 1
        %v1052 = vsel %vm992, %v1047, %v1051
        %v1054 = vshrl.u32 %v933, 16
        %v1056 = vshll.u32 %v933, 16
        %v1058 = vrot.slane %v1056, 1
        %v1059 = vor.u32 %v1054, %v1058
        %v1061 = vshll.u32 %v981, 16
        %v1063 = vrot.slane %v1061, 1
        %v1064 = vsel %vm992, %v1059, %v1063
        %v1066 = vshrl.u32 %v934, 16
        %v1068 = vshll.u32 %v934, 16
        %v1070 = vrot.slane %v1068, 1
        %v1071 = vor.u32 %v1066, %v1070
        %v1073 = vshll.u32 %v982, 16
        %v1075 = vrot.slane %v1073, 1
        %v1076 = vsel %vm992, %v1071, %v1075
        %v1078 = vshrl.u32 %v935, 16
        %v1080 = vshll.u32 %v935, 16
        %v1082 = vrot.slane %v1080, 1
        %v1083 = vor.u32 %v1078, %v1082
        %v1085 = vshll.u32 %v983, 16
        %v1087 = vrot.slane %v1085, 1
        %v1088 = vsel %vm992, %v1083, %v1087
        %v1090 = vshrl.u32 %v936, 16
        %v1092 = vshll.u32 %v936, 16
        %v1094 = vrot.slane %v1092, 1
        %v1095 = vor.u32 %v1090, %v1094
        %v1097 = vshll.u32 %v984, 16
        %v1099 = vrot.slane %v1097, 1
        %v1100 = vsel %vm992, %v1095, %v1099
        %v1102 = vshrl.u32 %v937, 16
        %v1104 = vshll.u32 %v937, 16
        %v1106 = vrot.slane %v1104, 1
        %v1107 = vor.u32 %v1102, %v1106
        %v1109 = vshll.u32 %v985, 16
        %v1111 = vrot.slane %v1109, 1
        %v1112 = vsel %vm992, %v1107, %v1111
        %v1114 = vshrl.u32 %v938, 16
        %v1116 = vshll.u32 %v938, 16
        %v1118 = vrot.slane %v1116, 1
        %v1119 = vor.u32 %v1114, %v1118
        %v1121 = vshll.u32 %v986, 16
        %v1123 = vrot.slane %v1121, 1
        %v1124 = vsel %vm992, %v1119, %v1123
        %v1126 = vshrl.u32 %v939, 16
        %v1128 = vshll.u32 %v939, 16
        %v1130 = vrot.slane %v1128, 1
        %v1131 = vor.u32 %v1126, %v1130
        %v1133 = vshll.u32 %v987, 16
        %v1135 = vrot.slane %v1133, 1
        %v1136 = vsel %vm992, %v1131, %v1135
        %v1138 = vshrl.u32 %v940, 16
        %v1140 = vshll.u32 %v940, 16
        %v1142 = vrot.slane %v1140, 1
        %v1143 = vor.u32 %v1138, %v1142
        %v1145 = vshll.u32 %v988, 16
        %v1147 = vrot.slane %v1145, 1
        %v1148 = vsel %vm992, %v1143, %v1147
        %v1150 = vshrl.u32 %v941, 16
        %v1152 = vshll.u32 %v941, 16
        %v1154 = vrot.slane %v1152, 1
        %v1155 = vor.u32 %v1150, %v1154
        %v1157 = vshll.u32 %v989, 16
        %v1159 = vrot.slane %v1157, 1
        %v1160 = vsel %vm992, %v1155, %v1159
        %v1162 = vshrl.u32 %v942, 16
        %v1164 = vshll.u32 %v942, 16
        %v1166 = vrot.slane %v1164, 1
        %v1167 = vor.u32 %v1162, %v1166
        %v1169 = vshll.u32 %v990, 16
        %v1171 = vrot.slane %v1169, 1
        %v1172 = vsel %vm992, %v1167, %v1171
        %v1174 = vshrl.u32 %v943, 16
        %v1176 = vshll.u32 %v943, 16
        %v1178 = vrot.slane %v1176, 1
        %v1179 = vor.u32 %v1174, %v1178
        %v1181 = vshll.u32 %v991, 16
        %v1183 = vrot.slane %v1181, 1
        %v1184 = vsel %vm992, %v1179, %v1183
        %1185 = vrot.lane.b32.xlu0 %v1004, 4
        %v1186 = vpop.permute.xlu0 %1185
        %1187 = vrot.lane.b32.xlu0 %v1016, 4
        %v1188 = vpop.permute.xlu0 %1187
        %1189 = vrot.lane.b32.xlu0 %v1028, 4
        %v1190 = vpop.permute.xlu0 %1189
        %1191 = vrot.lane.b32.xlu0 %v1040, 4
        %v1192 = vpop.permute.xlu0 %1191
        %1193 = vrot.lane.b32.xlu0 %v1052, 4
        %v1194 = vpop.permute.xlu0 %1193
        %1195 = vrot.lane.b32.xlu0 %v1064, 4
        %v1196 = vpop.permute.xlu0 %1195
        %1197 = vrot.lane.b32.xlu0 %v1076, 4
        %v1198 = vpop.permute.xlu0 %1197
        %1199 = vrot.lane.b32.xlu0 %v1088, 4
        %v1200 = vpop.permute.xlu0 %1199
        %1201 = vrot.lane.b32.xlu0 %v1100, 4
        %v1202 = vpop.permute.xlu0 %1201
        %1203 = vrot.lane.b32.xlu0 %v1112, 4
        %v1204 = vpop.permute.xlu0 %1203
        %1205 = vrot.lane.b32.xlu0 %v1124, 4
        %v1206 = vpop.permute.xlu0 %1205
        %1207 = vrot.lane.b32.xlu0 %v1136, 4
        %v1208 = vpop.permute.xlu0 %1207
        %1209 = vrot.lane.b32.xlu0 %v1148, 4
        %v1210 = vpop.permute.xlu0 %1209
        %1211 = vrot.lane.b32.xlu0 %v1160, 4
        %v1212 = vpop.permute.xlu0 %1211
        %1213 = vrot.lane.b32.xlu0 %v1172, 4
        %v1214 = vpop.permute.xlu0 %1213
        %1215 = vrot.lane.b32.xlu0 %v1184, 4
        %v1216 = vpop.permute.xlu0 %1215
        %vm1217 = vcmask 1046528
        %v1218 = vrot.slane %v928, 1
        %v1219 = vrot.slane %v976, 1
        %v1220 = vsel %vm1217, %v1218, %v1219
        %v1221 = vrot.slane %v929, 1
        %v1222 = vrot.slane %v977, 1
        %v1223 = vsel %vm1217, %v1221, %v1222
        %v1224 = vrot.slane %v930, 1
        %v1225 = vrot.slane %v978, 1
        %v1226 = vsel %vm1217, %v1224, %v1225
        %v1227 = vrot.slane %v931, 1
        %v1228 = vrot.slane %v979, 1
        %v1229 = vsel %vm1217, %v1227, %v1228
        %v1230 = vrot.slane %v932, 1
        %v1231 = vrot.slane %v980, 1
        %v1232 = vsel %vm1217, %v1230, %v1231
        %v1233 = vrot.slane %v933, 1
        %v1234 = vrot.slane %v981, 1
        %v1235 = vsel %vm1217, %v1233, %v1234
        %v1236 = vrot.slane %v934, 1
        %v1237 = vrot.slane %v982, 1
        %v1238 = vsel %vm1217, %v1236, %v1237
        %v1239 = vrot.slane %v935, 1
        %v1240 = vrot.slane %v983, 1
        %v1241 = vsel %vm1217, %v1239, %v1240
        %v1242 = vrot.slane %v936, 1
        %v1243 = vrot.slane %v984, 1
        %v1244 = vsel %vm1217, %v1242, %v1243
        %v1245 = vrot.slane %v937, 1
        %v1246 = vrot.slane %v985, 1
        %v1247 = vsel %vm1217, %v1245, %v1246
        %v1248 = vrot.slane %v938, 1
        %v1249 = vrot.slane %v986, 1
        %v1250 = vsel %vm1217, %v1248, %v1249
        %v1251 = vrot.slane %v939, 1
        %v1252 = vrot.slane %v987, 1
        %v1253 = vsel %vm1217, %v1251, %v1252
        %v1254 = vrot.slane %v940, 1
        %v1255 = vrot.slane %v988, 1
        %v1256 = vsel %vm1217, %v1254, %v1255
        %v1257 = vrot.slane %v941, 1
        %v1258 = vrot.slane %v989, 1
        %v1259 = vsel %vm1217, %v1257, %v1258
        %v1260 = vrot.slane %v942, 1
        %v1261 = vrot.slane %v990, 1
        %v1262 = vsel %vm1217, %v1260, %v1261
        %v1263 = vrot.slane %v943, 1
        %v1264 = vrot.slane %v991, 1
        %v1265 = vsel %vm1217, %v1263, %v1264
        %1266 = vrot.lane.b32.xlu0 %v1220, 8
        %v1267 = vpop.permute.xlu0 %1266
        %1268 = vrot.lane.b32.xlu0 %v1223, 8
        %v1269 = vpop.permute.xlu0 %1268
        %1270 = vrot.lane.b32.xlu0 %v1226, 8
        %v1271 = vpop.permute.xlu0 %1270
        %1272 = vrot.lane.b32.xlu0 %v1229, 8
        %v1273 = vpop.permute.xlu0 %1272
        %1274 = vrot.lane.b32.xlu0 %v1232, 8
        %v1275 = vpop.permute.xlu0 %1274
        %1276 = vrot.lane.b32.xlu0 %v1235, 8
        %v1277 = vpop.permute.xlu0 %1276
        %1278 = vrot.lane.b32.xlu0 %v1238, 8
        %v1279 = vpop.permute.xlu0 %1278
        %1280 = vrot.lane.b32.xlu0 %v1241, 8
        %v1281 = vpop.permute.xlu0 %1280
        %1282 = vrot.lane.b32.xlu0 %v1244, 8
        %v1283 = vpop.permute.xlu0 %1282
        %1284 = vrot.lane.b32.xlu0 %v1247, 8
        %v1285 = vpop.permute.xlu0 %1284
        %1286 = vrot.lane.b32.xlu0 %v1250, 8
        %v1287 = vpop.permute.xlu0 %1286
        %1288 = vrot.lane.b32.xlu0 %v1253, 8
        %v1289 = vpop.permute.xlu0 %1288
        %1290 = vrot.lane.b32.xlu0 %v1256, 8
        %v1291 = vpop.permute.xlu0 %1290
        %1292 = vrot.lane.b32.xlu0 %v1259, 8
        %v1293 = vpop.permute.xlu0 %1292
        %1294 = vrot.lane.b32.xlu0 %v1262, 8
        %v1295 = vpop.permute.xlu0 %1294
        %1296 = vrot.lane.b32.xlu0 %v1265, 8
        %v1297 = vpop.permute.xlu0 %1296
        %v1300 = vunpack.c.l.b16 %v858
        %v1301 = vunpack.c.l.b16 %v859
        %v1302 = vpack.c.b16 %v1301, %v1300
        %1303 = vrot.lane.b32.xlu0 %v929, 12
        %v1304 = vpop.permute.xlu0 %1303
        %1305 = vrot.lane.b32.xlu0 %v930, 12
        %v1306 = vpop.permute.xlu0 %1305
        %1307 = vrot.lane.b32.xlu0 %v931, 12
        %v1308 = vpop.permute.xlu0 %1307
        %1309 = vrot.lane.b32.xlu0 %v932, 12
        %v1310 = vpop.permute.xlu0 %1309
        %1311 = vrot.lane.b32.xlu0 %v933, 12
        %v1312 = vpop.permute.xlu0 %1311
        %1313 = vrot.lane.b32.xlu0 %v934, 12
        %v1314 = vpop.permute.xlu0 %1313
        %1315 = vrot.lane.b32.xlu0 %v935, 12
        %v1316 = vpop.permute.xlu0 %1315
        %1317 = vrot.lane.b32.xlu0 %v936, 12
        %v1318 = vpop.permute.xlu0 %1317
        %1319 = vrot.lane.b32.xlu0 %v937, 12
        %v1320 = vpop.permute.xlu0 %1319
        %1321 = vrot.lane.b32.xlu0 %v938, 12
        %v1322 = vpop.permute.xlu0 %1321
        %1323 = vrot.lane.b32.xlu0 %v939, 12
        %v1324 = vpop.permute.xlu0 %1323
        %1325 = vrot.lane.b32.xlu0 %v940, 12
        %v1326 = vpop.permute.xlu0 %1325
        %1327 = vrot.lane.b32.xlu0 %v941, 12
        %v1328 = vpop.permute.xlu0 %1327
        %1329 = vrot.lane.b32.xlu0 %v942, 12
        %v1330 = vpop.permute.xlu0 %1329
        %1331 = vrot.lane.b32.xlu0 %v943, 12
        %v1332 = vpop.permute.xlu0 %1331
        %1333 = vrot.lane.b32.xlu0 %v1302, 12
        %v1334 = vpop.permute.xlu0 %1333
        %v1336 = vunpack.c.l.b16 %v860
        %v1337 = vpack.c.b16 %v1336, %v1336
        %v1339 = vshrl.u32 %v1302, 16
        %v1341 = vshll.u32 %v1302, 16
        %v1343 = vrot.slane %v1341, 1
        %v1344 = vor.u32 %v1339, %v1343
        %v1346 = vshll.u32 %v1337, 16
        %v1348 = vrot.slane %v1346, 1
        %v1349 = vsel %vm992, %v1344, %v1348
        %1350 = vrot.lane.b32.xlu0 %v1016, 16
        %v1351 = vpop.permute.xlu0 %1350
        %1352 = vrot.lane.b32.xlu0 %v1028, 16
        %v1353 = vpop.permute.xlu0 %1352
        %1354 = vrot.lane.b32.xlu0 %v1040, 16
        %v1355 = vpop.permute.xlu0 %1354
        %1356 = vrot.lane.b32.xlu0 %v1052, 16
        %v1357 = vpop.permute.xlu0 %1356
        %1358 = vrot.lane.b32.xlu0 %v1064, 16
        %v1359 = vpop.permute.xlu0 %1358
        %1360 = vrot.lane.b32.xlu0 %v1076, 16
        %v1361 = vpop.permute.xlu0 %1360
        %1362 = vrot.lane.b32.xlu0 %v1088, 16
        %v1363 = vpop.permute.xlu0 %1362
        %1364 = vrot.lane.b32.xlu0 %v1100, 16
        %v1365 = vpop.permute.xlu0 %1364
        %1366 = vrot.lane.b32.xlu0 %v1112, 16
        %v1367 = vpop.permute.xlu0 %1366
        %1368 = vrot.lane.b32.xlu0 %v1124, 16
        %v1369 = vpop.permute.xlu0 %1368
        %1370 = vrot.lane.b32.xlu0 %v1136, 16
        %v1371 = vpop.permute.xlu0 %1370
        %1372 = vrot.lane.b32.xlu0 %v1148, 16
        %v1373 = vpop.permute.xlu0 %1372
        %1374 = vrot.lane.b32.xlu0 %v1160, 16
        %v1375 = vpop.permute.xlu0 %1374
        %1376 = vrot.lane.b32.xlu0 %v1172, 16
        %v1377 = vpop.permute.xlu0 %1376
        %1378 = vrot.lane.b32.xlu0 %v1184, 16
        %v1379 = vpop.permute.xlu0 %1378
        %1380 = vrot.lane.b32.xlu0 %v1349, 16
        %v1381 = vpop.permute.xlu0 %1380
        %v1382 = vrot.slane %v1302, 1
        %v1383 = vrot.slane %v1337, 1
        %v1384 = vsel %vm1217, %v1382, %v1383
        %1385 = vrot.lane.b32.xlu0 %v1223, 20
        %v1386 = vpop.permute.xlu0 %1385
        %1387 = vrot.lane.b32.xlu0 %v1226, 20
        %v1388 = vpop.permute.xlu0 %1387
        %1389 = vrot.lane.b32.xlu0 %v1229, 20
        %v1390 = vpop.permute.xlu0 %1389
        %1391 = vrot.lane.b32.xlu0 %v1232, 20
        %v1392 = vpop.permute.xlu0 %1391
        %1393 = vrot.lane.b32.xlu0 %v1235, 20
        %v1394 = vpop.permute.xlu0 %1393
        %1395 = vrot.lane.b32.xlu0 %v1238, 20
        %v1396 = vpop.permute.xlu0 %1395
        %1397 = vrot.lane.b32.xlu0 %v1241, 20
        %v1398 = vpop.permute.xlu0 %1397
        %1399 = vrot.lane.b32.xlu0 %v1244, 20
        %v1400 = vpop.permute.xlu0 %1399
        %1401 = vrot.lane.b32.xlu0 %v1247, 20
        %v1402 = vpop.permute.xlu0 %1401
        %1403 = vrot.lane.b32.xlu0 %v1250, 20
        %v1404 = vpop.permute.xlu0 %1403
        %1405 = vrot.lane.b32.xlu0 %v1253, 20
        %v1406 = vpop.permute.xlu0 %1405
        %1407 = vrot.lane.b32.xlu0 %v1256, 20
        %v1408 = vpop.permute.xlu0 %1407
        %1409 = vrot.lane.b32.xlu0 %v1259, 20
        %v1410 = vpop.permute.xlu0 %1409
        %1411 = vrot.lane.b32.xlu0 %v1262, 20
        %v1412 = vpop.permute.xlu0 %1411
        %1413 = vrot.lane.b32.xlu0 %v1265, 20
        %v1414 = vpop.permute.xlu0 %1413
        %1415 = vrot.lane.b32.xlu0 %v1384, 20
        %v1416 = vpop.permute.xlu0 %1415
        %v1419 = vunpack.c.l.b16 %v861
        %v1420 = vunpack.c.l.b16 %v862
        %v1421 = vpack.c.b16 %v1420, %v1419
        %1422 = vrot.lane.b32.xlu0 %v930, 24
        %v1423 = vpop.permute.xlu0 %1422
        %1424 = vrot.lane.b32.xlu0 %v931, 24
        %v1425 = vpop.permute.xlu0 %1424
        %1426 = vrot.lane.b32.xlu0 %v932, 24
        %v1427 = vpop.permute.xlu0 %1426
        %1428 = vrot.lane.b32.xlu0 %v933, 24
        %v1429 = vpop.permute.xlu0 %1428
        %1430 = vrot.lane.b32.xlu0 %v934, 24
        %v1431 = vpop.permute.xlu0 %1430
        %1432 = vrot.lane.b32.xlu0 %v935, 24
        %v1433 = vpop.permute.xlu0 %1432
        %1434 = vrot.lane.b32.xlu0 %v936, 24
        %v1435 = vpop.permute.xlu0 %1434
        %1436 = vrot.lane.b32.xlu0 %v937, 24
        %v1437 = vpop.permute.xlu0 %1436
        %1438 = vrot.lane.b32.xlu0 %v938, 24
        %v1439 = vpop.permute.xlu0 %1438
        %1440 = vrot.lane.b32.xlu0 %v939, 24
        %v1441 = vpop.permute.xlu0 %1440
        %1442 = vrot.lane.b32.xlu0 %v940, 24
        %v1443 = vpop.permute.xlu0 %1442
        %1444 = vrot.lane.b32.xlu0 %v941, 24
        %v1445 = vpop.permute.xlu0 %1444
        %1446 = vrot.lane.b32.xlu0 %v942, 24
        %v1447 = vpop.permute.xlu0 %1446
        %1448 = vrot.lane.b32.xlu0 %v943, 24
        %v1449 = vpop.permute.xlu0 %1448
        %1450 = vrot.lane.b32.xlu0 %v1302, 24
        %v1451 = vpop.permute.xlu0 %1450
        %1452 = vrot.lane.b32.xlu0 %v1421, 24
        %v1453 = vpop.permute.xlu0 %1452
        %v1455 = vunpack.c.l.b16 %v863
        %v1456 = vpack.c.b16 %v1455, %v1455
        %v1458 = vshrl.u32 %v1421, 16
        %v1460 = vshll.u32 %v1421, 16
        %v1462 = vrot.slane %v1460, 1
        %v1463 = vor.u32 %v1458, %v1462
        %v1465 = vshll.u32 %v1456, 16
        %v1467 = vrot.slane %v1465, 1
        %v1468 = vsel %vm992, %v1463, %v1467
        %1469 = vrot.lane.b32.xlu0 %v1028, 28
        %v1470 = vpop.permute.xlu0 %1469
        %1471 = vrot.lane.b32.xlu0 %v1040, 28
        %v1472 = vpop.permute.xlu0 %1471
        %1473 = vrot.lane.b32.xlu0 %v1052, 28
        %v1474 = vpop.permute.xlu0 %1473
        %1475 = vrot.lane.b32.xlu0 %v1064, 28
        %v1476 = vpop.permute.xlu0 %1475
        %1477 = vrot.lane.b32.xlu0 %v1076, 28
        %v1478 = vpop.permute.xlu0 %1477
        %1479 = vrot.lane.b32.xlu0 %v1088, 28
        %v1480 = vpop.permute.xlu0 %1479
        %1481 = vrot.lane.b32.xlu0 %v1100, 28
        %v1482 = vpop.permute.xlu0 %1481
        %1483 = vrot.lane.b32.xlu0 %v1112, 28
        %v1484 = vpop.permute.xlu0 %1483
        %1485 = vrot.lane.b32.xlu0 %v1124, 28
        %v1486 = vpop.permute.xlu0 %1485
        %1487 = vrot.lane.b32.xlu0 %v1136, 28
        %v1488 = vpop.permute.xlu0 %1487
        %1489 = vrot.lane.b32.xlu0 %v1148, 28
        %v1490 = vpop.permute.xlu0 %1489
        %1491 = vrot.lane.b32.xlu0 %v1160, 28
        %v1492 = vpop.permute.xlu0 %1491
        %1493 = vrot.lane.b32.xlu0 %v1172, 28
        %v1494 = vpop.permute.xlu0 %1493
        %1495 = vrot.lane.b32.xlu0 %v1184, 28
        %v1496 = vpop.permute.xlu0 %1495
        %1497 = vrot.lane.b32.xlu0 %v1349, 28
        %v1498 = vpop.permute.xlu0 %1497
        %1499 = vrot.lane.b32.xlu0 %v1468, 28
        %v1500 = vpop.permute.xlu0 %1499
        %v1501 = vrot.slane %v1421, 1
        %v1502 = vrot.slane %v1456, 1
        %v1503 = vsel %vm1217, %v1501, %v1502
        %1504 = vrot.lane.b32.xlu0 %v1226, 32
        %v1505 = vpop.permute.xlu0 %1504
        %1506 = vrot.lane.b32.xlu0 %v1229, 32
        %v1507 = vpop.permute.xlu0 %1506
        %1508 = vrot.lane.b32.xlu0 %v1232, 32
        %v1509 = vpop.permute.xlu0 %1508
        %1510 = vrot.lane.b32.xlu0 %v1235, 32
        %v1511 = vpop.permute.xlu0 %1510
        %1512 = vrot.lane.b32.xlu0 %v1238, 32
        %v1513 = vpop.permute.xlu0 %1512
        %1514 = vrot.lane.b32.xlu0 %v1241, 32
        %v1515 = vpop.permute.xlu0 %1514
        %1516 = vrot.lane.b32.xlu0 %v1244, 32
        %v1517 = vpop.permute.xlu0 %1516
        %1518 = vrot.lane.b32.xlu0 %v1247, 32
        %v1519 = vpop.permute.xlu0 %1518
        %1520 = vrot.lane.b32.xlu0 %v1250, 32
        %v1521 = vpop.permute.xlu0 %1520
        %1522 = vrot.lane.b32.xlu0 %v1253, 32
        %v1523 = vpop.permute.xlu0 %1522
        %1524 = vrot.lane.b32.xlu0 %v1256, 32
        %v1525 = vpop.permute.xlu0 %1524
        %1526 = vrot.lane.b32.xlu0 %v1259, 32
        %v1527 = vpop.permute.xlu0 %1526
        %1528 = vrot.lane.b32.xlu0 %v1262, 32
        %v1529 = vpop.permute.xlu0 %1528
        %1530 = vrot.lane.b32.xlu0 %v1265, 32
        %v1531 = vpop.permute.xlu0 %1530
        %1532 = vrot.lane.b32.xlu0 %v1384, 32
        %v1533 = vpop.permute.xlu0 %1532
        %1534 = vrot.lane.b32.xlu0 %v1503, 32
        %v1535 = vpop.permute.xlu0 %1534
        %vm1536 = vcmask 31744
        %v1538 = vsel %vm1536, %v928, %v1186
        %v1540 = vsel %vm1536, %v929, %v1188
        %v1542 = vsel %vm1536, %v930, %v1190
        %v1544 = vsel %vm1536, %v931, %v1192
        %v1546 = vsel %vm1536, %v932, %v1194
        %v1548 = vsel %vm1536, %v933, %v1196
        %v1550 = vsel %vm1536, %v934, %v1198
        %v1552 = vsel %vm1536, %v935, %v1200
        %v1554 = vsel %vm1536, %v936, %v1202
        %v1556 = vsel %vm1536, %v937, %v1204
        %v1558 = vsel %vm1536, %v938, %v1206
        %v1560 = vsel %vm1536, %v939, %v1208
        %v1562 = vsel %vm1536, %v940, %v1210
        %v1564 = vsel %vm1536, %v941, %v1212
        %v1566 = vsel %vm1536, %v942, %v1214
        %v1568 = vsel %vm1536, %v943, %v1216
        %vm1569 = vcmask 64512
        %v1571 = vsel %vm1569, %v1538, %v1267
        %v1573 = vsel %vm1569, %v1540, %v1269
        %v1575 = vsel %vm1569, %v1542, %v1271
        %v1577 = vsel %vm1569, %v1544, %v1273
        %v1579 = vsel %vm1569, %v1546, %v1275
        %v1581 = vsel %vm1569, %v1548, %v1277
        %v1583 = vsel %vm1569, %v1550, %v1279
        %v1585 = vsel %vm1569, %v1552, %v1281
        %v1587 = vsel %vm1569, %v1554, %v1283
        %v1589 = vsel %vm1569, %v1556, %v1285
        %v1591 = vsel %vm1569, %v1558, %v1287
        %v1593 = vsel %vm1569, %v1560, %v1289
        %v1595 = vsel %vm1569, %v1562, %v1291
        %v1597 = vsel %vm1569, %v1564, %v1293
        %v1599 = vsel %vm1569, %v1566, %v1295
        %v1601 = vsel %vm1569, %v1568, %v1297
        %vm1602 = vcmask 97280
        %v1604 = vsel %vm1602, %v1571, %v1304
        %v1606 = vsel %vm1602, %v1573, %v1306
        %v1608 = vsel %vm1602, %v1575, %v1308
        %v1610 = vsel %vm1602, %v1577, %v1310
        %v1612 = vsel %vm1602, %v1579, %v1312
        %v1614 = vsel %vm1602, %v1581, %v1314
        %v1616 = vsel %vm1602, %v1583, %v1316
        %v1618 = vsel %vm1602, %v1585, %v1318
        %v1620 = vsel %vm1602, %v1587, %v1320
        %v1622 = vsel %vm1602, %v1589, %v1322
        %v1624 = vsel %vm1602, %v1591, %v1324
        %v1626 = vsel %vm1602, %v1593, %v1326
        %v1628 = vsel %vm1602, %v1595, %v1328
        %v1630 = vsel %vm1602, %v1597, %v1330
        %v1632 = vsel %vm1602, %v1599, %v1332
        %v1634 = vsel %vm1602, %v1601, %v1334
        %vm1635 = vcmask 130048
        %v1637 = vsel %vm1635, %v1604, %v1351
        %v1639 = vsel %vm1635, %v1606, %v1353
        %v1641 = vsel %vm1635, %v1608, %v1355
        %v1643 = vsel %vm1635, %v1610, %v1357
        %v1645 = vsel %vm1635, %v1612, %v1359
        %v1647 = vsel %vm1635, %v1614, %v1361
        %v1649 = vsel %vm1635, %v1616, %v1363
        %v1651 = vsel %vm1635, %v1618, %v1365
        %v1653 = vsel %vm1635, %v1620, %v1367
        %v1655 = vsel %vm1635, %v1622, %v1369
        %v1657 = vsel %vm1635, %v1624, %v1371
        %v1659 = vsel %vm1635, %v1626, %v1373
        %v1661 = vsel %vm1635, %v1628, %v1375
        %v1663 = vsel %vm1635, %v1630, %v1377
        %v1665 = vsel %vm1635, %v1632, %v1379
        %v1667 = vsel %vm1635, %v1634, %v1381
        %vm1668 = vcmask 162816
        %v1670 = vsel %vm1668, %v1637, %v1386
        %v1672 = vsel %vm1668, %v1639, %v1388
        %v1674 = vsel %vm1668, %v1641, %v1390
        %v1676 = vsel %vm1668, %v1643, %v1392
        %v1678 = vsel %vm1668, %v1645, %v1394
        %v1680 = vsel %vm1668, %v1647, %v1396
        %v1682 = vsel %vm1668, %v1649, %v1398
        %v1684 = vsel %vm1668, %v1651, %v1400
        %v1686 = vsel %vm1668, %v1653, %v1402
        %v1688 = vsel %vm1668, %v1655, %v1404
        %v1690 = vsel %vm1668, %v1657, %v1406
        %v1692 = vsel %vm1668, %v1659, %v1408
        %v1694 = vsel %vm1668, %v1661, %v1410
        %v1696 = vsel %vm1668, %v1663, %v1412
        %v1698 = vsel %vm1668, %v1665, %v1414
        %v1700 = vsel %vm1668, %v1667, %v1416
        %vm1701 = vcmask 195584
        %v1703 = vsel %vm1701, %v1670, %v1423
        %v1705 = vsel %vm1701, %v1672, %v1425
        %v1707 = vsel %vm1701, %v1674, %v1427
        %v1709 = vsel %vm1701, %v1676, %v1429
        %v1711 = vsel %vm1701, %v1678, %v1431
        %v1713 = vsel %vm1701, %v1680, %v1433
        %v1715 = vsel %vm1701, %v1682, %v1435
        %v1717 = vsel %vm1701, %v1684, %v1437
        %v1719 = vsel %vm1701, %v1686, %v1439
        %v1721 = vsel %vm1701, %v1688, %v1441
        %v1723 = vsel %vm1701, %v1690, %v1443
        %v1725 = vsel %vm1701, %v1692, %v1445
        %v1727 = vsel %vm1701, %v1694, %v1447
        %v1729 = vsel %vm1701, %v1696, %v1449
        %v1731 = vsel %vm1701, %v1698, %v1451
        %v1733 = vsel %vm1701, %v1700, %v1453
        %vm1734 = vcmask 228352
        %v1736 = vsel %vm1734, %v1703, %v1470
        %v1738 = vsel %vm1734, %v1705, %v1472
        %v1740 = vsel %vm1734, %v1707, %v1474
        %v1742 = vsel %vm1734, %v1709, %v1476
        %v1744 = vsel %vm1734, %v1711, %v1478
        %v1746 = vsel %vm1734, %v1713, %v1480
        %v1748 = vsel %vm1734, %v1715, %v1482
        %v1750 = vsel %vm1734, %v1717, %v1484
        %v1752 = vsel %vm1734, %v1719, %v1486
        %v1754 = vsel %vm1734, %v1721, %v1488
        %v1756 = vsel %vm1734, %v1723, %v1490
        %v1758 = vsel %vm1734, %v1725, %v1492
        %v1760 = vsel %vm1734, %v1727, %v1494
        %v1762 = vsel %vm1734, %v1729, %v1496
        %v1764 = vsel %vm1734, %v1731, %v1498
        %v1766 = vsel %vm1734, %v1733, %v1500
        %vm1767 = vcmask 261120
        %v1769 = vsel %vm1767, %v1736, %v1505
        %v1771 = vsel %vm1767, %v1738, %v1507
        %v1773 = vsel %vm1767, %v1740, %v1509
        %v1775 = vsel %vm1767, %v1742, %v1511
        %v1777 = vsel %vm1767, %v1744, %v1513
        %v1779 = vsel %vm1767, %v1746, %v1515
        %v1781 = vsel %vm1767, %v1748, %v1517
        %v1783 = vsel %vm1767, %v1750, %v1519
        %v1785 = vsel %vm1767, %v1752, %v1521
        %v1787 = vsel %vm1767, %v1754, %v1523
        %v1789 = vsel %vm1767, %v1756, %v1525
        %v1791 = vsel %vm1767, %v1758, %v1527
        %v1793 = vsel %vm1767, %v1760, %v1529
        %v1795 = vsel %vm1767, %v1762, %v1531
        %v1797 = vsel %vm1767, %v1764, %v1533
        %v1799 = vsel %vm1767, %v1766, %v1535
        %v1800 = vld [vmem:[%s1] sm:$0xf]
        %v1801 = vld [vmem:[%s1 + $0x4] sm:$0xf]
        %v1802 = vld [vmem:[%s1 + $0x8] sm:$0xf]
        %v1803 = vld [vmem:[%s1 + $0xc] sm:$0xf]
        %v1804 = vld [vmem:[%s1 + $0x10] sm:$0x3]
        %v1805 = vld [vmem:[#allocation3] sm:$0x1]
        %v1807 = vlaneseq
        %v1808 = vshrl.u32 %v1807, 7
        %v1809 = vsub.s32 0, %v1808
        %v1810 = vrot.slane %v1805, %v1809
        %v1817 = vunpack.c.l.b16 %v1800
        %v1818 = vunpack.c.l.b16 %v1801
        %v1819 = vunpack.c.l.b16 %v1802
        %v1820 = vunpack.c.l.b16 %v1803
        %v1821 = vunpack.c.l.b16 %v1804
        %v1822 = vpack.c.b16 %v1818, %v1817
        %v1823 = vpack.c.b16 %v1820, %v1819
        %v1824 = vpack.c.b16 %v1821, %v1821
        %vm1827 = vcmask 293888
        %v1828 = vsel %vm1827, %v1769, 0
        %v1830 = vsel %vm1827, %v1771, 0
        %v1832 = vsel %vm1827, %v1773, 0
        %v1834 = vsel %vm1827, %v1775, 0
        %v1836 = vsel %vm1827, %v1777, 0
        %v1838 = vsel %vm1827, %v1779, 0
        %v1840 = vsel %vm1827, %v1781, 0
        %v1842 = vsel %vm1827, %v1783, 0
        %v1844 = vsel %vm1827, %v1785, 0
        %v1846 = vsel %vm1827, %v1787, 0
        %v1848 = vsel %vm1827, %v1789, 0
        %v1850 = vsel %vm1827, %v1791, 0
        %v1852 = vsel %vm1827, %v1793, 0
        %v1854 = vsel %vm1827, %v1795, 0
        %v1856 = vsel %vm1827, %v1797, 0
        %v1858 = vsel %vm1827, %v1799, 0
        %vm1860 = vcmask 1041408
        %v1862 = vsel %vm1860, %v1824, 0
        %1864 = vmatprep.subr.bf16.mxu0 0
        %1865 = vmatpush1.bf16.msra.mxu0 0
        %1866 = vmatprep.subr.bf16.mxu0 0
        %1867 = vmatpush1.bf16.msra.mxu0 0
        %1868 = vmatprep.subr.bf16.mxu0 0
        %1869 = vmatpush1.bf16.msra.mxu0 0
        %1870 = vmatprep.subr.bf16.mxu0 0
        %1871 = vmatpush1.bf16.msra.mxu0 0
        %1872 = vmatprep.subr.bf16.mxu0 0
        %1873 = vmatpush1.bf16.msra.mxu0 0
        %1874 = vmatprep.subr.bf16.mxu0 0
        %1875 = vmatpush1.bf16.msra.mxu0 %v1862
        %1876 = vmatprep.subr.bf16.mxu0 0
        %1877 = vmatpush1.bf16.msra.mxu0 %v1823
        %1878 = vmatprep.subr.bf16.mxu0 0
        %1879 = vmatpush1.bf16.msra.mxu0 %v1822
        %1880 = vmatprep.subr.bf16.mxu0 0
        %1881 = vmatpush2.bf16.msra.mxu0 0
        %1882 = vmatprep.subr.bf16.mxu0 0
        %1883 = vmatpush2.bf16.msra.mxu0 0
        %1884 = vmatprep.subr.bf16.mxu0 0
        %1885 = vmatpush2.bf16.msra.mxu0 0
        %1886 = vmatprep.subr.bf16.mxu0 0
        %1887 = vmatpush2.bf16.msra.mxu0 0
        %1888 = vmatprep.subr.bf16.mxu0 0
        %1889 = vmatpush2.bf16.msra.mxu0 0
        %1890 = vmatprep.subr.bf16.mxu0 0
        %1891 = vmatpush2.bf16.msra.mxu0 0
        %1892 = vmatprep.subr.bf16.mxu0 0
        %1893 = vmatpush2.bf16.msra.mxu0 0
        %1894 = vmatprep.subr.bf16.mxu0 0
        %1895 = vmatpush2.bf16.msra.mxu0 0
        %1896 = vmatprep.mubr.bf16.mxu0 0
        %1897 = vmatmul.mubr.bf16.gmra.mxu0 %v1828
        %v1898 = vpop.f32.mrf.mxu0
        %v1899 = vadd.f32 %v1810, %v1898
        %v1900 = vpop.f32.mrf.mxu0
        %v1901 = vpop.f32.mrf.mxu0
        %v1902 = vadd.f32 %v1810, %v1901
        %v1903 = vpop.f32.mrf.mxu0
        %1904 = vmatprep.mubr.bf16.mxu0 0
        %1905 = vmatmul.mubr.bf16.gmra.mxu0 %v1830
        %v1906 = vpop.f32.mrf.mxu0
        %v1907 = vadd.f32 %v1810, %v1906
        %v1908 = vpop.f32.mrf.mxu0
        %v1909 = vpop.f32.mrf.mxu0
        %v1910 = vadd.f32 %v1810, %v1909
        %v1911 = vpop.f32.mrf.mxu0
        %1912 = vmatprep.mubr.bf16.mxu0 0
        %1913 = vmatmul.mubr.bf16.gmra.mxu0 %v1832
        %v1914 = vpop.f32.mrf.mxu0
        %v1915 = vadd.f32 %v1810, %v1914
        %v1916 = vpop.f32.mrf.mxu0
        %v1917 = vpop.f32.mrf.mxu0
        %v1918 = vadd.f32 %v1810, %v1917
        %v1919 = vpop.f32.mrf.mxu0
        %1920 = vmatprep.mubr.bf16.mxu0 0
        %1921 = vmatmul.mubr.bf16.gmra.mxu0 %v1834
        %v1922 = vpop.f32.mrf.mxu0
        %v1923 = vadd.f32 %v1810, %v1922
        %v1924 = vpop.f32.mrf.mxu0
        %v1925 = vpop.f32.mrf.mxu0
        %v1926 = vadd.f32 %v1810, %v1925
        %v1927 = vpop.f32.mrf.mxu0
        %1928 = vmatprep.mubr.bf16.mxu0 0
        %1929 = vmatmul.mubr.bf16.gmra.mxu0 %v1836
        %v1930 = vpop.f32.mrf.mxu0
        %v1931 = vadd.f32 %v1810, %v1930
        %v1932 = vpop.f32.mrf.mxu0
        %v1933 = vpop.f32.mrf.mxu0
        %v1934 = vadd.f32 %v1810, %v1933
        %v1935 = vpop.f32.mrf.mxu0
        %1936 = vmatprep.mubr.bf16.mxu0 0
        %1937 = vmatmul.mubr.bf16.gmra.mxu0 %v1838
        %v1938 = vpop.f32.mrf.mxu0
        %v1939 = vadd.f32 %v1810, %v1938
        %v1940 = vpop.f32.mrf.mxu0
        %v1941 = vpop.f32.mrf.mxu0
        %v1942 = vadd.f32 %v1810, %v1941
        %v1943 = vpop.f32.mrf.mxu0
        %1944 = vmatprep.mubr.bf16.mxu0 0
        %1945 = vmatmul.mubr.bf16.gmra.mxu0 %v1840
        %v1946 = vpop.f32.mrf.mxu0
        %v1947 = vadd.f32 %v1810, %v1946
        %v1948 = vpop.f32.mrf.mxu0
        %v1949 = vpop.f32.mrf.mxu0
        %v1950 = vadd.f32 %v1810, %v1949
        %v1951 = vpop.f32.mrf.mxu0
        %1952 = vmatprep.mubr.bf16.mxu0 0
        %1953 = vmatmul.mubr.bf16.gmra.mxu0 %v1842
        %v1954 = vpop.f32.mrf.mxu0
        %v1955 = vadd.f32 %v1810, %v1954
        %v1956 = vpop.f32.mrf.mxu0
        %v1957 = vpop.f32.mrf.mxu0
        %v1958 = vadd.f32 %v1810, %v1957
        %v1959 = vpop.f32.mrf.mxu0
        %1960 = vmatprep.mubr.bf16.mxu0 0
        %1961 = vmatmul.mubr.bf16.gmra.mxu0 %v1844
        %v1962 = vpop.f32.mrf.mxu0
        %v1963 = vadd.f32 %v1810, %v1962
        %v1964 = vpop.f32.mrf.mxu0
        %v1965 = vpop.f32.mrf.mxu0
        %v1966 = vadd.f32 %v1810, %v1965
        %v1967 = vpop.f32.mrf.mxu0
        %1968 = vmatprep.mubr.bf16.mxu0 0
        %1969 = vmatmul.mubr.bf16.gmra.mxu0 %v1846
        %v1970 = vpop.f32.mrf.mxu0
        %v1971 = vadd.f32 %v1810, %v1970
        %v1972 = vpop.f32.mrf.mxu0
        %v1973 = vpop.f32.mrf.mxu0
        %v1974 = vadd.f32 %v1810, %v1973
        %v1975 = vpop.f32.mrf.mxu0
        %1976 = vmatprep.mubr.bf16.mxu0 0
        %1977 = vmatmul.mubr.bf16.gmra.mxu0 %v1848
        %v1978 = vpop.f32.mrf.mxu0
        %v1979 = vadd.f32 %v1810, %v1978
        %v1980 = vpop.f32.mrf.mxu0
        %v1981 = vpop.f32.mrf.mxu0
        %v1982 = vadd.f32 %v1810, %v1981
        %v1983 = vpop.f32.mrf.mxu0
        %1984 = vmatprep.mubr.bf16.mxu0 0
        %1985 = vmatmul.mubr.bf16.gmra.mxu0 %v1850
        %v1986 = vpop.f32.mrf.mxu0
        %v1987 = vadd.f32 %v1810, %v1986
        %v1988 = vpop.f32.mrf.mxu0
        %v1989 = vpop.f32.mrf.mxu0
        %v1990 = vadd.f32 %v1810, %v1989
        %v1991 = vpop.f32.mrf.mxu0
        %1992 = vmatprep.mubr.bf16.mxu0 0
        %1993 = vmatmul.mubr.bf16.gmra.mxu0 %v1852
        %v1994 = vpop.f32.mrf.mxu0
        %v1995 = vadd.f32 %v1810, %v1994
        %v1996 = vpop.f32.mrf.mxu0
        %v1997 = vpop.f32.mrf.mxu0
        %v1998 = vadd.f32 %v1810, %v1997
        %v1999 = vpop.f32.mrf.mxu0
        %2000 = vmatprep.mubr.bf16.mxu0 0
        %2001 = vmatmul.mubr.bf16.gmra.mxu0 %v1854
        %v2002 = vpop.f32.mrf.mxu0
        %v2003 = vadd.f32 %v1810, %v2002
        %v2004 = vpop.f32.mrf.mxu0
        %v2005 = vpop.f32.mrf.mxu0
        %v2006 = vadd.f32 %v1810, %v2005
        %v2007 = vpop.f32.mrf.mxu0
        %2008 = vmatprep.mubr.bf16.mxu0 0
        %2009 = vmatmul.mubr.bf16.gmra.mxu0 %v1856
        %v2010 = vpop.f32.mrf.mxu0
        %v2011 = vadd.f32 %v1810, %v2010
        %v2012 = vpop.f32.mrf.mxu0
        %v2013 = vpop.f32.mrf.mxu0
        %v2014 = vadd.f32 %v1810, %v2013
        %v2015 = vpop.f32.mrf.mxu0
        %2016 = vmatprep.mubr.bf16.mxu0 0
        %2017 = vmatmul.mubr.bf16.gmra.mxu0 %v1858
        %v2018 = vpop.f32.mrf.mxu0
        %v2019 = vadd.f32 %v1810, %v2018
        %v2020 = vpop.f32.mrf.mxu0
        %v2021 = vpop.f32.mrf.mxu0
        %v2022 = vadd.f32 %v1810, %v2021
        %v2023 = vpop.f32.mrf.mxu0
        %2024 = vdwg.mxu0
        %v2025 = vmax.f32 %v1899, 0.0
        %v2026 = vmax.f32 %v1902, 0.0
        %v2027 = vmax.f32 %v1907, 0.0
        %v2028 = vmax.f32 %v1910, 0.0
        %v2029 = vmax.f32 %v1915, 0.0
        %v2030 = vmax.f32 %v1918, 0.0
        %v2031 = vmax.f32 %v1923, 0.0
        %v2032 = vmax.f32 %v1926, 0.0
        %v2033 = vmax.f32 %v1931, 0.0
        %v2034 = vmax.f32 %v1934, 0.0
        %v2035 = vmax.f32 %v1939, 0.0
        %v2036 = vmax.f32 %v1942, 0.0
        %v2037 = vmax.f32 %v1947, 0.0
        %v2038 = vmax.f32 %v1950, 0.0
        %v2039 = vmax.f32 %v1955, 0.0
        %v2040 = vmax.f32 %v1958, 0.0
        %v2041 = vmax.f32 %v1963, 0.0
        %v2042 = vmax.f32 %v1966, 0.0
        %v2043 = vmax.f32 %v1971, 0.0
        %v2044 = vmax.f32 %v1974, 0.0
        %v2045 = vmax.f32 %v1979, 0.0
        %v2046 = vmax.f32 %v1982, 0.0
        %v2047 = vmax.f32 %v1987, 0.0
        %v2048 = vmax.f32 %v1990, 0.0
        %v2049 = vmax.f32 %v1995, 0.0
        %v2050 = vmax.f32 %v1998, 0.0
        %v2051 = vmax.f32 %v2003, 0.0
        %v2052 = vmax.f32 %v2006, 0.0
        %v2053 = vmax.f32 %v2011, 0.0
        %v2054 = vmax.f32 %v2014, 0.0
        %v2055 = vmax.f32 %v2019, 0.0
        %v2056 = vmax.f32 %v2022, 0.0
        %v2057 = vpack.c.bf16 %v2026, %v2025
        %v2058 = vpack.c.bf16 %v2028, %v2027
        %v2059 = vpack.c.bf16 %v2030, %v2029
        %v2060 = vpack.c.bf16 %v2032, %v2031
        %v2061 = vpack.c.bf16 %v2034, %v2033
        %v2062 = vpack.c.bf16 %v2036, %v2035
        %v2063 = vpack.c.bf16 %v2038, %v2037
        %v2064 = vpack.c.bf16 %v2040, %v2039
        %v2065 = vpack.c.bf16 %v2042, %v2041
        %v2066 = vpack.c.bf16 %v2044, %v2043
        %v2067 = vpack.c.bf16 %v2046, %v2045
        %v2068 = vpack.c.bf16 %v2048, %v2047
        %v2069 = vpack.c.bf16 %v2050, %v2049
        %v2070 = vpack.c.bf16 %v2052, %v2051
        %v2071 = vpack.c.bf16 %v2054, %v2053
        %v2072 = vpack.c.bf16 %v2056, %v2055
        %v2089 = vunpack.c.l.b16 %v2057
        %v2090 = vunpack.c.h.b16 %v2057
        %v2091 = vunpack.c.l.b16 %v2058
        %v2092 = vunpack.c.h.b16 %v2058
        %v2093 = vunpack.c.l.b16 %v2059
        %v2094 = vunpack.c.h.b16 %v2059
        %v2095 = vunpack.c.l.b16 %v2060
        %v2096 = vunpack.c.h.b16 %v2060
        %v2097 = vunpack.c.l.b16 %v2061
        %v2098 = vunpack.c.h.b16 %v2061
        %v2099 = vunpack.c.l.b16 %v2062
        %v2100 = vunpack.c.h.b16 %v2062
        %v2101 = vunpack.c.l.b16 %v2063
        %v2102 = vunpack.c.h.b16 %v2063
        %v2103 = vunpack.c.l.b16 %v2064
        %v2104 = vunpack.c.h.b16 %v2064
        %v2105 = vunpack.c.l.b16 %v2065
        %v2106 = vunpack.c.h.b16 %v2065
        %v2107 = vunpack.c.l.b16 %v2066
        %v2108 = vunpack.c.h.b16 %v2066
        %v2109 = vunpack.c.l.b16 %v2067
        %v2110 = vunpack.c.h.b16 %v2067
        %v2111 = vunpack.c.l.b16 %v2068
        %v2112 = vunpack.c.h.b16 %v2068
        %v2113 = vunpack.c.l.b16 %v2069
        %v2114 = vunpack.c.h.b16 %v2069
        %v2115 = vunpack.c.l.b16 %v2070
        %v2116 = vunpack.c.h.b16 %v2070
        %v2117 = vunpack.c.l.b16 %v2071
        %v2118 = vunpack.c.h.b16 %v2071
        %v2119 = vunpack.c.l.b16 %v2072
        %v2120 = vunpack.c.h.b16 %v2072
        %v2121 = vpack.c.b16 %v2089, %v2089
        %v2122 = vpack.c.b16 %v2090, %v2090
        %v2123 = vpack.c.b16 %v2091, %v2091
        %v2124 = vpack.c.b16 %v2092, %v2092
        %v2125 = vpack.c.b16 %v2093, %v2093
        %v2126 = vpack.c.b16 %v2094, %v2094
        %v2127 = vpack.c.b16 %v2095, %v2095
        %v2128 = vpack.c.b16 %v2096, %v2096
        %v2129 = vpack.c.b16 %v2097, %v2097
        %v2130 = vpack.c.b16 %v2098, %v2098
        %v2131 = vpack.c.b16 %v2099, %v2099
        %v2132 = vpack.c.b16 %v2100, %v2100
        %v2133 = vpack.c.b16 %v2101, %v2101
        %v2134 = vpack.c.b16 %v2102, %v2102
        %v2135 = vpack.c.b16 %v2103, %v2103
        %v2136 = vpack.c.b16 %v2104, %v2104
        %v2137 = vpack.c.b16 %v2105, %v2105
        %v2138 = vpack.c.b16 %v2106, %v2106
        %v2139 = vpack.c.b16 %v2107, %v2107
        %v2140 = vpack.c.b16 %v2108, %v2108
        %v2141 = vpack.c.b16 %v2109, %v2109
        %v2142 = vpack.c.b16 %v2110, %v2110
        %v2143 = vpack.c.b16 %v2111, %v2111
        %v2144 = vpack.c.b16 %v2112, %v2112
        %v2145 = vpack.c.b16 %v2113, %v2113
        %v2146 = vpack.c.b16 %v2114, %v2114
        %v2147 = vpack.c.b16 %v2115, %v2115
        %v2148 = vpack.c.b16 %v2116, %v2116
        %v2149 = vpack.c.b16 %v2117, %v2117
        %v2150 = vpack.c.b16 %v2118, %v2118
        %v2151 = vpack.c.b16 %v2119, %v2119
        %v2152 = vpack.c.b16 %v2120, %v2120
        %2185 = vst [vmem:[%s183] sm:$0xf] %v2121
        %2186 = vst [vmem:[%s183 + $0x4] sm:$0xf] %v2122
        %2187 = vst [vmem:[%s183 + $0x8] sm:$0xf] %v2123
        %2188 = vst [vmem:[%s183 + $0xc] sm:$0xf] %v2124
        %2189 = vst [vmem:[%s183 + $0x10] sm:$0xf] %v2125
        %2190 = vst [vmem:[%s183 + $0x14] sm:$0xf] %v2126
        %2191 = vst [vmem:[%s183 + $0x18] sm:$0xf] %v2127
        %2192 = vst [vmem:[%s183 + $0x1c] sm:$0xf] %v2128
        %2193 = vst [vmem:[%s183 + $0x20] sm:$0xf] %v2129
        %2194 = vst [vmem:[%s183 + $0x24] sm:$0xf] %v2130
        %2195 = vst [vmem:[%s183 + $0x28] sm:$0xf] %v2131
        %2196 = vst [vmem:[%s183 + $0x2c] sm:$0xf] %v2132
        %2197 = vst [vmem:[%s183 + $0x30] sm:$0xf] %v2133
        %2198 = vst [vmem:[%s183 + $0x34] sm:$0xf] %v2134
        %2199 = vst [vmem:[%s183 + $0x38] sm:$0xf] %v2135
        %2200 = vst [vmem:[%s183 + $0x3c] sm:$0xf] %v2136
        %2201 = vst [vmem:[%s183 + $0x40] sm:$0xf] %v2137
        %2202 = vst [vmem:[%s183 + $0x44] sm:$0xf] %v2138
        %2203 = vst [vmem:[%s183 + $0x48] sm:$0xf] %v2139
        %2204 = vst [vmem:[%s183 + $0x4c] sm:$0xf] %v2140
        %2205 = vst [vmem:[%s183 + $0x50] sm:$0xf] %v2141
        %2206 = vst [vmem:[%s183 + $0x54] sm:$0xf] %v2142
        %2207 = vst [vmem:[%s183 + $0x58] sm:$0xf] %v2143
        %2208 = vst [vmem:[%s183 + $0x5c] sm:$0xf] %v2144
        %2209 = vst [vmem:[%s183 + $0x60] sm:$0xf] %v2145
        %2210 = vst [vmem:[%s183 + $0x64] sm:$0xf] %v2146
        %2211 = vst [vmem:[%s183 + $0x68] sm:$0xf] %v2147
        %2212 = vst [vmem:[%s183 + $0x6c] sm:$0xf] %v2148
        %2213 = vst [vmem:[%s183 + $0x70] sm:$0xf] %v2149
        %2214 = vst [vmem:[%s183 + $0x74] sm:$0xf] %v2150
        %2215 = vst [vmem:[%s183 + $0x78] sm:$0xf] %v2151
        %2216 = vst [vmem:[%s183 + $0x7c] sm:$0xf] %v2152
        %s2217 = smul.u32 32, %s15
        %p2218 = scmp.lt.s32.totalorder %s2217, 63
        %s2219 = scalar_select %p2218, %s2217, 63
        %s2220 = smul.addr %s2219, 4
        %s2221 = scalar_lea.vmem %s3, %s2220
        // Predicated region
        $region37: #{double_conv_forward.2} parent=31 // pred_check
          %p2222 = pneg %p101
        $region38: #{double_conv_forward.2} parent=31 // pred_check_branch
          %2224 = sbr.rel (%p2222) target = $region40
        $region39: #{double_conv_forward.2} parent=31 // pred_region
          %s2225 = smul.u32 32, %s15
        $region40: #{double_conv_forward.2} parent=31 // pred_fallthru
          _
      $region32: #{double_conv_forward.2} parent=5 // pred_fallthru
        _
      %p2226 = scmp.le.s32.totalorder 2, %s10
      // Predicated region
      $region41: #{double_conv_forward.2} parent=5 // pred_check
        %p2227 = pneg %p2226
      $region42: #{double_conv_forward.2} parent=5 // pred_check_branch
        %2229 = sbr.rel (%p2227) target = $region44
      $region43: #{double_conv_forward.2} parent=5 // pred_region
        %s2230 = ssub.s32 %s10, 2
        // Predicated region
        $region45: #{double_conv_forward.2} parent=43 // pred_check
          %p2231 = pneg %p107
        $region46: #{double_conv_forward.2} parent=43 // pred_check_branch
          %2233 = sbr.rel (%p2231) target = $region48
        $region47: #{double_conv_forward.2} parent=43 // pred_region
          %s2234 = smul.u32 32, %s16
          %p2235 = scmp.lt.s32.totalorder %s2234, 63
          %s2236 = scalar_select %p2235, %s2234, 63
          %s2237 = smul.addr %s2236, 4
          %s2238 = scalar_lea.vmem %s3, %s2237
        $region48: #{double_conv_forward.2} parent=43 // pred_fallthru
          _
      $region44: #{double_conv_forward.2} parent=5 // pred_fallthru
        _
    $region6: #{double_conv_forward.2} parent=1 // loop_footer
      %s14 = sadd.s32 1, %s10
    $region7: #{double_conv_forward.2} parent=1 // loop_footer_branch
      %9 = sbr.rel target = $region3
    $region8: #{double_conv_forward.2} parent=1 // loop_exit
      _
    %2239 = vsyncpa [#allocation4], 1
    %s2240 = scalar_lea.sflag [#allocation4], 1
    %2241 = vsyncpa %s2240, 1

// kernel: double_conv_forward.3
$region0: #{double_conv_forward.3}
  #allocation0 [shape = 'u32[]', space=smem, size = 0x4, offset = 0x4, fixed_abs, tag = 'smem constant byte address 0x4 - core index']
  #allocation1 [shape = 'u32[144,128]{1,0:T(1,128)}', space=vmem, size = 0x12000, scoped, tag = 'internal scratch']
  #allocation2 [shape = 'bf16[1,18,24,128]{3,2,1,0:T(8,128)(2,1)}', space=vmem, size = 0x1b000, scoped, tag = 'scratch operand']
  %s0 = inlined_call_operand.vmem [shape: bf16[2,16,16,128], index: 0, kind: input, shape index: {}]
  %s1 = inlined_call_operand.vmem [shape: bf16[1152,128], index: 1, kind: input, shape index: {}]
  %s2 = inlined_call_operand.vmem [shape: f32[1,128], index: 2, kind: input, shape index: {}]
  %s3 = inlined_call_operand.hbm [shape: f32[512,128], index: 3, kind: output, shape index: {}]
  %s4 = sld [smem:[#allocation0]]
  $region45: #{double_conv_forward.3} parent=0
    _
  %s6 = ssub.s32 1, %s4
  %s7 = scalar_select 0, %s6, %s4
  $region1: #{double_conv_forward.3} parent=0
    #allocation3 [shape = 'u8[262144]{0}', space=vmem, size = 0x40000, scoped, tag = 'output window, operand 0']
    #allocation4 [shape = 's32[2]{0}', space=sflag, size = 0x8, scoped, tag = 'scoped memory for double_conv_forward.3']
    %8 = vsyncpa [#allocation4], 0
    %s9 = scalar_lea.sflag [#allocation4], 1
    %10 = vsyncpa %s9, 0
    loop: start=0, step=1, limit=4
    $region2: #{double_conv_forward.3} parent=1 // loop_pre_header
      _
    $region3: #{double_conv_forward.3} parent=1 // loop_header
      %s12 = sphi 0, %s16
      %p13 = scmp.ge.s32.totalorder %s12, 4
      %s22 = sphi 0, %s24
      %s25 = sphi 0, %s22
      %s26 = sphi 0, %s25
      %s42 = sphi 0, %s26
      %s46 = sphi 0, %s46
      %s48 = sphi 0, %s46
      %s49 = sphi 0, %s48
      %s63 = sphi 0, %s49
      %s67 = sphi 0, %s67
      %s69 = sphi 0, %s67
      %s70 = sphi 0, %s69
      %s84 = sphi 0, %s70
      %s90 = sphi 0, %s92
      %s93 = sphi 0, %s90
      %s94 = sphi 0, %s93
      %s110 = sphi 0, %s94
    $region4: #{double_conv_forward.3} parent=1 // loop_header_branch
      %15 = sbr.rel (%p13) target = $region8
    $region5: #{double_conv_forward.3} parent=1 // loop_body
      %s17 = ssub.s32 %s12, 1
      %s18 = ssub.s32 %s12, 2
      %s19 = sadd.s32 %s12, 1
      %s20 = ssub.s32 %s12, %s19
      %p21 = scmp.eq.s32.totalorder %s20, 0
      %s23 = sadd.s32 %s22, 1
      %s24 = scalar_select %p21, %s22, %s23
      %p27 = pneg %p21
      %p28 = scmp.eq.s32.totalorder %s12, 1
      %p29 = por %p27, %p28
      %p30 = scmp.ne.s32.totalorder %s22, %s25
      %p31 = scmp.eq.s32.totalorder %s12, 0
      %p32 = por %p30, %p31
      %p33 = scmp.ne.s32.totalorder %s22, %s25
      %p34 = scmp.eq.s32.totalorder %s17, 1
      %p35 = por %p33, %p34
      %p36 = scmp.ne.s32.totalorder %s25, %s26
      %p37 = scmp.eq.s32.totalorder %s17, 0
      %p38 = por %p36, %p37
      %p39 = scmp.ne.s32.totalorder %s25, %s26
      %p40 = scmp.eq.s32.totalorder %s18, 1
      %p41 = por %p39, %p40
      %p43 = scmp.ne.s32.totalorder %s26, %s42
      %p44 = scmp.eq.s32.totalorder %s18, 0
      %p45 = por %p43, %p44
      %s47 = sadd.s32 %s46, 1
      %p50 = scmp.eq.s32.totalorder %s12, 1
      %p51 = scmp.ne.s32.totalorder %s46, %s48
      %p52 = scmp.eq.s32.totalorder %s12, 0
      %p53 = por %p51, %p52
      %p54 = scmp.ne.s32.totalorder %s46, %s48
      %p55 = scmp.eq.s32.totalorder %s17, 1
      %p56 = por %p54, %p55
      %p57 = scmp.ne.s32.totalorder %s48, %s49
      %p58 = scmp.eq.s32.totalorder %s17, 0
      %p59 = por %p57, %p58
      %p60 = scmp.ne.s32.totalorder %s48, %s49
      %p61 = scmp.eq.s32.totalorder %s18, 1
      %p62 = por %p60, %p61
      %p64 = scmp.ne.s32.totalorder %s49, %s63
      %p65 = scmp.eq.s32.totalorder %s18, 0
      %p66 = por %p64, %p65
      %s68 = sadd.s32 %s67, 1
      %p71 = scmp.eq.s32.totalorder %s12, 1
      %p72 = scmp.ne.s32.totalorder %s67, %s69
      %p73 = scmp.eq.s32.totalorder %s12, 0
      %p74 = por %p72, %p73
      %p75 = scmp.ne.s32.totalorder %s67, %s69
      %p76 = scmp.eq.s32.totalorder %s17, 1
      %p77 = por %p75, %p76
      %p78 = scmp.ne.s32.totalorder %s69, %s70
      %p79 = scmp.eq.s32.totalorder %s17, 0
      %p80 = por %p78, %p79
      %p81 = scmp.ne.s32.totalorder %s69, %s70
      %p82 = scmp.eq.s32.totalorder %s18, 1
      %p83 = por %p81, %p82
      %p85 = scmp.ne.s32.totalorder %s70, %s84
      %p86 = scmp.eq.s32.totalorder %s18, 0
      %p87 = por %p85, %p86
      %s88 = ssub.s32 %s12, %s19
      %p89 = scmp.eq.s32.totalorder %s88, 0
      %s91 = sadd.s32 %s90, 1
      %s92 = scalar_select %p89, %s90, %s91
      %p95 = pneg %p89
      %p96 = scmp.eq.s32.totalorder %s12, 1
      %p97 = por %p95, %p96
      %p98 = scmp.ne.s32.totalorder %s90, %s93
      %p99 = scmp.eq.s32.totalorder %s12, 0
      %p100 = por %p98, %p99
      %p101 = scmp.ne.s32.totalorder %s90, %s93
      %p102 = scmp.eq.s32.totalorder %s17, 1
      %p103 = por %p101, %p102
      %p104 = scmp.ne.s32.totalorder %s93, %s94
      %p105 = scmp.eq.s32.totalorder %s17, 0
      %p106 = por %p104, %p105
      %p107 = scmp.ne.s32.totalorder %s93, %s94
      %p108 = scmp.eq.s32.totalorder %s18, 1
      %p109 = por %p107, %p108
      %p111 = scmp.ne.s32.totalorder %s94, %s110
      %p112 = scmp.eq.s32.totalorder %s18, 0
      %p113 = por %p111, %p112
      %p114 = scmp.le.s32.totalorder 1, %s12
      %p115 = scmp.lt.s32.totalorder %s12, 3
      %p116 = pnand %p114, %p115
      %p117 = pneg %p116
      // Predicated region
      $region9: #{double_conv_forward.3} parent=5 // pred_check
        _
      $region10: #{double_conv_forward.3} parent=5 // pred_check_branch
        %119 = sbr.rel (%p116) target = $region12
      $region11: #{double_conv_forward.3} parent=5 // pred_region
        %s120 = ssub.s32 %s12, 1
        // Predicated region
        $region13: #{double_conv_forward.3} parent=11 // pred_check
          %p121 = pneg %p59
        $region14: #{double_conv_forward.3} parent=11 // pred_check_branch
          %123 = sbr.rel (%p121) target = $region16
        $region15: #{double_conv_forward.3} parent=11 // pred_region
          _
        $region16: #{double_conv_forward.3} parent=11 // pred_fallthru
          _
        // Predicated region
        $region17: #{double_conv_forward.3} parent=11 // pred_check
          %p124 = pneg %p80
        $region18: #{double_conv_forward.3} parent=11 // pred_check_branch
          %126 = sbr.rel (%p124) target = $region20
        $region19: #{double_conv_forward.3} parent=11 // pred_region
          _
        $region20: #{double_conv_forward.3} parent=11 // pred_fallthru
          _
      $region12: #{double_conv_forward.3} parent=5 // pred_fallthru
        _
      %p127 = scmp.lt.s32.totalorder %s12, 2
      // Predicated region
      $region21: #{double_conv_forward.3} parent=5 // pred_check
        %p128 = pneg %p127
      $region22: #{double_conv_forward.3} parent=5 // pred_check_branch
        %130 = sbr.rel (%p128) target = $region24
      $region23: #{double_conv_forward.3} parent=5 // pred_region
        // Predicated region
        $region25: #{double_conv_forward.3} parent=23 // pred_check
          %p131 = pneg %p32
        $region26: #{double_conv_forward.3} parent=23 // pred_check_branch
          %133 = sbr.rel (%p131) target = $region28
        $region27: #{double_conv_forward.3} parent=23 // pred_region
          %p134 = scmp.lt.s32.totalorder %s12, 1
          %s135 = scalar_select %p134, %s12, 1
          %s136 = smul.addr %s135, 32
          %s137 = smul.addr %s136, 4
          %s138 = scalar_lea.vmem %s0, %s137
        $region28: #{double_conv_forward.3} parent=23 // pred_fallthru
          _
      $region24: #{double_conv_forward.3} parent=5 // pred_fallthru
        _
      %p139 = scmp.le.s32.totalorder 1, %s12
      %p140 = scmp.lt.s32.totalorder %s12, 3
      %p141 = pnand %p139, %p140
      %p142 = pneg %p141
      // Predicated region
      $region29: #{double_conv_forward.3} parent=5 // pred_check
        _
      $region30: #{double_conv_forward.3} parent=5 // pred_check_branch
        %144 = sbr.rel (%p141) target = $region32
      $region31: #{double_conv_forward.3} parent=5 // pred_region
        %s145 = ssub.s32 %s12, 1
        %p146 = scmp.lt.s32.totalorder %s17, 1
        %s147 = scalar_select %p146, %s17, 1
        %s148 = smul.addr %s147, 32
        %s149 = smul.addr %s148, 4
        %s150 = scalar_lea.vmem %s0, %s149
        %p151 = pneg %p38
        %p152 = pneg %p35
        %p153 = pneg %p59
        %p154 = pneg %p56
        %p155 = pneg %p80
        %p156 = pneg %p77
        %p157 = pneg %p106
        %p158 = pneg %p103
        %s159 = sand.u32 %s93, 1
        %s160 = scalar_lea.sflag [#allocation4], %s159
        %s161 = sand.u32 %s93, 1
        %s162 = smul.addr %s161, 256
        %s163 = scalar_lea.vmem [#allocation3], %s162
        %p164 = scmp.lt.s32.totalorder %s17, 1
        %s165 = scalar_select %p164, %s17, 1
        %s166 = smul.addr %s165, 32
        %s167 = smul.addr %s166, 4
        %s168 = scalar_lea.vmem %s0, %s167
        %s169 = smul.u32 32, %s17
        %171 = vst [vmem:[#allocation2] sm:$0xf] 0
        %172 = vst [vmem:[#allocation2 + $0x4] sm:$0xf] 0
        %173 = vst [vmem:[#allocation2 + $0x8] sm:$0xf] 0
        %174 = vst [vmem:[#allocation2 + $0xc] sm:$0xf] 0
        %175 = vst [vmem:[#allocation2 + $0x10] sm:$0xf] 0
        %176 = vst [vmem:[#allocation2 + $0x14] sm:$0xf] 0
        %177 = vst [vmem:[#allocation2 + $0x18] sm:$0xf] 0
        %178 = vst [vmem:[#allocation2 + $0x1c] sm:$0xf] 0
        %179 = vst [vmem:[#allocation2 + $0x20] sm:$0xf] 0
        %180 = vst [vmem:[#allocation2 + $0x24] sm:$0xf] 0
        %181 = vst [vmem:[#allocation2 + $0x28] sm:$0xf] 0
        %182 = vst [vmem:[#allocation2 + $0x2c] sm:$0xf] 0
        %183 = vst [vmem:[#allocation2 + $0x30] sm:$0xf] 0
        %184 = vst [vmem:[#allocation2 + $0x34] sm:$0xf] 0
        %185 = vst [vmem:[#allocation2 + $0x38] sm:$0xf] 0
        %186 = vst [vmem:[#allocation2 + $0x3c] sm:$0xf] 0
        %187 = vst [vmem:[#allocation2 + $0x40] sm:$0xf] 0
        %188 = vst [vmem:[#allocation2 + $0x44] sm:$0xf] 0
        %189 = vst [vmem:[#allocation2 + $0x48] sm:$0xf] 0
        %190 = vst [vmem:[#allocation2 + $0x4c] sm:$0xf] 0
        %191 = vst [vmem:[#allocation2 + $0x50] sm:$0xf] 0
        %192 = vst [vmem:[#allocation2 + $0x54] sm:$0xf] 0
        %193 = vst [vmem:[#allocation2 + $0x58] sm:$0xf] 0
        %194 = vst [vmem:[#allocation2 + $0x5c] sm:$0xf] 0
        %195 = vst [vmem:[#allocation2 + $0x60] sm:$0xf] 0
        %196 = vst [vmem:[#allocation2 + $0x64] sm:$0xf] 0
        %197 = vst [vmem:[#allocation2 + $0x68] sm:$0xf] 0
        %198 = vst [vmem:[#allocation2 + $0x6c] sm:$0xf] 0
        %199 = vst [vmem:[#allocation2 + $0x70] sm:$0xf] 0
        %200 = vst [vmem:[#allocation2 + $0x74] sm:$0xf] 0
        %201 = vst [vmem:[#allocation2 + $0x78] sm:$0xf] 0
        %202 = vst [vmem:[#allocation2 + $0x7c] sm:$0xf] 0
        %203 = vst [vmem:[#allocation2 + $0x80] sm:$0xf] 0
        %204 = vst [vmem:[#allocation2 + $0x84] sm:$0xf] 0
        %205 = vst [vmem:[#allocation2 + $0x88] sm:$0xf] 0
        %206 = vst [vmem:[#allocation2 + $0x8c] sm:$0xf] 0
        %207 = vst [vmem:[#allocation2 + $0x90] sm:$0xf] 0
        %208 = vst [vmem:[#allocation2 + $0x94] sm:$0xf] 0
        %209 = vst [vmem:[#allocation2 + $0x98] sm:$0xf] 0
        %210 = vst [vmem:[#allocation2 + $0x9c] sm:$0xf] 0
        %211 = vst [vmem:[#allocation2 + $0xa0] sm:$0xf] 0
        %212 = vst [vmem:[#allocation2 + $0xa4] sm:$0xf] 0
        %213 = vst [vmem:[#allocation2 + $0xa8] sm:$0xf] 0
        %214 = vst [vmem:[#allocation2 + $0xac] sm:$0xf] 0
        %215 = vst [vmem:[#allocation2 + $0xb0] sm:$0xf] 0
        %216 = vst [vmem:[#allocation2 + $0xb4] sm:$0xf] 0
        %217 = vst [vmem:[#allocation2 + $0xb8] sm:$0xf] 0
        %218 = vst [vmem:[#allocation2 + $0xbc] sm:$0xf] 0
        %219 = vst [vmem:[#allocation2 + $0xc0] sm:$0xf] 0
        %220 = vst [vmem:[#allocation2 + $0xc4] sm:$0xf] 0
        %221 = vst [vmem:[#allocation2 + $0xc8] sm:$0xf] 0
        %222 = vst [vmem:[#allocation2 + $0xcc] sm:$0xf] 0
        %223 = vst [vmem:[#allocation2 + $0xd0] sm:$0xf] 0
        %224 = vst [vmem:[#allocation2 + $0xd4] sm:$0xf] 0
        %v225 = vld [vmem:[%s168] sm:$0xf]
        %v226 = vld [vmem:[%s168 + $0x4] sm:$0xf]
        %v227 = vld [vmem:[%s168 + $0x8] sm:$0xf]
        %v228 = vld [vmem:[%s168 + $0xc] sm:$0xf]
        %v229 = vld [vmem:[%s168 + $0x10] sm:$0xf]
        %v230 = vld [vmem:[%s168 + $0x14] sm:$0xf]
        %v231 = vld [vmem:[%s168 + $0x18] sm:$0xf]
        %v232 = vld [vmem:[%s168 + $0x1c] sm:$0xf]
        %v233 = vld [vmem:[%s168 + $0x20] sm:$0xf]
        %v234 = vld [vmem:[%s168 + $0x24] sm:$0xf]
        %v235 = vld [vmem:[%s168 + $0x28] sm:$0xf]
        %v236 = vld [vmem:[%s168 + $0x2c] sm:$0xf]
        %v237 = vld [vmem:[%s168 + $0x30] sm:$0xf]
        %v238 = vld [vmem:[%s168 + $0x34] sm:$0xf]
        %v239 = vld [vmem:[%s168 + $0x38] sm:$0xf]
        %v240 = vld [vmem:[%s168 + $0x3c] sm:$0xf]
        %v241 = vld [vmem:[%s168 + $0x40] sm:$0xf]
        %v242 = vld [vmem:[%s168 + $0x44] sm:$0xf]
        %v243 = vld [vmem:[%s168 + $0x48] sm:$0xf]
        %v244 = vld [vmem:[%s168 + $0x4c] sm:$0xf]
        %v245 = vld [vmem:[%s168 + $0x50] sm:$0xf]
        %v246 = vld [vmem:[%s168 + $0x54] sm:$0xf]
        %v247 = vld [vmem:[%s168 + $0x58] sm:$0xf]
        %v248 = vld [vmem:[%s168 + $0x5c] sm:$0xf]
        %v249 = vld [vmem:[%s168 + $0x60] sm:$0xf]
        %v250 = vld [vmem:[%s168 + $0x64] sm:$0xf]
        %v251 = vld [vmem:[%s168 + $0x68] sm:$0xf]
        %v252 = vld [vmem:[%s168 + $0x6c] sm:$0xf]
        %v253 = vld [vmem:[%s168 + $0x70] sm:$0xf]
        %v254 = vld [vmem:[%s168 + $0x74] sm:$0xf]
        %v255 = vld [vmem:[%s168 + $0x78] sm:$0xf]
        %v256 = vld [vmem:[%s168 + $0x7c] sm:$0xf]
        %vm257 = vsmask.f32 256
        %vm258 = vsmask.f32 4368
        %vm259 = vmor %vm257, %vm258
        %v261 = vshrl.u32 %v225, 16
        %v263 = vrot.slane %v261, 7
        %v264 = vshll.u32 %v225, 16
        %v266 = vor.u32 %v263, %v264
        %v267 = vrot.slane %v263, 4
        %v269 = vshrl.u32 %v226, 16
        %v271 = vrot.slane %v269, 7
        %v272 = vshll.u32 %v226, 16
        %v274 = vor.u32 %v271, %v272
        %v275 = vsel %vm259, %v267, %v274
        %v276 = vrot.slane %v271, 4
        %v278 = vshrl.u32 %v227, 16
        %v280 = vrot.slane %v278, 7
        %v281 = vshll.u32 %v227, 16
        %v283 = vor.u32 %v280, %v281
        %v284 = vrot.slane %v280, 4
        %v286 = vshrl.u32 %v228, 16
        %v288 = vrot.slane %v286, 7
        %v289 = vshll.u32 %v228, 16
        %v291 = vor.u32 %v288, %v289
        %v292 = vsel %vm259, %v284, %v291
        %v293 = vrot.slane %v288, 4
        %v295 = vshrl.u32 %v229, 16
        %v297 = vrot.slane %v295, 7
        %v298 = vshll.u32 %v229, 16
        %v300 = vor.u32 %v297, %v298
        %v301 = vrot.slane %v297, 4
        %v303 = vshrl.u32 %v230, 16
        %v305 = vrot.slane %v303, 7
        %v306 = vshll.u32 %v230, 16
        %v308 = vor.u32 %v305, %v306
        %v309 = vsel %vm259, %v301, %v308
        %v310 = vrot.slane %v305, 4
        %v312 = vshrl.u32 %v231, 16
        %v314 = vrot.slane %v312, 7
        %v315 = vshll.u32 %v231, 16
        %v317 = vor.u32 %v314, %v315
        %v318 = vrot.slane %v314, 4
        %v320 = vshrl.u32 %v232, 16
        %v322 = vrot.slane %v320, 7
        %v323 = vshll.u32 %v232, 16
        %v325 = vor.u32 %v322, %v323
        %v326 = vsel %vm259, %v318, %v325
        %v327 = vrot.slane %v322, 4
        %v329 = vshrl.u32 %v233, 16
        %v331 = vrot.slane %v329, 7
        %v332 = vshll.u32 %v233, 16
        %v334 = vor.u32 %v331, %v332
        %v335 = vrot.slane %v331, 4
        %v337 = vshrl.u32 %v234, 16
        %v339 = vrot.slane %v337, 7
        %v340 = vshll.u32 %v234, 16
        %v342 = vor.u32 %v339, %v340
        %v343 = vsel %vm259, %v335, %v342
        %v344 = vrot.slane %v339, 4
        %v346 = vshrl.u32 %v235, 16
        %v348 = vrot.slane %v346, 7
        %v349 = vshll.u32 %v235, 16
        %v351 = vor.u32 %v348, %v349
        %v352 = vrot.slane %v348, 4
        %v354 = vshrl.u32 %v236, 16
        %v356 = vrot.slane %v354, 7
        %v357 = vshll.u32 %v236, 16
        %v359 = vor.u32 %v356, %v357
        %v360 = vsel %vm259, %v352, %v359
        %v361 = vrot.slane %v356, 4
        %v363 = vshrl.u32 %v237, 16
        %v365 = vrot.slane %v363, 7
        %v366 = vshll.u32 %v237, 16
        %v368 = vor.u32 %v365, %v366
        %v369 = vrot.slane %v365, 4
        %v371 = vshrl.u32 %v238, 16
        %v373 = vrot.slane %v371, 7
        %v374 = vshll.u32 %v238, 16
        %v376 = vor.u32 %v373, %v374
        %v377 = vsel %vm259, %v369, %v376
        %v378 = vrot.slane %v373, 4
        %v380 = vshrl.u32 %v239, 16
        %v382 = vrot.slane %v380, 7
        %v383 = vshll.u32 %v239, 16
        %v385 = vor.u32 %v382, %v383
        %v386 = vrot.slane %v382, 4
        %v388 = vshrl.u32 %v240, 16
        %v390 = vrot.slane %v388, 7
        %v391 = vshll.u32 %v240, 16
        %v393 = vor.u32 %v390, %v391
        %v394 = vsel %vm259, %v386, %v393
        %v395 = vrot.slane %v390, 4
        %v397 = vshrl.u32 %v241, 16
        %v399 = vrot.slane %v397, 7
        %v400 = vshll.u32 %v241, 16
        %v402 = vor.u32 %v399, %v400
        %v403 = vrot.slane %v399, 4
        %v405 = vshrl.u32 %v242, 16
        %v407 = vrot.slane %v405, 7
        %v408 = vshll.u32 %v242, 16
        %v410 = vor.u32 %v407, %v408
        %v411 = vsel %vm259, %v403, %v410
        %v412 = vrot.slane %v407, 4
        %v414 = vshrl.u32 %v243, 16
        %v416 = vrot.slane %v414, 7
        %v417 = vshll.u32 %v243, 16
        %v419 = vor.u32 %v416, %v417
        %v420 = vrot.slane %v416, 4
        %v422 = vshrl.u32 %v244, 16
        %v424 = vrot.slane %v422, 7
        %v425 = vshll.u32 %v244, 16
        %v427 = vor.u32 %v424, %v425
        %v428 = vsel %vm259, %v420, %v427
        %v429 = vrot.slane %v424, 4
        %v431 = vshrl.u32 %v245, 16
        %v433 = vrot.slane %v431, 7
        %v434 = vshll.u32 %v245, 16
        %v436 = vor.u32 %v433, %v434
        %v437 = vrot.slane %v433, 4
        %v439 = vshrl.u32 %v246, 16
        %v441 = vrot.slane %v439, 7
        %v442 = vshll.u32 %v246, 16
        %v444 = vor.u32 %v441, %v442
        %v445 = vsel %vm259, %v437, %v444
        %v446 = vrot.slane %v441, 4
        %v448 = vshrl.u32 %v247, 16
        %v450 = vrot.slane %v448, 7
        %v451 = vshll.u32 %v247, 16
        %v453 = vor.u32 %v450, %v451
        %v454 = vrot.slane %v450, 4
        %v456 = vshrl.u32 %v248, 16
        %v458 = vrot.slane %v456, 7
        %v459 = vshll.u32 %v248, 16
        %v461 = vor.u32 %v458, %v459
        %v462 = vsel %vm259, %v454, %v461
        %v463 = vrot.slane %v458, 4
        %v465 = vshrl.u32 %v249, 16
        %v467 = vrot.slane %v465, 7
        %v468 = vshll.u32 %v249, 16
        %v470 = vor.u32 %v467, %v468
        %v471 = vrot.slane %v467, 4
        %v473 = vshrl.u32 %v250, 16
        %v475 = vrot.slane %v473, 7
        %v476 = vshll.u32 %v250, 16
        %v478 = vor.u32 %v475, %v476
        %v479 = vsel %vm259, %v471, %v478
        %v480 = vrot.slane %v475, 4
        %v482 = vshrl.u32 %v251, 16
        %v484 = vrot.slane %v482, 7
        %v485 = vshll.u32 %v251, 16
        %v487 = vor.u32 %v484, %v485
        %v488 = vrot.slane %v484, 4
        %v490 = vshrl.u32 %v252, 16
        %v492 = vrot.slane %v490, 7
        %v493 = vshll.u32 %v252, 16
        %v495 = vor.u32 %v492, %v493
        %v496 = vsel %vm259, %v488, %v495
        %v497 = vrot.slane %v492, 4
        %v499 = vshrl.u32 %v253, 16
        %v501 = vrot.slane %v499, 7
        %v502 = vshll.u32 %v253, 16
        %v504 = vor.u32 %v501, %v502
        %v505 = vrot.slane %v501, 4
        %v507 = vshrl.u32 %v254, 16
        %v509 = vrot.slane %v507, 7
        %v510 = vshll.u32 %v254, 16
        %v512 = vor.u32 %v509, %v510
        %v513 = vsel %vm259, %v505, %v512
        %v514 = vrot.slane %v509, 4
        %v516 = vshrl.u32 %v255, 16
        %v518 = vrot.slane %v516, 7
        %v519 = vshll.u32 %v255, 16
        %v521 = vor.u32 %v518, %v519
        %v522 = vrot.slane %v518, 4
        %v524 = vshrl.u32 %v256, 16
        %v526 = vrot.slane %v524, 7
        %v527 = vshll.u32 %v256, 16
        %v529 = vor.u32 %v526, %v527
        %v530 = vsel %vm259, %v522, %v529
        %v531 = vrot.slane %v526, 4
        %s580 = scalar_lea.vmem [#allocation2], 12
        %vm581 = vcmask 1043456
        %vm582 = vsmask.f32 7938
        %vm583 = vmand %vm581, %vm582
        %v584 = vld [vmem:[%s580] sm:$0xf]
        %v585 = vsel %vm583, %v266, %v584
        %586 = vst [vmem:[%s580] sm:$0xf] %v585
        %587 = vst [vmem:[%s580 + $0x4] sm:$0xf] %v275
        %vm588 = vcmask 1040384
        %vm589 = vmand %vm588, %vm257
        %v590 = vld [vmem:[%s580 + $0x8] sm:$0x1]
        %v591 = vsel %vm589, %v276, %v590
        %592 = vst [vmem:[%s580 + $0x8] sm:$0x1] %v591
        %v593 = vld [vmem:[%s580 + $0xc] sm:$0xf]
        %v594 = vsel %vm583, %v283, %v593
        %595 = vst [vmem:[%s580 + $0xc] sm:$0xf] %v594
        %596 = vst [vmem:[%s580 + $0x10] sm:$0xf] %v292
        %v597 = vld [vmem:[%s580 + $0x14] sm:$0x1]
        %v598 = vsel %vm589, %v293, %v597
        %599 = vst [vmem:[%s580 + $0x14] sm:$0x1] %v598
        %v600 = vld [vmem:[%s580 + $0x18] sm:$0xf]
        %v601 = vsel %vm583, %v300, %v600
        %602 = vst [vmem:[%s580 + $0x18] sm:$0xf] %v601
        %603 = vst [vmem:[%s580 + $0x1c] sm:$0xf] %v309
        %v604 = vld [vmem:[%s580 + $0x20] sm:$0x1]
        %v605 = vsel %vm589, %v310, %v604
        %606 = vst [vmem:[%s580 + $0x20] sm:$0x1] %v605
        %v607 = vld [vmem:[%s580 + $0x24] sm:$0xf]
        %v608 = vsel %vm583, %v317, %v607
        %609 = vst [vmem:[%s580 + $0x24] sm:$0xf] %v608
        %610 = vst [vmem:[%s580 + $0x28] sm:$0xf] %v326
        %v611 = vld [vmem:[%s580 + $0x2c] sm:$0x1]
        %v612 = vsel %vm589, %v327, %v611
        %613 = vst [vmem:[%s580 + $0x2c] sm:$0x1] %v612
        %v614 = vld [vmem:[%s580 + $0x30] sm:$0xf]
        %v615 = vsel %vm583, %v334, %v614
        %616 = vst [vmem:[%s580 + $0x30] sm:$0xf] %v615
        %617 = vst [vmem:[%s580 + $0x34] sm:$0xf] %v343
        %v618 = vld [vmem:[%s580 + $0x38] sm:$0x1]
        %v619 = vsel %vm589, %v344, %v618
        %620 = vst [vmem:[%s580 + $0x38] sm:$0x1] %v619
        %v621 = vld [vmem:[%s580 + $0x3c] sm:$0xf]
        %v622 = vsel %vm583, %v351, %v621
        %623 = vst [vmem:[%s580 + $0x3c] sm:$0xf] %v622
        %624 = vst [vmem:[%s580 + $0x40] sm:$0xf] %v360
        %v625 = vld [vmem:[%s580 + $0x44] sm:$0x1]
        %v626 = vsel %vm589, %v361, %v625
        %627 = vst [vmem:[%s580 + $0x44] sm:$0x1] %v626
        %v628 = vld [vmem:[%s580 + $0x48] sm:$0xf]
        %v629 = vsel %vm583, %v368, %v628
        %630 = vst [vmem:[%s580 + $0x48] sm:$0xf] %v629
        %631 = vst [vmem:[%s580 + $0x4c] sm:$0xf] %v377
        %v632 = vld [vmem:[%s580 + $0x50] sm:$0x1]
        %v633 = vsel %vm589, %v378, %v632
        %634 = vst [vmem:[%s580 + $0x50] sm:$0x1] %v633
        %v635 = vld [vmem:[%s580 + $0x54] sm:$0xf]
        %v636 = vsel %vm583, %v385, %v635
        %637 = vst [vmem:[%s580 + $0x54] sm:$0xf] %v636
        %638 = vst [vmem:[%s580 + $0x58] sm:$0xf] %v394
        %v639 = vld [vmem:[%s580 + $0x5c] sm:$0x1]
        %v640 = vsel %vm589, %v395, %v639
        %641 = vst [vmem:[%s580 + $0x5c] sm:$0x1] %v640
        %v642 = vld [vmem:[%s580 + $0x60] sm:$0xf]
        %v643 = vsel %vm583, %v402, %v642
        %644 = vst [vmem:[%s580 + $0x60] sm:$0xf] %v643
        %645 = vst [vmem:[%s580 + $0x64] sm:$0xf] %v411
        %v646 = vld [vmem:[%s580 + $0x68] sm:$0x1]
        %v647 = vsel %vm589, %v412, %v646
        %648 = vst [vmem:[%s580 + $0x68] sm:$0x1] %v647
        %v649 = vld [vmem:[%s580 + $0x6c] sm:$0xf]
        %v650 = vsel %vm583, %v419, %v649
        %651 = vst [vmem:[%s580 + $0x6c] sm:$0xf] %v650
        %652 = vst [vmem:[%s580 + $0x70] sm:$0xf] %v428
        %v653 = vld [vmem:[%s580 + $0x74] sm:$0x1]
        %v654 = vsel %vm589, %v429, %v653
        %655 = vst [vmem:[%s580 + $0x74] sm:$0x1] %v654
        %v656 = vld [vmem:[%s580 + $0x78] sm:$0xf]
        %v657 = vsel %vm583, %v436, %v656
        %658 = vst [vmem:[%s580 + $0x78] sm:$0xf] %v657
        %659 = vst [vmem:[%s580 + $0x7c] sm:$0xf] %v445
        %v660 = vld [vmem:[%s580 + $0x80] sm:$0x1]
        %v661 = vsel %vm589, %v446, %v660
        %662 = vst [vmem:[%s580 + $0x80] sm:$0x1] %v661
        %v663 = vld [vmem:[%s580 + $0x84] sm:$0xf]
        %v664 = vsel %vm583, %v453, %v663
        %665 = vst [vmem:[%s580 + $0x84] sm:$0xf] %v664
        %666 = vst [vmem:[%s580 + $0x88] sm:$0xf] %v462
        %v667 = vld [vmem:[%s580 + $0x8c] sm:$0x1]
        %v668 = vsel %vm589, %v463, %v667
        %669 = vst [vmem:[%s580 + $0x8c] sm:$0x1] %v668
        %v670 = vld [vmem:[%s580 + $0x90] sm:$0xf]
        %v671 = vsel %vm583, %v470, %v670
        %672 = vst [vmem:[%s580 + $0x90] sm:$0xf] %v671
        %673 = vst [vmem:[%s580 + $0x94] sm:$0xf] %v479
        %v674 = vld [vmem:[%s580 + $0x98] sm:$0x1]
        %v675 = vsel %vm589, %v480, %v674
        %676 = vst [vmem:[%s580 + $0x98] sm:$0x1] %v675
        %v677 = vld [vmem:[%s580 + $0x9c] sm:$0xf]
        %v678 = vsel %vm583, %v487, %v677
        %679 = vst [vmem:[%s580 + $0x9c] sm:$0xf] %v678
        %680 = vst [vmem:[%s580 + $0xa0] sm:$0xf] %v496
        %v681 = vld [vmem:[%s580 + $0xa4] sm:$0x1]
        %v682 = vsel %vm589, %v497, %v681
        %683 = vst [vmem:[%s580 + $0xa4] sm:$0x1] %v682
        %v684 = vld [vmem:[%s580 + $0xa8] sm:$0xf]
        %v685 = vsel %vm583, %v504, %v684
        %686 = vst [vmem:[%s580 + $0xa8] sm:$0xf] %v685
        %687 = vst [vmem:[%s580 + $0xac] sm:$0xf] %v513
        %v688 = vld [vmem:[%s580 + $0xb0] sm:$0x1]
        %v689 = vsel %vm589, %v514, %v688
        %690 = vst [vmem:[%s580 + $0xb0] sm:$0x1] %v689
        %v691 = vld [vmem:[%s580 + $0xb4] sm:$0xf]
        %v692 = vsel %vm583, %v521, %v691
        %693 = vst [vmem:[%s580 + $0xb4] sm:$0xf] %v692
        %694 = vst [vmem:[%s580 + $0xb8] sm:$0xf] %v530
        %v695 = vld [vmem:[%s580 + $0xbc] sm:$0x1]
        %v696 = vsel %vm589, %v531, %v695
        %697 = vst [vmem:[%s580 + $0xbc] sm:$0x1] %v696
        %v698 = vld [vmem:[#allocation2] sm:$0xf]
        %v699 = vld [vmem:[#allocation2 + $0x4] sm:$0xf]
        %v700 = vld [vmem:[#allocation2 + $0x8] sm:$0xf]
        %v701 = vld [vmem:[#allocation2 + $0xc] sm:$0xf]
        %v702 = vld [vmem:[#allocation2 + $0x10] sm:$0xf]
        %v703 = vld [vmem:[#allocation2 + $0x14] sm:$0xf]
        %v704 = vld [vmem:[#allocation2 + $0x18] sm:$0xf]
        %v705 = vld [vmem:[#allocation2 + $0x1c] sm:$0xf]
        %v706 = vld [vmem:[#allocation2 + $0x20] sm:$0xf]
        %v707 = vld [vmem:[#allocation2 + $0x24] sm:$0xf]
        %v708 = vld [vmem:[#allocation2 + $0x28] sm:$0xf]
        %v709 = vld [vmem:[#allocation2 + $0x2c] sm:$0xf]
        %v710 = vld [vmem:[#allocation2 + $0x30] sm:$0xf]
        %v711 = vld [vmem:[#allocation2 + $0x34] sm:$0xf]
        %v712 = vld [vmem:[#allocation2 + $0x38] sm:$0xf]
        %v713 = vld [vmem:[#allocation2 + $0x3c] sm:$0xf]
        %v714 = vld [vmem:[#allocation2 + $0x40] sm:$0xf]
        %v715 = vld [vmem:[#allocation2 + $0x44] sm:$0xf]
        %v716 = vld [vmem:[#allocation2 + $0x48] sm:$0xf]
        %v717 = vld [vmem:[#allocation2 + $0x4c] sm:$0xf]
        %v718 = vld [vmem:[#allocation2 + $0x50] sm:$0xf]
        %v719 = vld [vmem:[#allocation2 + $0x54] sm:$0xf]
        %v720 = vld [vmem:[#allocation2 + $0x58] sm:$0xf]
        %v721 = vld [vmem:[#allocation2 + $0x5c] sm:$0xf]
        %v722 = vld [vmem:[#allocation2 + $0x60] sm:$0xf]
        %v723 = vld [vmem:[#allocation2 + $0x64] sm:$0xf]
        %v724 = vld [vmem:[#allocation2 + $0x68] sm:$0xf]
        %v725 = vld [vmem:[#allocation2 + $0x6c] sm:$0xf]
        %v726 = vld [vmem:[#allocation2 + $0x70] sm:$0xf]
        %v727 = vld [vmem:[#allocation2 + $0x74] sm:$0xf]
        %v728 = vld [vmem:[#allocation2 + $0x78] sm:$0xf]
        %v729 = vld [vmem:[#allocation2 + $0x7c] sm:$0xf]
        %v730 = vld [vmem:[#allocation2 + $0x80] sm:$0xf]
        %v731 = vld [vmem:[#allocation2 + $0x84] sm:$0xf]
        %v732 = vld [vmem:[#allocation2 + $0x88] sm:$0xf]
        %v733 = vld [vmem:[#allocation2 + $0x8c] sm:$0xf]
        %v734 = vld [vmem:[#allocation2 + $0x90] sm:$0xf]
        %v735 = vld [vmem:[#allocation2 + $0x94] sm:$0xf]
        %v736 = vld [vmem:[#allocation2 + $0x98] sm:$0xf]
        %v737 = vld [vmem:[#allocation2 + $0x9c] sm:$0xf]
        %v738 = vld [vmem:[#allocation2 + $0xa0] sm:$0xf]
        %v739 = vld [vmem:[#allocation2 + $0xa4] sm:$0xf]
        %v740 = vld [vmem:[#allocation2 + $0xa8] sm:$0xf]
        %v741 = vld [vmem:[#allocation2 + $0xac] sm:$0xf]
        %v742 = vld [vmem:[#allocation2 + $0xb0] sm:$0xf]
        %v743 = vld [vmem:[#allocation2 + $0xb4] sm:$0xf]
        %v744 = vld [vmem:[#allocation2 + $0xb8] sm:$0xf]
        %v745 = vld [vmem:[#allocation2 + $0xbc] sm:$0xf]
        %v746 = vld [vmem:[#allocation2 + $0xc0] sm:$0xf]
        %v747 = vld [vmem:[#allocation2 + $0xc4] sm:$0xf]
        %v748 = vld [vmem:[#allocation2 + $0xc8] sm:$0xf]
        %v749 = vld [vmem:[#allocation2 + $0xcc] sm:$0xf]
        %v750 = vld [vmem:[#allocation2 + $0xd0] sm:$0xf]
        %v751 = vld [vmem:[#allocation2 + $0xd4] sm:$0xf]
        %v784 = vunpack.c.l.b16 %v698
        %v785 = vunpack.c.l.b16 %v699
        %v786 = vunpack.c.l.b16 %v701
        %v787 = vunpack.c.l.b16 %v702
        %v788 = vunpack.c.l.b16 %v704
        %v789 = vunpack.c.l.b16 %v705
        %v790 = vunpack.c.l.b16 %v707
        %v791 = vunpack.c.l.b16 %v708
        %v792 = vunpack.c.l.b16 %v710
        %v793 = vunpack.c.l.b16 %v711
        %v794 = vunpack.c.l.b16 %v713
        %v795 = vunpack.c.l.b16 %v714
        %v796 = vunpack.c.l.b16 %v716
        %v797 = vunpack.c.l.b16 %v717
        %v798 = vunpack.c.l.b16 %v719
        %v799 = vunpack.c.l.b16 %v720
        %v800 = vunpack.c.l.b16 %v722
        %v801 = vunpack.c.l.b16 %v723
        %v802 = vunpack.c.l.b16 %v725
        %v803 = vunpack.c.l.b16 %v726
        %v804 = vunpack.c.l.b16 %v728
        %v805 = vunpack.c.l.b16 %v729
        %v806 = vunpack.c.l.b16 %v731
        %v807 = vunpack.c.l.b16 %v732
        %v808 = vunpack.c.l.b16 %v734
        %v809 = vunpack.c.l.b16 %v735
        %v810 = vunpack.c.l.b16 %v737
        %v811 = vunpack.c.l.b16 %v738
        %v812 = vunpack.c.l.b16 %v740
        %v813 = vunpack.c.l.b16 %v741
        %v814 = vunpack.c.l.b16 %v743
        %v815 = vunpack.c.l.b16 %v744
        %v816 = vpack.c.b16 %v785, %v784
        %v817 = vpack.c.b16 %v787, %v786
        %v818 = vpack.c.b16 %v789, %v788
        %v819 = vpack.c.b16 %v791, %v790
        %v820 = vpack.c.b16 %v793, %v792
        %v821 = vpack.c.b16 %v795, %v794
        %v822 = vpack.c.b16 %v797, %v796
        %v823 = vpack.c.b16 %v799, %v798
        %v824 = vpack.c.b16 %v801, %v800
        %v825 = vpack.c.b16 %v803, %v802
        %v826 = vpack.c.b16 %v805, %v804
        %v827 = vpack.c.b16 %v807, %v806
        %v828 = vpack.c.b16 %v809, %v808
        %v829 = vpack.c.b16 %v811, %v810
        %v830 = vpack.c.b16 %v813, %v812
        %v831 = vpack.c.b16 %v815, %v814
        %v864 = vunpack.c.l.b16 %v700
        %v865 = vunpack.c.l.b16 %v703
        %v866 = vunpack.c.l.b16 %v706
        %v867 = vunpack.c.l.b16 %v709
        %v868 = vunpack.c.l.b16 %v712
        %v869 = vunpack.c.l.b16 %v715
        %v870 = vunpack.c.l.b16 %v718
        %v871 = vunpack.c.l.b16 %v721
        %v872 = vunpack.c.l.b16 %v724
        %v873 = vunpack.c.l.b16 %v727
        %v874 = vunpack.c.l.b16 %v730
        %v875 = vunpack.c.l.b16 %v733
        %v876 = vunpack.c.l.b16 %v736
        %v877 = vunpack.c.l.b16 %v739
        %v878 = vunpack.c.l.b16 %v742
        %v879 = vunpack.c.l.b16 %v745
        %v880 = vpack.c.b16 %v864, %v864
        %v881 = vpack.c.b16 %v865, %v865
        %v882 = vpack.c.b16 %v866, %v866
        %v883 = vpack.c.b16 %v867, %v867
        %v884 = vpack.c.b16 %v868, %v868
        %v885 = vpack.c.b16 %v869, %v869
        %v886 = vpack.c.b16 %v870, %v870
        %v887 = vpack.c.b16 %v871, %v871
        %v888 = vpack.c.b16 %v872, %v872
        %v889 = vpack.c.b16 %v873, %v873
        %v890 = vpack.c.b16 %v874, %v874
        %v891 = vpack.c.b16 %v875, %v875
        %v892 = vpack.c.b16 %v876, %v876
        %v893 = vpack.c.b16 %v877, %v877
        %v894 = vpack.c.b16 %v878, %v878
        %v895 = vpack.c.b16 %v879, %v879
        %vm896 = vsmask.f32 7424
        %v898 = vshrl.u32 %v816, 16
        %v900 = vshll.u32 %v816, 16
        %v902 = vrot.slane %v900, 1
        %v903 = vor.u32 %v898, %v902
        %v905 = vshll.u32 %v880, 16
        %v907 = vrot.slane %v905, 1
        %v908 = vsel %vm896, %v903, %v907
        %v910 = vshrl.u32 %v817, 16
        %v912 = vshll.u32 %v817, 16
        %v914 = vrot.slane %v912, 1
        %v915 = vor.u32 %v910, %v914
        %v917 = vshll.u32 %v881, 16
        %v919 = vrot.slane %v917, 1
        %v920 = vsel %vm896, %v915, %v919
        %v922 = vshrl.u32 %v818, 16
        %v924 = vshll.u32 %v818, 16
        %v926 = vrot.slane %v924, 1
        %v927 = vor.u32 %v922, %v926
        %v929 = vshll.u32 %v882, 16
        %v931 = vrot.slane %v929, 1
        %v932 = vsel %vm896, %v927, %v931
        %v934 = vshrl.u32 %v819, 16
        %v936 = vshll.u32 %v819, 16
        %v938 = vrot.slane %v936, 1
        %v939 = vor.u32 %v934, %v938
        %v941 = vshll.u32 %v883, 16
        %v943 = vrot.slane %v941, 1
        %v944 = vsel %vm896, %v939, %v943
        %v946 = vshrl.u32 %v820, 16
        %v948 = vshll.u32 %v820, 16
        %v950 = vrot.slane %v948, 1
        %v951 = vor.u32 %v946, %v950
        %v953 = vshll.u32 %v884, 16
        %v955 = vrot.slane %v953, 1
        %v956 = vsel %vm896, %v951, %v955
        %v958 = vshrl.u32 %v821, 16
        %v960 = vshll.u32 %v821, 16
        %v962 = vrot.slane %v960, 1
        %v963 = vor.u32 %v958, %v962
        %v965 = vshll.u32 %v885, 16
        %v967 = vrot.slane %v965, 1
        %v968 = vsel %vm896, %v963, %v967
        %v970 = vshrl.u32 %v822, 16
        %v972 = vshll.u32 %v822, 16
        %v974 = vrot.slane %v972, 1
        %v975 = vor.u32 %v970, %v974
        %v977 = vshll.u32 %v886, 16
        %v979 = vrot.slane %v977, 1
        %v980 = vsel %vm896, %v975, %v979
        %v982 = vshrl.u32 %v823, 16
        %v984 = vshll.u32 %v823, 16
        %v986 = vrot.slane %v984, 1
        %v987 = vor.u32 %v982, %v986
        %v989 = vshll.u32 %v887, 16
        %v991 = vrot.slane %v989, 1
        %v992 = vsel %vm896, %v987, %v991
        %v994 = vshrl.u32 %v824, 16
        %v996 = vshll.u32 %v824, 16
        %v998 = vrot.slane %v996, 1
        %v999 = vor.u32 %v994, %v998
        %v1001 = vshll.u32 %v888, 16
        %v1003 = vrot.slane %v1001, 1
        %v1004 = vsel %vm896, %v999, %v1003
        %v1006 = vshrl.u32 %v825, 16
        %v1008 = vshll.u32 %v825, 16
        %v1010 = vrot.slane %v1008, 1
        %v1011 = vor.u32 %v1006, %v1010
        %v1013 = vshll.u32 %v889, 16
        %v1015 = vrot.slane %v1013, 1
        %v1016 = vsel %vm896, %v1011, %v1015
        %v1018 = vshrl.u32 %v826, 16
        %v1020 = vshll.u32 %v826, 16
        %v1022 = vrot.slane %v1020, 1
        %v1023 = vor.u32 %v1018, %v1022
        %v1025 = vshll.u32 %v890, 16
        %v1027 = vrot.slane %v1025, 1
        %v1028 = vsel %vm896, %v1023, %v1027
        %v1030 = vshrl.u32 %v827, 16
        %v1032 = vshll.u32 %v827, 16
        %v1034 = vrot.slane %v1032, 1
        %v1035 = vor.u32 %v1030, %v1034
        %v1037 = vshll.u32 %v891, 16
        %v1039 = vrot.slane %v1037, 1
        %v1040 = vsel %vm896, %v1035, %v1039
        %v1042 = vshrl.u32 %v828, 16
        %v1044 = vshll.u32 %v828, 16
        %v1046 = vrot.slane %v1044, 1
        %v1047 = vor.u32 %v1042, %v1046
        %v1049 = vshll.u32 %v892, 16
        %v1051 = vrot.slane %v1049, 1
        %v1052 = vsel %vm896, %v1047, %v1051
        %v1054 = vshrl.u32 %v829, 16
        %v1056 = vshll.u32 %v829, 16
        %v1058 = vrot.slane %v1056, 1
        %v1059 = vor.u32 %v1054, %v1058
        %v1061 = vshll.u32 %v893, 16
        %v1063 = vrot.slane %v1061, 1
        %v1064 = vsel %vm896, %v1059, %v1063
        %v1066 = vshrl.u32 %v830, 16
        %v1068 = vshll.u32 %v830, 16
        %v1070 = vrot.slane %v1068, 1
        %v1071 = vor.u32 %v1066, %v1070
        %v1073 = vshll.u32 %v894, 16
        %v1075 = vrot.slane %v1073, 1
        %v1076 = vsel %vm896, %v1071, %v1075
        %v1078 = vshrl.u32 %v831, 16
        %v1080 = vshll.u32 %v831, 16
        %v1082 = vrot.slane %v1080, 1
        %v1083 = vor.u32 %v1078, %v1082
        %v1085 = vshll.u32 %v895, 16
        %v1087 = vrot.slane %v1085, 1
        %v1088 = vsel %vm896, %v1083, %v1087
        %vm1105 = vcmask 1046528
        %v1106 = vrot.slane %v816, 1
        %v1107 = vrot.slane %v880, 1
        %v1108 = vsel %vm1105, %v1106, %v1107
        %v1109 = vrot.slane %v817, 1
        %v1110 = vrot.slane %v881, 1
        %v1111 = vsel %vm1105, %v1109, %v1110
        %v1112 = vrot.slane %v818, 1
        %v1113 = vrot.slane %v882, 1
        %v1114 = vsel %vm1105, %v1112, %v1113
        %v1115 = vrot.slane %v819, 1
        %v1116 = vrot.slane %v883, 1
        %v1117 = vsel %vm1105, %v1115, %v1116
        %v1118 = vrot.slane %v820, 1
        %v1119 = vrot.slane %v884, 1
        %v1120 = vsel %vm1105, %v1118, %v1119
        %v1121 = vrot.slane %v821, 1
        %v1122 = vrot.slane %v885, 1
        %v1123 = vsel %vm1105, %v1121, %v1122
        %v1124 = vrot.slane %v822, 1
        %v1125 = vrot.slane %v886, 1
        %v1126 = vsel %vm1105, %v1124, %v1125
        %v1127 = vrot.slane %v823, 1
        %v1128 = vrot.slane %v887, 1
        %v1129 = vsel %vm1105, %v1127, %v1128
        %v1130 = vrot.slane %v824, 1
        %v1131 = vrot.slane %v888, 1
        %v1132 = vsel %vm1105, %v1130, %v1131
        %v1133 = vrot.slane %v825, 1
        %v1134 = vrot.slane %v889, 1
        %v1135 = vsel %vm1105, %v1133, %v1134
        %v1136 = vrot.slane %v826, 1
        %v1137 = vrot.slane %v890, 1
        %v1138 = vsel %vm1105, %v1136, %v1137
        %v1139 = vrot.slane %v827, 1
        %v1140 = vrot.slane %v891, 1
        %v1141 = vsel %vm1105, %v1139, %v1140
        %v1142 = vrot.slane %v828, 1
        %v1143 = vrot.slane %v892, 1
        %v1144 = vsel %vm1105, %v1142, %v1143
        %v1145 = vrot.slane %v829, 1
        %v1146 = vrot.slane %v893, 1
        %v1147 = vsel %vm1105, %v1145, %v1146
        %v1148 = vrot.slane %v830, 1
        %v1149 = vrot.slane %v894, 1
        %v1150 = vsel %vm1105, %v1148, %v1149
        %v1151 = vrot.slane %v831, 1
        %v1152 = vrot.slane %v895, 1
        %v1153 = vsel %vm1105, %v1151, %v1152
        %v1172 = vunpack.c.l.b16 %v746
        %v1173 = vunpack.c.l.b16 %v747
        %v1174 = vpack.c.b16 %v1173, %v1172
        %v1177 = vunpack.c.l.b16 %v748
        %v1178 = vpack.c.b16 %v1177, %v1177
        %v1180 = vshrl.u32 %v1174, 16
        %v1182 = vshll.u32 %v1174, 16
        %v1184 = vrot.slane %v1182, 1
        %v1185 = vor.u32 %v1180, %v1184
        %v1187 = vshll.u32 %v1178, 16
        %v1189 = vrot.slane %v1187, 1
        %v1190 = vsel %vm896, %v1185, %v1189
        %v1192 = vrot.slane %v1174, 1
        %v1193 = vrot.slane %v1178, 1
        %v1194 = vsel %vm1105, %v1192, %v1193
        %v1198 = vunpack.c.l.b16 %v749
        %v1199 = vunpack.c.l.b16 %v750
        %v1200 = vpack.c.b16 %v1199, %v1198
        %v1203 = vunpack.c.l.b16 %v751
        %v1204 = vpack.c.b16 %v1203, %v1203
        %v1206 = vshrl.u32 %v1200, 16
        %v1208 = vshll.u32 %v1200, 16
        %v1210 = vrot.slane %v1208, 1
        %v1211 = vor.u32 %v1206, %v1210
        %v1213 = vshll.u32 %v1204, 16
        %v1215 = vrot.slane %v1213, 1
        %v1216 = vsel %vm896, %v1211, %v1215
        %v1218 = vrot.slane %v1200, 1
        %v1219 = vrot.slane %v1204, 1
        %v1220 = vsel %vm1105, %v1218, %v1219
        %v1222 = vld [vmem:[%s1] sm:$0xf]
        %v1223 = vld [vmem:[%s1 + $0x4] sm:$0xf]
        %v1224 = vld [vmem:[%s1 + $0x8] sm:$0xf]
        %v1225 = vld [vmem:[%s1 + $0xc] sm:$0xf]
        %v1226 = vld [vmem:[%s1 + $0x10] sm:$0xf]
        %v1227 = vld [vmem:[%s1 + $0x14] sm:$0xf]
        %v1228 = vld [vmem:[%s1 + $0x18] sm:$0xf]
        %v1229 = vld [vmem:[%s1 + $0x1c] sm:$0xf]
        %v1230 = vld [vmem:[%s1 + $0x20] sm:$0xf]
        %v1231 = vld [vmem:[%s1 + $0x24] sm:$0xf]
        %v1232 = vld [vmem:[%s1 + $0x28] sm:$0xf]
        %v1233 = vld [vmem:[%s1 + $0x2c] sm:$0xf]
        %v1234 = vld [vmem:[%s1 + $0x30] sm:$0xf]
        %v1235 = vld [vmem:[%s1 + $0x34] sm:$0xf]
        %v1236 = vld [vmem:[%s1 + $0x38] sm:$0xf]
        %v1237 = vld [vmem:[%s1 + $0x3c] sm:$0xf]
        %v1238 = vld [vmem:[%s1 + $0x40] sm:$0xf]
        %v1239 = vld [vmem:[%s1 + $0x44] sm:$0xf]
        %v1240 = vld [vmem:[%s1 + $0x48] sm:$0xf]
        %v1241 = vld [vmem:[%s1 + $0x4c] sm:$0xf]
        %v1242 = vld [vmem:[%s1 + $0x50] sm:$0xf]
        %v1243 = vld [vmem:[%s1 + $0x54] sm:$0xf]
        %v1244 = vld [vmem:[%s1 + $0x58] sm:$0xf]
        %v1245 = vld [vmem:[%s1 + $0x5c] sm:$0xf]
        %v1246 = vld [vmem:[%s1 + $0x60] sm:$0xf]
        %v1247 = vld [vmem:[%s1 + $0x64] sm:$0xf]
        %v1248 = vld [vmem:[%s1 + $0x68] sm:$0xf]
        %v1249 = vld [vmem:[%s1 + $0x6c] sm:$0xf]
        %v1250 = vld [vmem:[%s1 + $0x70] sm:$0xf]
        %v1251 = vld [vmem:[%s1 + $0x74] sm:$0xf]
        %v1252 = vld [vmem:[%s1 + $0x78] sm:$0xf]
        %v1253 = vld [vmem:[%s1 + $0x7c] sm:$0xf]
        %v1254 = vld [vmem:[%s1 + $0x80] sm:$0xf]
        %v1255 = vld [vmem:[%s1 + $0x84] sm:$0xf]
        %v1256 = vld [vmem:[%s1 + $0x88] sm:$0xf]
        %v1257 = vld [vmem:[%s1 + $0x8c] sm:$0xf]
        %v1258 = vld [vmem:[%s1 + $0x90] sm:$0xf]
        %v1259 = vld [vmem:[%s1 + $0x94] sm:$0xf]
        %v1260 = vld [vmem:[%s1 + $0x98] sm:$0xf]
        %v1261 = vld [vmem:[%s1 + $0x9c] sm:$0xf]
        %v1262 = vld [vmem:[%s1 + $0xa0] sm:$0xf]
        %v1263 = vld [vmem:[%s1 + $0xa4] sm:$0xf]
        %v1264 = vld [vmem:[%s1 + $0xa8] sm:$0xf]
        %v1265 = vld [vmem:[%s1 + $0xac] sm:$0xf]
        %v1266 = vld [vmem:[%s1 + $0xb0] sm:$0xf]
        %v1267 = vld [vmem:[%s1 + $0xb4] sm:$0xf]
        %v1268 = vld [vmem:[%s1 + $0xb8] sm:$0xf]
        %v1269 = vld [vmem:[%s1 + $0xbc] sm:$0xf]
        %v1270 = vld [vmem:[%s1 + $0xc0] sm:$0xf]
        %v1271 = vld [vmem:[%s1 + $0xc4] sm:$0xf]
        %v1272 = vld [vmem:[%s1 + $0xc8] sm:$0xf]
        %v1273 = vld [vmem:[%s1 + $0xcc] sm:$0xf]
        %v1274 = vld [vmem:[%s1 + $0xd0] sm:$0xf]
        %v1275 = vld [vmem:[%s1 + $0xd4] sm:$0xf]
        %v1276 = vld [vmem:[%s1 + $0xd8] sm:$0xf]
        %v1277 = vld [vmem:[%s1 + $0xdc] sm:$0xf]
        %v1278 = vld [vmem:[%s1 + $0xe0] sm:$0xf]
        %v1279 = vld [vmem:[%s1 + $0xe4] sm:$0xf]
        %v1280 = vld [vmem:[%s1 + $0xe8] sm:$0xf]
        %v1281 = vld [vmem:[%s1 + $0xec] sm:$0xf]
        %v1282 = vld [vmem:[%s1 + $0xf0] sm:$0xf]
        %v1283 = vld [vmem:[%s1 + $0xf4] sm:$0xf]
        %v1284 = vld [vmem:[%s1 + $0xf8] sm:$0xf]
        %v1285 = vld [vmem:[%s1 + $0xfc] sm:$0xf]
        %v1286 = vld [vmem:[%s1 + $0x100] sm:$0xf]
        %v1287 = vld [vmem:[%s1 + $0x104] sm:$0xf]
        %v1288 = vld [vmem:[%s1 + $0x108] sm:$0xf]
        %v1289 = vld [vmem:[%s1 + $0x10c] sm:$0xf]
        %v1290 = vld [vmem:[%s1 + $0x110] sm:$0xf]
        %v1291 = vld [vmem:[%s1 + $0x114] sm:$0xf]
        %v1292 = vld [vmem:[%s1 + $0x118] sm:$0xf]
        %v1293 = vld [vmem:[%s1 + $0x11c] sm:$0xf]
        %v1294 = vld [vmem:[%s1 + $0x120] sm:$0xf]
        %v1295 = vld [vmem:[%s1 + $0x124] sm:$0xf]
        %v1296 = vld [vmem:[%s1 + $0x128] sm:$0xf]
        %v1297 = vld [vmem:[%s1 + $0x12c] sm:$0xf]
        %v1298 = vld [vmem:[%s1 + $0x130] sm:$0xf]
        %v1299 = vld [vmem:[%s1 + $0x134] sm:$0xf]
        %v1300 = vld [vmem:[%s1 + $0x138] sm:$0xf]
        %v1301 = vld [vmem:[%s1 + $0x13c] sm:$0xf]
        %v1302 = vld [vmem:[%s1 + $0x140] sm:$0xf]
        %v1303 = vld [vmem:[%s1 + $0x144] sm:$0xf]
        %v1304 = vld [vmem:[%s1 + $0x148] sm:$0xf]
        %v1305 = vld [vmem:[%s1 + $0x14c] sm:$0xf]
        %v1306 = vld [vmem:[%s1 + $0x150] sm:$0xf]
        %v1307 = vld [vmem:[%s1 + $0x154] sm:$0xf]
        %v1308 = vld [vmem:[%s1 + $0x158] sm:$0xf]
        %v1309 = vld [vmem:[%s1 + $0x15c] sm:$0xf]
        %v1310 = vld [vmem:[%s1 + $0x160] sm:$0xf]
        %v1311 = vld [vmem:[%s1 + $0x164] sm:$0xf]
        %v1312 = vld [vmem:[%s1 + $0x168] sm:$0xf]
        %v1313 = vld [vmem:[%s1 + $0x16c] sm:$0xf]
        %v1314 = vld [vmem:[%s1 + $0x170] sm:$0xf]
        %v1315 = vld [vmem:[%s1 + $0x174] sm:$0xf]
        %v1316 = vld [vmem:[%s1 + $0x178] sm:$0xf]
        %v1317 = vld [vmem:[%s1 + $0x17c] sm:$0xf]
        %v1318 = vld [vmem:[%s1 + $0x180] sm:$0xf]
        %v1319 = vld [vmem:[%s1 + $0x184] sm:$0xf]
        %v1320 = vld [vmem:[%s1 + $0x188] sm:$0xf]
        %v1321 = vld [vmem:[%s1 + $0x18c] sm:$0xf]
        %v1322 = vld [vmem:[%s1 + $0x190] sm:$0xf]
        %v1323 = vld [vmem:[%s1 + $0x194] sm:$0xf]
        %v1324 = vld [vmem:[%s1 + $0x198] sm:$0xf]
        %v1325 = vld [vmem:[%s1 + $0x19c] sm:$0xf]
        %v1326 = vld [vmem:[%s1 + $0x1a0] sm:$0xf]
        %v1327 = vld [vmem:[%s1 + $0x1a4] sm:$0xf]
        %v1328 = vld [vmem:[%s1 + $0x1a8] sm:$0xf]
        %v1329 = vld [vmem:[%s1 + $0x1ac] sm:$0xf]
        %v1330 = vld [vmem:[%s1 + $0x1b0] sm:$0xf]
        %v1331 = vld [vmem:[%s1 + $0x1b4] sm:$0xf]
        %v1332 = vld [vmem:[%s1 + $0x1b8] sm:$0xf]
        %v1333 = vld [vmem:[%s1 + $0x1bc] sm:$0xf]
        %v1334 = vld [vmem:[%s1 + $0x1c0] sm:$0xf]
        %v1335 = vld [vmem:[%s1 + $0x1c4] sm:$0xf]
        %v1336 = vld [vmem:[%s1 + $0x1c8] sm:$0xf]
        %v1337 = vld [vmem:[%s1 + $0x1cc] sm:$0xf]
        %v1338 = vld [vmem:[%s1 + $0x1d0] sm:$0xf]
        %v1339 = vld [vmem:[%s1 + $0x1d4] sm:$0xf]
        %v1340 = vld [vmem:[%s1 + $0x1d8] sm:$0xf]
        %v1341 = vld [vmem:[%s1 + $0x1dc] sm:$0xf]
        %v1342 = vld [vmem:[%s1 + $0x1e0] sm:$0xf]
        %v1343 = vld [vmem:[%s1 + $0x1e4] sm:$0xf]
        %v1344 = vld [vmem:[%s1 + $0x1e8] sm:$0xf]
        %v1345 = vld [vmem:[%s1 + $0x1ec] sm:$0xf]
        %v1346 = vld [vmem:[%s1 + $0x1f0] sm:$0xf]
        %v1347 = vld [vmem:[%s1 + $0x1f4] sm:$0xf]
        %v1348 = vld [vmem:[%s1 + $0x1f8] sm:$0xf]
        %v1349 = vld [vmem:[%s1 + $0x1fc] sm:$0xf]
        %v1350 = vld [vmem:[%s1 + $0x200] sm:$0xf]
        %v1351 = vld [vmem:[%s1 + $0x204] sm:$0xf]
        %v1352 = vld [vmem:[%s1 + $0x208] sm:$0xf]
        %v1353 = vld [vmem:[%s1 + $0x20c] sm:$0xf]
        %v1354 = vld [vmem:[%s1 + $0x210] sm:$0xf]
        %v1355 = vld [vmem:[%s1 + $0x214] sm:$0xf]
        %v1356 = vld [vmem:[%s1 + $0x218] sm:$0xf]
        %v1357 = vld [vmem:[%s1 + $0x21c] sm:$0xf]
        %v1358 = vld [vmem:[%s1 + $0x220] sm:$0xf]
        %v1359 = vld [vmem:[%s1 + $0x224] sm:$0xf]
        %v1360 = vld [vmem:[%s1 + $0x228] sm:$0xf]
        %v1361 = vld [vmem:[%s1 + $0x22c] sm:$0xf]
        %v1362 = vld [vmem:[%s1 + $0x230] sm:$0xf]
        %v1363 = vld [vmem:[%s1 + $0x234] sm:$0xf]
        %v1364 = vld [vmem:[%s1 + $0x238] sm:$0xf]
        %v1365 = vld [vmem:[%s1 + $0x23c] sm:$0xf]
        %v1366 = vld [vmem:[%s2] sm:$0x1]
        %v1368 = vlaneseq
        %v1369 = vshrl.u32 %v1368, 7
        %v1370 = vsub.s32 0, %v1369
        %v1371 = vrot.slane %v1366, %v1370
        %v1517 = vunpack.c.l.b16 %v1222
        %v1518 = vunpack.c.l.b16 %v1223
        %v1519 = vunpack.c.l.b16 %v1224
        %v1520 = vunpack.c.l.b16 %v1225
        %v1521 = vunpack.c.l.b16 %v1226
        %v1522 = vunpack.c.l.b16 %v1227
        %v1523 = vunpack.c.l.b16 %v1228
        %v1524 = vunpack.c.l.b16 %v1229
        %v1525 = vunpack.c.l.b16 %v1230
        %v1526 = vunpack.c.l.b16 %v1231
        %v1527 = vunpack.c.l.b16 %v1232
        %v1528 = vunpack.c.l.b16 %v1233
        %v1529 = vunpack.c.l.b16 %v1234
        %v1530 = vunpack.c.l.b16 %v1235
        %v1531 = vunpack.c.l.b16 %v1236
        %v1532 = vunpack.c.l.b16 %v1237
        %v1533 = vunpack.c.l.b16 %v1238
        %v1534 = vunpack.c.l.b16 %v1239
        %v1535 = vunpack.c.l.b16 %v1240
        %v1536 = vunpack.c.l.b16 %v1241
        %v1537 = vunpack.c.l.b16 %v1242
        %v1538 = vunpack.c.l.b16 %v1243
        %v1539 = vunpack.c.l.b16 %v1244
        %v1540 = vunpack.c.l.b16 %v1245
        %v1541 = vunpack.c.l.b16 %v1246
        %v1542 = vunpack.c.l.b16 %v1247
        %v1543 = vunpack.c.l.b16 %v1248
        %v1544 = vunpack.c.l.b16 %v1249
        %v1545 = vunpack.c.l.b16 %v1250
        %v1546 = vunpack.c.l.b16 %v1251
        %v1547 = vunpack.c.l.b16 %v1252
        %v1548 = vunpack.c.l.b16 %v1253
        %v1549 = vunpack.c.l.b16 %v1254
        %v1550 = vunpack.c.l.b16 %v1255
        %v1551 = vunpack.c.l.b16 %v1256
        %v1552 = vunpack.c.l.b16 %v1257
        %v1553 = vunpack.c.l.b16 %v1258
        %v1554 = vunpack.c.l.b16 %v1259
        %v1555 = vunpack.c.l.b16 %v1260
        %v1556 = vunpack.c.l.b16 %v1261
        %v1557 = vunpack.c.l.b16 %v1262
        %v1558 = vunpack.c.l.b16 %v1263
        %v1559 = vunpack.c.l.b16 %v1264
        %v1560 = vunpack.c.l.b16 %v1265
        %v1561 = vunpack.c.l.b16 %v1266
        %v1562 = vunpack.c.l.b16 %v1267
        %v1563 = vunpack.c.l.b16 %v1268
        %v1564 = vunpack.c.l.b16 %v1269
        %v1565 = vunpack.c.l.b16 %v1270
        %v1566 = vunpack.c.l.b16 %v1271
        %v1567 = vunpack.c.l.b16 %v1272
        %v1568 = vunpack.c.l.b16 %v1273
        %v1569 = vunpack.c.l.b16 %v1274
        %v1570 = vunpack.c.l.b16 %v1275
        %v1571 = vunpack.c.l.b16 %v1276
        %v1572 = vunpack.c.l.b16 %v1277
        %v1573 = vunpack.c.l.b16 %v1278
        %v1574 = vunpack.c.l.b16 %v1279
        %v1575 = vunpack.c.l.b16 %v1280
        %v1576 = vunpack.c.l.b16 %v1281
        %v1577 = vunpack.c.l.b16 %v1282
        %v1578 = vunpack.c.l.b16 %v1283
        %v1579 = vunpack.c.l.b16 %v1284
        %v1580 = vunpack.c.l.b16 %v1285
        %v1581 = vunpack.c.l.b16 %v1286
        %v1582 = vunpack.c.l.b16 %v1287
        %v1583 = vunpack.c.l.b16 %v1288
        %v1584 = vunpack.c.l.b16 %v1289
        %v1585 = vunpack.c.l.b16 %v1290
        %v1586 = vunpack.c.l.b16 %v1291
        %v1587 = vunpack.c.l.b16 %v1292
        %v1588 = vunpack.c.l.b16 %v1293
        %v1589 = vunpack.c.l.b16 %v1294
        %v1590 = vunpack.c.l.b16 %v1295
        %v1591 = vunpack.c.l.b16 %v1296
        %v1592 = vunpack.c.l.b16 %v1297
        %v1593 = vunpack.c.l.b16 %v1298
        %v1594 = vunpack.c.l.b16 %v1299
        %v1595 = vunpack.c.l.b16 %v1300
        %v1596 = vunpack.c.l.b16 %v1301
        %v1597 = vunpack.c.l.b16 %v1302
        %v1598 = vunpack.c.l.b16 %v1303
        %v1599 = vunpack.c.l.b16 %v1304
        %v1600 = vunpack.c.l.b16 %v1305
        %v1601 = vunpack.c.l.b16 %v1306
        %v1602 = vunpack.c.l.b16 %v1307
        %v1603 = vunpack.c.l.b16 %v1308
        %v1604 = vunpack.c.l.b16 %v1309
        %v1605 = vunpack.c.l.b16 %v1310
        %v1606 = vunpack.c.l.b16 %v1311
        %v1607 = vunpack.c.l.b16 %v1312
        %v1608 = vunpack.c.l.b16 %v1313
        %v1609 = vunpack.c.l.b16 %v1314
        %v1610 = vunpack.c.l.b16 %v1315
        %v1611 = vunpack.c.l.b16 %v1316
        %v1612 = vunpack.c.l.b16 %v1317
        %v1613 = vunpack.c.l.b16 %v1318
        %v1614 = vunpack.c.l.b16 %v1319
        %v1615 = vunpack.c.l.b16 %v1320
        %v1616 = vunpack.c.l.b16 %v1321
        %v1617 = vunpack.c.l.b16 %v1322
        %v1618 = vunpack.c.l.b16 %v1323
        %v1619 = vunpack.c.l.b16 %v1324
        %v1620 = vunpack.c.l.b16 %v1325
        %v1621 = vunpack.c.l.b16 %v1326
        %v1622 = vunpack.c.l.b16 %v1327
        %v1623 = vunpack.c.l.b16 %v1328
        %v1624 = vunpack.c.l.b16 %v1329
        %v1625 = vunpack.c.l.b16 %v1330
        %v1626 = vunpack.c.l.b16 %v1331
        %v1627 = vunpack.c.l.b16 %v1332
        %v1628 = vunpack.c.l.b16 %v1333
        %v1629 = vunpack.c.l.b16 %v1334
        %v1630 = vunpack.c.l.b16 %v1335
        %v1631 = vunpack.c.l.b16 %v1336
        %v1632 = vunpack.c.l.b16 %v1337
        %v1633 = vunpack.c.l.b16 %v1338
        %v1634 = vunpack.c.l.b16 %v1339
        %v1635 = vunpack.c.l.b16 %v1340
        %v1636 = vunpack.c.l.b16 %v1341
        %v1637 = vunpack.c.l.b16 %v1342
        %v1638 = vunpack.c.l.b16 %v1343
        %v1639 = vunpack.c.l.b16 %v1344
        %v1640 = vunpack.c.l.b16 %v1345
        %v1641 = vunpack.c.l.b16 %v1346
        %v1642 = vunpack.c.l.b16 %v1347
        %v1643 = vunpack.c.l.b16 %v1348
        %v1644 = vunpack.c.l.b16 %v1349
        %v1645 = vunpack.c.l.b16 %v1350
        %v1646 = vunpack.c.l.b16 %v1351
        %v1647 = vunpack.c.l.b16 %v1352
        %v1648 = vunpack.c.l.b16 %v1353
        %v1649 = vunpack.c.l.b16 %v1354
        %v1650 = vunpack.c.l.b16 %v1355
        %v1651 = vunpack.c.l.b16 %v1356
        %v1652 = vunpack.c.l.b16 %v1357
        %v1653 = vunpack.c.l.b16 %v1358
        %v1654 = vunpack.c.l.b16 %v1359
        %v1655 = vunpack.c.l.b16 %v1360
        %v1656 = vunpack.c.l.b16 %v1361
        %v1657 = vunpack.c.l.b16 %v1362
        %v1658 = vunpack.c.l.b16 %v1363
        %v1659 = vunpack.c.l.b16 %v1364
        %v1660 = vunpack.c.l.b16 %v1365
        %v1661 = vpack.c.b16 %v1518, %v1517
        %v1662 = vpack.c.b16 %v1520, %v1519
        %v1663 = vpack.c.b16 %v1522, %v1521
        %v1664 = vpack.c.b16 %v1524, %v1523
        %v1665 = vpack.c.b16 %v1526, %v1525
        %v1666 = vpack.c.b16 %v1528, %v1527
        %v1667 = vpack.c.b16 %v1530, %v1529
        %v1668 = vpack.c.b16 %v1532, %v1531
        %v1669 = vpack.c.b16 %v1534, %v1533
        %v1670 = vpack.c.b16 %v1536, %v1535
        %v1671 = vpack.c.b16 %v1538, %v1537
        %v1672 = vpack.c.b16 %v1540, %v1539
        %v1673 = vpack.c.b16 %v1542, %v1541
        %v1674 = vpack.c.b16 %v1544, %v1543
        %v1675 = vpack.c.b16 %v1546, %v1545
        %v1676 = vpack.c.b16 %v1548, %v1547
        %v1677 = vpack.c.b16 %v1550, %v1549
        %v1678 = vpack.c.b16 %v1552, %v1551
        %v1679 = vpack.c.b16 %v1554, %v1553
        %v1680 = vpack.c.b16 %v1556, %v1555
        %v1681 = vpack.c.b16 %v1558, %v1557
        %v1682 = vpack.c.b16 %v1560, %v1559
        %v1683 = vpack.c.b16 %v1562, %v1561
        %v1684 = vpack.c.b16 %v1564, %v1563
        %v1685 = vpack.c.b16 %v1566, %v1565
        %v1686 = vpack.c.b16 %v1568, %v1567
        %v1687 = vpack.c.b16 %v1570, %v1569
        %v1688 = vpack.c.b16 %v1572, %v1571
        %v1689 = vpack.c.b16 %v1574, %v1573
        %v1690 = vpack.c.b16 %v1576, %v1575
        %v1691 = vpack.c.b16 %v1578, %v1577
        %v1692 = vpack.c.b16 %v1580, %v1579
        %v1693 = vpack.c.b16 %v1582, %v1581
        %v1694 = vpack.c.b16 %v1584, %v1583
        %v1695 = vpack.c.b16 %v1586, %v1585
        %v1696 = vpack.c.b16 %v1588, %v1587
        %v1697 = vpack.c.b16 %v1590, %v1589
        %v1698 = vpack.c.b16 %v1592, %v1591
        %v1699 = vpack.c.b16 %v1594, %v1593
        %v1700 = vpack.c.b16 %v1596, %v1595
        %v1701 = vpack.c.b16 %v1598, %v1597
        %v1702 = vpack.c.b16 %v1600, %v1599
        %v1703 = vpack.c.b16 %v1602, %v1601
        %v1704 = vpack.c.b16 %v1604, %v1603
        %v1705 = vpack.c.b16 %v1606, %v1605
        %v1706 = vpack.c.b16 %v1608, %v1607
        %v1707 = vpack.c.b16 %v1610, %v1609
        %v1708 = vpack.c.b16 %v1612, %v1611
        %v1709 = vpack.c.b16 %v1614, %v1613
        %v1710 = vpack.c.b16 %v1616, %v1615
        %v1711 = vpack.c.b16 %v1618, %v1617
        %v1712 = vpack.c.b16 %v1620, %v1619
        %v1713 = vpack.c.b16 %v1622, %v1621
        %v1714 = vpack.c.b16 %v1624, %v1623
        %v1715 = vpack.c.b16 %v1626, %v1625
        %v1716 = vpack.c.b16 %v1628, %v1627
        %v1717 = vpack.c.b16 %v1630, %v1629
        %v1718 = vpack.c.b16 %v1632, %v1631
        %v1719 = vpack.c.b16 %v1634, %v1633
        %v1720 = vpack.c.b16 %v1636, %v1635
        %v1721 = vpack.c.b16 %v1638, %v1637
        %v1722 = vpack.c.b16 %v1640, %v1639
        %v1723 = vpack.c.b16 %v1642, %v1641
        %v1724 = vpack.c.b16 %v1644, %v1643
        %v1725 = vpack.c.b16 %v1646, %v1645
        %v1726 = vpack.c.b16 %v1648, %v1647
        %v1727 = vpack.c.b16 %v1650, %v1649
        %v1728 = vpack.c.b16 %v1652, %v1651
        %v1729 = vpack.c.b16 %v1654, %v1653
        %v1730 = vpack.c.b16 %v1656, %v1655
        %v1731 = vpack.c.b16 %v1658, %v1657
        %v1732 = vpack.c.b16 %v1660, %v1659
        %1805 = vmatprep.subr.bf16.mxu0 0
        %1806 = vmatpush1.bf16.msra.mxu0 %v1668
        %1807 = vmatprep.subr.bf16.mxu0 0
        %1808 = vmatpush1.bf16.msra.mxu0 %v1667
        %1809 = vmatprep.subr.bf16.mxu0 0
        %1810 = vmatpush1.bf16.msra.mxu0 %v1666
        %1811 = vmatprep.subr.bf16.mxu0 0
        %1812 = vmatpush1.bf16.msra.mxu0 %v1665
        %1813 = vmatprep.subr.bf16.mxu0 0
        %1814 = vmatpush1.bf16.msra.mxu0 %v1664
        %1815 = vmatprep.subr.bf16.mxu0 0
        %1816 = vmatpush1.bf16.msra.mxu0 %v1663
        %1817 = vmatprep.subr.bf16.mxu0 0
        %1818 = vmatpush1.bf16.msra.mxu0 %v1662
        %1819 = vmatprep.subr.bf16.mxu0 0
        %1820 = vmatpush1.bf16.msra.mxu0 %v1661
        %1821 = vmatprep.subr.bf16.mxu0 0
        %1822 = vmatpush2.bf16.msra.mxu0 %v1676
        %1823 = vmatprep.subr.bf16.mxu0 0
        %1824 = vmatpush2.bf16.msra.mxu0 %v1675
        %1825 = vmatprep.subr.bf16.mxu0 0
        %1826 = vmatpush2.bf16.msra.mxu0 %v1674
        %1827 = vmatprep.subr.bf16.mxu0 0
        %1828 = vmatpush2.bf16.msra.mxu0 %v1673
        %1829 = vmatprep.subr.bf16.mxu0 0
        %1830 = vmatpush2.bf16.msra.mxu0 %v1672
        %1831 = vmatprep.subr.bf16.mxu0 0
        %1832 = vmatpush2.bf16.msra.mxu0 %v1671
        %1833 = vmatprep.subr.bf16.mxu0 0
        %1834 = vmatpush2.bf16.msra.mxu0 %v1670
        %1835 = vmatprep.subr.bf16.mxu0 0
        %1836 = vmatpush2.bf16.msra.mxu0 %v1669
        %1837 = vmatprep.mubr.bf16.mxu0 %v908
        %1838 = vmatmul.mubr.bf16.gmra.mxu0 %v816
        %v1839 = vpop.f32.mrf.mxu0
        %v1840 = vadd.f32 %v1371, %v1839
        %v1841 = vpop.f32.mrf.mxu0
        %v1842 = vpop.f32.mrf.mxu0
        %v1843 = vadd.f32 %v1371, %v1842
        %v1844 = vpop.f32.mrf.mxu0
        %1845 = vmatprep.mubr.bf16.mxu0 %v920
        %1846 = vmatmul.mubr.bf16.gmra.mxu0 %v817
        %v1847 = vpop.f32.mrf.mxu0
        %v1848 = vadd.f32 %v1371, %v1847
        %v1849 = vpop.f32.mrf.mxu0
        %v1850 = vpop.f32.mrf.mxu0
        %v1851 = vadd.f32 %v1371, %v1850
        %v1852 = vpop.f32.mrf.mxu0
        %1853 = vmatprep.mubr.bf16.mxu0 %v932
        %1854 = vmatmul.mubr.bf16.gmra.mxu0 %v818
        %v1855 = vpop.f32.mrf.mxu0
        %v1856 = vadd.f32 %v1371, %v1855
        %v1857 = vpop.f32.mrf.mxu0
        %v1858 = vpop.f32.mrf.mxu0
        %v1859 = vadd.f32 %v1371, %v1858
        %v1860 = vpop.f32.mrf.mxu0
        %1861 = vmatprep.mubr.bf16.mxu0 %v944
        %1862 = vmatmul.mubr.bf16.gmra.mxu0 %v819
        %v1863 = vpop.f32.mrf.mxu0
        %v1864 = vadd.f32 %v1371, %v1863
        %v1865 = vpop.f32.mrf.mxu0
        %v1866 = vpop.f32.mrf.mxu0
        %v1867 = vadd.f32 %v1371, %v1866
        %v1868 = vpop.f32.mrf.mxu0
        %1869 = vmatprep.mubr.bf16.mxu0 %v956
        %1870 = vmatmul.mubr.bf16.gmra.mxu0 %v820
        %v1871 = vpop.f32.mrf.mxu0
        %v1872 = vadd.f32 %v1371, %v1871
        %v1873 = vpop.f32.mrf.mxu0
        %v1874 = vpop.f32.mrf.mxu0
        %v1875 = vadd.f32 %v1371, %v1874
        %v1876 = vpop.f32.mrf.mxu0
        %1877 = vmatprep.mubr.bf16.mxu0 %v968
        %1878 = vmatmul.mubr.bf16.gmra.mxu0 %v821
        %v1879 = vpop.f32.mrf.mxu0
        %v1880 = vadd.f32 %v1371, %v1879
        %v1881 = vpop.f32.mrf.mxu0
        %v1882 = vpop.f32.mrf.mxu0
        %v1883 = vadd.f32 %v1371, %v1882
        %v1884 = vpop.f32.mrf.mxu0
        %1885 = vmatprep.mubr.bf16.mxu0 %v980
        %1886 = vmatmul.mubr.bf16.gmra.mxu0 %v822
        %v1887 = vpop.f32.mrf.mxu0
        %v1888 = vadd.f32 %v1371, %v1887
        %v1889 = vpop.f32.mrf.mxu0
        %v1890 = vpop.f32.mrf.mxu0
        %v1891 = vadd.f32 %v1371, %v1890
        %v1892 = vpop.f32.mrf.mxu0
        %1893 = vmatprep.mubr.bf16.mxu0 %v992
        %1894 = vmatmul.mubr.bf16.gmra.mxu0 %v823
        %v1895 = vpop.f32.mrf.mxu0
        %v1896 = vadd.f32 %v1371, %v1895
        %v1897 = vpop.f32.mrf.mxu0
        %v1898 = vpop.f32.mrf.mxu0
        %v1899 = vadd.f32 %v1371, %v1898
        %v1900 = vpop.f32.mrf.mxu0
        %1901 = vmatprep.mubr.bf16.mxu0 %v1004
        %1902 = vmatmul.mubr.bf16.gmra.mxu0 %v824
        %v1903 = vpop.f32.mrf.mxu0
        %v1904 = vadd.f32 %v1371, %v1903
        %v1905 = vpop.f32.mrf.mxu0
        %v1906 = vpop.f32.mrf.mxu0
        %v1907 = vadd.f32 %v1371, %v1906
        %v1908 = vpop.f32.mrf.mxu0
        %1909 = vmatprep.mubr.bf16.mxu0 %v1016
        %1910 = vmatmul.mubr.bf16.gmra.mxu0 %v825
        %v1911 = vpop.f32.mrf.mxu0
        %v1912 = vadd.f32 %v1371, %v1911
        %v1913 = vpop.f32.mrf.mxu0
        %v1914 = vpop.f32.mrf.mxu0
        %v1915 = vadd.f32 %v1371, %v1914
        %v1916 = vpop.f32.mrf.mxu0
        %1917 = vmatprep.mubr.bf16.mxu0 %v1028
        %1918 = vmatmul.mubr.bf16.gmra.mxu0 %v826
        %v1919 = vpop.f32.mrf.mxu0
        %v1920 = vadd.f32 %v1371, %v1919
        %v1921 = vpop.f32.mrf.mxu0
        %v1922 = vpop.f32.mrf.mxu0
        %v1923 = vadd.f32 %v1371, %v1922
        %v1924 = vpop.f32.mrf.mxu0
        %1925 = vmatprep.mubr.bf16.mxu0 %v1040
        %1926 = vmatmul.mubr.bf16.gmra.mxu0 %v827
        %v1927 = vpop.f32.mrf.mxu0
        %v1928 = vadd.f32 %v1371, %v1927
        %v1929 = vpop.f32.mrf.mxu0
        %v1930 = vpop.f32.mrf.mxu0
        %v1931 = vadd.f32 %v1371, %v1930
        %v1932 = vpop.f32.mrf.mxu0
        %1933 = vmatprep.mubr.bf16.mxu0 %v1052
        %1934 = vmatmul.mubr.bf16.gmra.mxu0 %v828
        %v1935 = vpop.f32.mrf.mxu0
        %v1936 = vadd.f32 %v1371, %v1935
        %v1937 = vpop.f32.mrf.mxu0
        %v1938 = vpop.f32.mrf.mxu0
        %v1939 = vadd.f32 %v1371, %v1938
        %v1940 = vpop.f32.mrf.mxu0
        %1941 = vmatprep.mubr.bf16.mxu0 %v1064
        %1942 = vmatmul.mubr.bf16.gmra.mxu0 %v829
        %v1943 = vpop.f32.mrf.mxu0
        %v1944 = vadd.f32 %v1371, %v1943
        %v1945 = vpop.f32.mrf.mxu0
        %v1946 = vpop.f32.mrf.mxu0
        %v1947 = vadd.f32 %v1371, %v1946
        %v1948 = vpop.f32.mrf.mxu0
        %1949 = vmatprep.mubr.bf16.mxu0 %v1076
        %1950 = vmatmul.mubr.bf16.gmra.mxu0 %v830
        %v1951 = vpop.f32.mrf.mxu0
        %v1952 = vadd.f32 %v1371, %v1951
        %v1953 = vpop.f32.mrf.mxu0
        %v1954 = vpop.f32.mrf.mxu0
        %v1955 = vadd.f32 %v1371, %v1954
        %v1956 = vpop.f32.mrf.mxu0
        %1957 = vmatprep.mubr.bf16.mxu0 %v1088
        %1958 = vmatmul.mubr.bf16.gmra.mxu0 %v831
        %v1959 = vpop.f32.mrf.mxu0
        %v1960 = vadd.f32 %v1371, %v1959
        %v1961 = vpop.f32.mrf.mxu0
        %v1962 = vpop.f32.mrf.mxu0
        %v1963 = vadd.f32 %v1371, %v1962
        %v1964 = vpop.f32.mrf.mxu0
        %1965 = vdwg.mxu0
        %1966 = vmatprep.subr.bf16.mxu0 0
        %1967 = vmatpush1.bf16.msra.mxu0 %v1684
        %1968 = vmatprep.subr.bf16.mxu0 0
        %1969 = vmatpush1.bf16.msra.mxu0 %v1683
        %1970 = vmatprep.subr.bf16.mxu0 0
        %1971 = vmatpush1.bf16.msra.mxu0 %v1682
        %1972 = vmatprep.subr.bf16.mxu0 0
        %1973 = vmatpush1.bf16.msra.mxu0 %v1681
        %1974 = vmatprep.subr.bf16.mxu0 0
        %1975 = vmatpush1.bf16.msra.mxu0 %v1680
        %1976 = vmatprep.subr.bf16.mxu0 0
        %1977 = vmatpush1.bf16.msra.mxu0 %v1679
        %1978 = vmatprep.subr.bf16.mxu0 0
        %1979 = vmatpush1.bf16.msra.mxu0 %v1678
        %1980 = vmatprep.subr.bf16.mxu0 0
        %1981 = vmatpush1.bf16.msra.mxu0 %v1677
        %1982 = vmatprep.subr.bf16.mxu0 0
        %1983 = vmatpush2.bf16.msra.mxu0 %v1692
        %1984 = vmatprep.subr.bf16.mxu0 0
        %1985 = vmatpush2.bf16.msra.mxu0 %v1691
        %1986 = vmatprep.subr.bf16.mxu0 0
        %1987 = vmatpush2.bf16.msra.mxu0 %v1690
        %1988 = vmatprep.subr.bf16.mxu0 0
        %1989 = vmatpush2.bf16.msra.mxu0 %v1689
        %1990 = vmatprep.subr.bf16.mxu0 0
        %1991 = vmatpush2.bf16.msra.mxu0 %v1688
        %1992 = vmatprep.subr.bf16.mxu0 0
        %1993 = vmatpush2.bf16.msra.mxu0 %v1687
        %1994 = vmatprep.subr.bf16.mxu0 0
        %1995 = vmatpush2.bf16.msra.mxu0 %v1686
        %1996 = vmatprep.subr.bf16.mxu0 0
        %1997 = vmatpush2.bf16.msra.mxu0 %v1685
        %1998 = vmatprep.mubr.bf16.mxu0 %v817
        %1999 = vmatmul.mubr.bf16.gmra.mxu0 %v1108
        %v2000 = vpop.f32.mrf.mxu0
        %v2001 = vadd.f32 %v1840, %v2000
        %v2002 = vpop.f32.mrf.mxu0
        %v2003 = vpop.f32.mrf.mxu0
        %v2004 = vadd.f32 %v1843, %v2003
        %v2005 = vpop.f32.mrf.mxu0
        %2006 = vmatprep.mubr.bf16.mxu0 %v818
        %2007 = vmatmul.mubr.bf16.gmra.mxu0 %v1111
        %v2008 = vpop.f32.mrf.mxu0
        %v2009 = vadd.f32 %v1848, %v2008
        %v2010 = vpop.f32.mrf.mxu0
        %v2011 = vpop.f32.mrf.mxu0
        %v2012 = vadd.f32 %v1851, %v2011
        %v2013 = vpop.f32.mrf.mxu0
        %2014 = vmatprep.mubr.bf16.mxu0 %v819
        %2015 = vmatmul.mubr.bf16.gmra.mxu0 %v1114
        %v2016 = vpop.f32.mrf.mxu0
        %v2017 = vadd.f32 %v1856, %v2016
        %v2018 = vpop.f32.mrf.mxu0
        %v2019 = vpop.f32.mrf.mxu0
        %v2020 = vadd.f32 %v1859, %v2019
        %v2021 = vpop.f32.mrf.mxu0
        %2022 = vmatprep.mubr.bf16.mxu0 %v820
        %2023 = vmatmul.mubr.bf16.gmra.mxu0 %v1117
        %v2024 = vpop.f32.mrf.mxu0
        %v2025 = vadd.f32 %v1864, %v2024
        %v2026 = vpop.f32.mrf.mxu0
        %v2027 = vpop.f32.mrf.mxu0
        %v2028 = vadd.f32 %v1867, %v2027
        %v2029 = vpop.f32.mrf.mxu0
        %2030 = vmatprep.mubr.bf16.mxu0 %v821
        %2031 = vmatmul.mubr.bf16.gmra.mxu0 %v1120
        %v2032 = vpop.f32.mrf.mxu0
        %v2033 = vadd.f32 %v1872, %v2032
        %v2034 = vpop.f32.mrf.mxu0
        %v2035 = vpop.f32.mrf.mxu0
        %v2036 = vadd.f32 %v1875, %v2035
        %v2037 = vpop.f32.mrf.mxu0
        %2038 = vmatprep.mubr.bf16.mxu0 %v822
        %2039 = vmatmul.mubr.bf16.gmra.mxu0 %v1123
        %v2040 = vpop.f32.mrf.mxu0
        %v2041 = vadd.f32 %v1880, %v2040
        %v2042 = vpop.f32.mrf.mxu0
        %v2043 = vpop.f32.mrf.mxu0
        %v2044 = vadd.f32 %v1883, %v2043
        %v2045 = vpop.f32.mrf.mxu0
        %2046 = vmatprep.mubr.bf16.mxu0 %v823
        %2047 = vmatmul.mubr.bf16.gmra.mxu0 %v1126
        %v2048 = vpop.f32.mrf.mxu0
        %v2049 = vadd.f32 %v1888, %v2048
        %v2050 = vpop.f32.mrf.mxu0
        %v2051 = vpop.f32.mrf.mxu0
        %v2052 = vadd.f32 %v1891, %v2051
        %v2053 = vpop.f32.mrf.mxu0
        %2054 = vmatprep.mubr.bf16.mxu0 %v824
        %2055 = vmatmul.mubr.bf16.gmra.mxu0 %v1129
        %v2056 = vpop.f32.mrf.mxu0
        %v2057 = vadd.f32 %v1896, %v2056
        %v2058 = vpop.f32.mrf.mxu0
        %v2059 = vpop.f32.mrf.mxu0
        %v2060 = vadd.f32 %v1899, %v2059
        %v2061 = vpop.f32.mrf.mxu0
        %2062 = vmatprep.mubr.bf16.mxu0 %v825
        %2063 = vmatmul.mubr.bf16.gmra.mxu0 %v1132
        %v2064 = vpop.f32.mrf.mxu0
        %v2065 = vadd.f32 %v1904, %v2064
        %v2066 = vpop.f32.mrf.mxu0
        %v2067 = vpop.f32.mrf.mxu0
        %v2068 = vadd.f32 %v1907, %v2067
        %v2069 = vpop.f32.mrf.mxu0
        %2070 = vmatprep.mubr.bf16.mxu0 %v826
        %2071 = vmatmul.mubr.bf16.gmra.mxu0 %v1135
        %v2072 = vpop.f32.mrf.mxu0
        %v2073 = vadd.f32 %v1912, %v2072
        %v2074 = vpop.f32.mrf.mxu0
        %v2075 = vpop.f32.mrf.mxu0
        %v2076 = vadd.f32 %v1915, %v2075
        %v2077 = vpop.f32.mrf.mxu0
        %2078 = vmatprep.mubr.bf16.mxu0 %v827
        %2079 = vmatmul.mubr.bf16.gmra.mxu0 %v1138
        %v2080 = vpop.f32.mrf.mxu0
        %v2081 = vadd.f32 %v1920, %v2080
        %v2082 = vpop.f32.mrf.mxu0
        %v2083 = vpop.f32.mrf.mxu0
        %v2084 = vadd.f32 %v1923, %v2083
        %v2085 = vpop.f32.mrf.mxu0
        %2086 = vmatprep.mubr.bf16.mxu0 %v828
        %2087 = vmatmul.mubr.bf16.gmra.mxu0 %v1141
        %v2088 = vpop.f32.mrf.mxu0
        %v2089 = vadd.f32 %v1928, %v2088
        %v2090 = vpop.f32.mrf.mxu0
        %v2091 = vpop.f32.mrf.mxu0
        %v2092 = vadd.f32 %v1931, %v2091
        %v2093 = vpop.f32.mrf.mxu0
        %2094 = vmatprep.mubr.bf16.mxu0 %v829
        %2095 = vmatmul.mubr.bf16.gmra.mxu0 %v1144
        %v2096 = vpop.f32.mrf.mxu0
        %v2097 = vadd.f32 %v1936, %v2096
        %v2098 = vpop.f32.mrf.mxu0
        %v2099 = vpop.f32.mrf.mxu0
        %v2100 = vadd.f32 %v1939, %v2099
        %v2101 = vpop.f32.mrf.mxu0
        %2102 = vmatprep.mubr.bf16.mxu0 %v830
        %2103 = vmatmul.mubr.bf16.gmra.mxu0 %v1147
        %v2104 = vpop.f32.mrf.mxu0
        %v2105 = vadd.f32 %v1944, %v2104
        %v2106 = vpop.f32.mrf.mxu0
        %v2107 = vpop.f32.mrf.mxu0
        %v2108 = vadd.f32 %v1947, %v2107
        %v2109 = vpop.f32.mrf.mxu0
        %2110 = vmatprep.mubr.bf16.mxu0 %v831
        %2111 = vmatmul.mubr.bf16.gmra.mxu0 %v1150
        %v2112 = vpop.f32.mrf.mxu0
        %v2113 = vadd.f32 %v1952, %v2112
        %v2114 = vpop.f32.mrf.mxu0
        %v2115 = vpop.f32.mrf.mxu0
        %v2116 = vadd.f32 %v1955, %v2115
        %v2117 = vpop.f32.mrf.mxu0
        %2118 = vmatprep.mubr.bf16.mxu0 %v1174
        %2119 = vmatmul.mubr.bf16.gmra.mxu0 %v1153
        %v2120 = vpop.f32.mrf.mxu0
        %v2121 = vadd.f32 %v1960, %v2120
        %v2122 = vpop.f32.mrf.mxu0
        %v2123 = vpop.f32.mrf.mxu0
        %v2124 = vadd.f32 %v1963, %v2123
        %v2125 = vpop.f32.mrf.mxu0
        %2126 = vdwg.mxu0
        %2127 = vmatprep.subr.bf16.mxu0 0
        %2128 = vmatpush1.bf16.msra.mxu0 %v1700
        %2129 = vmatprep.subr.bf16.mxu0 0
        %2130 = vmatpush1.bf16.msra.mxu0 %v1699
        %2131 = vmatprep.subr.bf16.mxu0 0
        %2132 = vmatpush1.bf16.msra.mxu0 %v1698
        %2133 = vmatprep.subr.bf16.mxu0 0
        %2134 = vmatpush1.bf16.msra.mxu0 %v1697
        %2135 = vmatprep.subr.bf16.mxu0 0
        %2136 = vmatpush1.bf16.msra.mxu0 %v1696
        %2137 = vmatprep.subr.bf16.mxu0 0
        %2138 = vmatpush1.bf16.msra.mxu0 %v1695
        %2139 = vmatprep.subr.bf16.mxu0 0
        %2140 = vmatpush1.bf16.msra.mxu0 %v1694
        %2141 = vmatprep.subr.bf16.mxu0 0
        %2142 = vmatpush1.bf16.msra.mxu0 %v1693
        %2143 = vmatprep.subr.bf16.mxu0 0
        %2144 = vmatpush2.bf16.msra.mxu0 %v1708
        %2145 = vmatprep.subr.bf16.mxu0 0
        %2146 = vmatpush2.bf16.msra.mxu0 %v1707
        %2147 = vmatprep.subr.bf16.mxu0 0
        %2148 = vmatpush2.bf16.msra.mxu0 %v1706
        %2149 = vmatprep.subr.bf16.mxu0 0
        %2150 = vmatpush2.bf16.msra.mxu0 %v1705
        %2151 = vmatprep.subr.bf16.mxu0 0
        %2152 = vmatpush2.bf16.msra.mxu0 %v1704
        %2153 = vmatprep.subr.bf16.mxu0 0
        %2154 = vmatpush2.bf16.msra.mxu0 %v1703
        %2155 = vmatprep.subr.bf16.mxu0 0
        %2156 = vmatpush2.bf16.msra.mxu0 %v1702
        %2157 = vmatprep.subr.bf16.mxu0 0
        %2158 = vmatpush2.bf16.msra.mxu0 %v1701
        %2159 = vmatprep.mubr.bf16.mxu0 %v1111
        %2160 = vmatmul.mubr.bf16.gmra.mxu0 %v920
        %v2161 = vpop.f32.mrf.mxu0
        %v2162 = vadd.f32 %v2001, %v2161
        %v2163 = vpop.f32.mrf.mxu0
        %v2164 = vpop.f32.mrf.mxu0
        %v2165 = vadd.f32 %v2004, %v2164
        %v2166 = vpop.f32.mrf.mxu0
        %2167 = vmatprep.mubr.bf16.mxu0 %v1114
        %2168 = vmatmul.mubr.bf16.gmra.mxu0 %v932
        %v2169 = vpop.f32.mrf.mxu0
        %v2170 = vadd.f32 %v2009, %v2169
        %v2171 = vpop.f32.mrf.mxu0
        %v2172 = vpop.f32.mrf.mxu0
        %v2173 = vadd.f32 %v2012, %v2172
        %v2174 = vpop.f32.mrf.mxu0
        %2175 = vmatprep.mubr.bf16.mxu0 %v1117
        %2176 = vmatmul.mubr.bf16.gmra.mxu0 %v944
        %v2177 = vpop.f32.mrf.mxu0
        %v2178 = vadd.f32 %v2017, %v2177
        %v2179 = vpop.f32.mrf.mxu0
        %v2180 = vpop.f32.mrf.mxu0
        %v2181 = vadd.f32 %v2020, %v2180
        %v2182 = vpop.f32.mrf.mxu0
        %2183 = vmatprep.mubr.bf16.mxu0 %v1120
        %2184 = vmatmul.mubr.bf16.gmra.mxu0 %v956
        %v2185 = vpop.f32.mrf.mxu0
        %v2186 = vadd.f32 %v2025, %v2185
        %v2187 = vpop.f32.mrf.mxu0
        %v2188 = vpop.f32.mrf.mxu0
        %v2189 = vadd.f32 %v2028, %v2188
        %v2190 = vpop.f32.mrf.mxu0
        %2191 = vmatprep.mubr.bf16.mxu0 %v1123
        %2192 = vmatmul.mubr.bf16.gmra.mxu0 %v968
        %v2193 = vpop.f32.mrf.mxu0
        %v2194 = vadd.f32 %v2033, %v2193
        %v2195 = vpop.f32.mrf.mxu0
        %v2196 = vpop.f32.mrf.mxu0
        %v2197 = vadd.f32 %v2036, %v2196
        %v2198 = vpop.f32.mrf.mxu0
        %2199 = vmatprep.mubr.bf16.mxu0 %v1126
        %2200 = vmatmul.mubr.bf16.gmra.mxu0 %v980
        %v2201 = vpop.f32.mrf.mxu0
        %v2202 = vadd.f32 %v2041, %v2201
        %v2203 = vpop.f32.mrf.mxu0
        %v2204 = vpop.f32.mrf.mxu0
        %v2205 = vadd.f32 %v2044, %v2204
        %v2206 = vpop.f32.mrf.mxu0
        %2207 = vmatprep.mubr.bf16.mxu0 %v1129
        %2208 = vmatmul.mubr.bf16.gmra.mxu0 %v992
        %v2209 = vpop.f32.mrf.mxu0
        %v2210 = vadd.f32 %v2049, %v2209
        %v2211 = vpop.f32.mrf.mxu0
        %v2212 = vpop.f32.mrf.mxu0
        %v2213 = vadd.f32 %v2052, %v2212
        %v2214 = vpop.f32.mrf.mxu0
        %2215 = vmatprep.mubr.bf16.mxu0 %v1132
        %2216 = vmatmul.mubr.bf16.gmra.mxu0 %v1004
        %v2217 = vpop.f32.mrf.mxu0
        %v2218 = vadd.f32 %v2057, %v2217
        %v2219 = vpop.f32.mrf.mxu0
        %v2220 = vpop.f32.mrf.mxu0
        %v2221 = vadd.f32 %v2060, %v2220
        %v2222 = vpop.f32.mrf.mxu0
        %2223 = vmatprep.mubr.bf16.mxu0 %v1135
        %2224 = vmatmul.mubr.bf16.gmra.mxu0 %v1016
        %v2225 = vpop.f32.mrf.mxu0
        %v2226 = vadd.f32 %v2065, %v2225
        %v2227 = vpop.f32.mrf.mxu0
        %v2228 = vpop.f32.mrf.mxu0
        %v2229 = vadd.f32 %v2068, %v2228
        %v2230 = vpop.f32.mrf.mxu0
        %2231 = vmatprep.mubr.bf16.mxu0 %v1138
        %2232 = vmatmul.mubr.bf16.gmra.mxu0 %v1028
        %v2233 = vpop.f32.mrf.mxu0
        %v2234 = vadd.f32 %v2073, %v2233
        %v2235 = vpop.f32.mrf.mxu0
        %v2236 = vpop.f32.mrf.mxu0
        %v2237 = vadd.f32 %v2076, %v2236
        %v2238 = vpop.f32.mrf.mxu0
        %2239 = vmatprep.mubr.bf16.mxu0 %v1141
        %2240 = vmatmul.mubr.bf16.gmra.mxu0 %v1040
        %v2241 = vpop.f32.mrf.mxu0
        %v2242 = vadd.f32 %v2081, %v2241
        %v2243 = vpop.f32.mrf.mxu0
        %v2244 = vpop.f32.mrf.mxu0
        %v2245 = vadd.f32 %v2084, %v2244
        %v2246 = vpop.f32.mrf.mxu0
        %2247 = vmatprep.mubr.bf16.mxu0 %v1144
        %2248 = vmatmul.mubr.bf16.gmra.mxu0 %v1052
        %v2249 = vpop.f32.mrf.mxu0
        %v2250 = vadd.f32 %v2089, %v2249
        %v2251 = vpop.f32.mrf.mxu0
        %v2252 = vpop.f32.mrf.mxu0
        %v2253 = vadd.f32 %v2092, %v2252
        %v2254 = vpop.f32.mrf.mxu0
        %2255 = vmatprep.mubr.bf16.mxu0 %v1147
        %2256 = vmatmul.mubr.bf16.gmra.mxu0 %v1064
        %v2257 = vpop.f32.mrf.mxu0
        %v2258 = vadd.f32 %v2097, %v2257
        %v2259 = vpop.f32.mrf.mxu0
        %v2260 = vpop.f32.mrf.mxu0
        %v2261 = vadd.f32 %v2100, %v2260
        %v2262 = vpop.f32.mrf.mxu0
        %2263 = vmatprep.mubr.bf16.mxu0 %v1150
        %2264 = vmatmul.mubr.bf16.gmra.mxu0 %v1076
        %v2265 = vpop.f32.mrf.mxu0
        %v2266 = vadd.f32 %v2105, %v2265
        %v2267 = vpop.f32.mrf.mxu0
        %v2268 = vpop.f32.mrf.mxu0
        %v2269 = vadd.f32 %v2108, %v2268
        %v2270 = vpop.f32.mrf.mxu0
        %2271 = vmatprep.mubr.bf16.mxu0 %v1153
        %2272 = vmatmul.mubr.bf16.gmra.mxu0 %v1088
        %v2273 = vpop.f32.mrf.mxu0
        %v2274 = vadd.f32 %v2113, %v2273
        %v2275 = vpop.f32.mrf.mxu0
        %v2276 = vpop.f32.mrf.mxu0
        %v2277 = vadd.f32 %v2116, %v2276
        %v2278 = vpop.f32.mrf.mxu0
        %2279 = vmatprep.mubr.bf16.mxu0 %v1194
        %2280 = vmatmul.mubr.bf16.gmra.mxu0 %v1190
        %v2281 = vpop.f32.mrf.mxu0
        %v2282 = vadd.f32 %v2121, %v2281
        %v2283 = vpop.f32.mrf.mxu0
        %v2284 = vpop.f32.mrf.mxu0
        %v2285 = vadd.f32 %v2124, %v2284
        %v2286 = vpop.f32.mrf.mxu0
        %2287 = vdwg.mxu0
        %2288 = vmatprep.subr.bf16.mxu0 0
        %2289 = vmatpush1.bf16.msra.mxu0 %v1716
        %2290 = vmatprep.subr.bf16.mxu0 0
        %2291 = vmatpush1.bf16.msra.mxu0 %v1715
        %2292 = vmatprep.subr.bf16.mxu0 0
        %2293 = vmatpush1.bf16.msra.mxu0 %v1714
        %2294 = vmatprep.subr.bf16.mxu0 0
        %2295 = vmatpush1.bf16.msra.mxu0 %v1713
        %2296 = vmatprep.subr.bf16.mxu0 0
        %2297 = vmatpush1.bf16.msra.mxu0 %v1712
        %2298 = vmatprep.subr.bf16.mxu0 0
        %2299 = vmatpush1.bf16.msra.mxu0 %v1711
        %2300 = vmatprep.subr.bf16.mxu0 0
        %2301 = vmatpush1.bf16.msra.mxu0 %v1710
        %2302 = vmatprep.subr.bf16.mxu0 0
        %2303 = vmatpush1.bf16.msra.mxu0 %v1709
        %2304 = vmatprep.subr.bf16.mxu0 0
        %2305 = vmatpush2.bf16.msra.mxu0 %v1724
        %2306 = vmatprep.subr.bf16.mxu0 0
        %2307 = vmatpush2.bf16.msra.mxu0 %v1723
        %2308 = vmatprep.subr.bf16.mxu0 0
        %2309 = vmatpush2.bf16.msra.mxu0 %v1722
        %2310 = vmatprep.subr.bf16.mxu0 0
        %2311 = vmatpush2.bf16.msra.mxu0 %v1721
        %2312 = vmatprep.subr.bf16.mxu0 0
        %2313 = vmatpush2.bf16.msra.mxu0 %v1720
        %2314 = vmatprep.subr.bf16.mxu0 0
        %2315 = vmatpush2.bf16.msra.mxu0 %v1719
        %2316 = vmatprep.subr.bf16.mxu0 0
        %2317 = vmatpush2.bf16.msra.mxu0 %v1718
        %2318 = vmatprep.subr.bf16.mxu0 0
        %2319 = vmatpush2.bf16.msra.mxu0 %v1717
        %2320 = vmatprep.mubr.bf16.mxu0 %v932
        %2321 = vmatmul.mubr.bf16.gmra.mxu0 %v818
        %v2322 = vpop.f32.mrf.mxu0
        %v2323 = vadd.f32 %v2162, %v2322
        %v2324 = vpop.f32.mrf.mxu0
        %v2325 = vpop.f32.mrf.mxu0
        %v2326 = vadd.f32 %v2165, %v2325
        %v2327 = vpop.f32.mrf.mxu0
        %2328 = vmatprep.mubr.bf16.mxu0 %v944
        %2329 = vmatmul.mubr.bf16.gmra.mxu0 %v819
        %v2330 = vpop.f32.mrf.mxu0
        %v2331 = vadd.f32 %v2170, %v2330
        %v2332 = vpop.f32.mrf.mxu0
        %v2333 = vpop.f32.mrf.mxu0
        %v2334 = vadd.f32 %v2173, %v2333
        %v2335 = vpop.f32.mrf.mxu0
        %2336 = vmatprep.mubr.bf16.mxu0 %v956
        %2337 = vmatmul.mubr.bf16.gmra.mxu0 %v820
        %v2338 = vpop.f32.mrf.mxu0
        %v2339 = vadd.f32 %v2178, %v2338
        %v2340 = vpop.f32.mrf.mxu0
        %v2341 = vpop.f32.mrf.mxu0
        %v2342 = vadd.f32 %v2181, %v2341
        %v2343 = vpop.f32.mrf.mxu0
        %2344 = vmatprep.mubr.bf16.mxu0 %v968
        %2345 = vmatmul.mubr.bf16.gmra.mxu0 %v821
        %v2346 = vpop.f32.mrf.mxu0
        %v2347 = vadd.f32 %v2186, %v2346
        %v2348 = vpop.f32.mrf.mxu0
        %v2349 = vpop.f32.mrf.mxu0
        %v2350 = vadd.f32 %v2189, %v2349
        %v2351 = vpop.f32.mrf.mxu0
        %2352 = vmatprep.mubr.bf16.mxu0 %v980
        %2353 = vmatmul.mubr.bf16.gmra.mxu0 %v822
        %v2354 = vpop.f32.mrf.mxu0
        %v2355 = vadd.f32 %v2194, %v2354
        %v2356 = vpop.f32.mrf.mxu0
        %v2357 = vpop.f32.mrf.mxu0
        %v2358 = vadd.f32 %v2197, %v2357
        %v2359 = vpop.f32.mrf.mxu0
        %2360 = vmatprep.mubr.bf16.mxu0 %v992
        %2361 = vmatmul.mubr.bf16.gmra.mxu0 %v823
        %v2362 = vpop.f32.mrf.mxu0
        %v2363 = vadd.f32 %v2202, %v2362
        %v2364 = vpop.f32.mrf.mxu0
        %v2365 = vpop.f32.mrf.mxu0
        %v2366 = vadd.f32 %v2205, %v2365
        %v2367 = vpop.f32.mrf.mxu0
        %2368 = vmatprep.mubr.bf16.mxu0 %v1004
        %2369 = vmatmul.mubr.bf16.gmra.mxu0 %v824
        %v2370 = vpop.f32.mrf.mxu0
        %v2371 = vadd.f32 %v2210, %v2370
        %v2372 = vpop.f32.mrf.mxu0
        %v2373 = vpop.f32.mrf.mxu0
        %v2374 = vadd.f32 %v2213, %v2373
        %v2375 = vpop.f32.mrf.mxu0
        %2376 = vmatprep.mubr.bf16.mxu0 %v1016
        %2377 = vmatmul.mubr.bf16.gmra.mxu0 %v825
        %v2378 = vpop.f32.mrf.mxu0
        %v2379 = vadd.f32 %v2218, %v2378
        %v2380 = vpop.f32.mrf.mxu0
        %v2381 = vpop.f32.mrf.mxu0
        %v2382 = vadd.f32 %v2221, %v2381
        %v2383 = vpop.f32.mrf.mxu0
        %2384 = vmatprep.mubr.bf16.mxu0 %v1028
        %2385 = vmatmul.mubr.bf16.gmra.mxu0 %v826
        %v2386 = vpop.f32.mrf.mxu0
        %v2387 = vadd.f32 %v2226, %v2386
        %v2388 = vpop.f32.mrf.mxu0
        %v2389 = vpop.f32.mrf.mxu0
        %v2390 = vadd.f32 %v2229, %v2389
        %v2391 = vpop.f32.mrf.mxu0
        %2392 = vmatprep.mubr.bf16.mxu0 %v1040
        %2393 = vmatmul.mubr.bf16.gmra.mxu0 %v827
        %v2394 = vpop.f32.mrf.mxu0
        %v2395 = vadd.f32 %v2234, %v2394
        %v2396 = vpop.f32.mrf.mxu0
        %v2397 = vpop.f32.mrf.mxu0
        %v2398 = vadd.f32 %v2237, %v2397
        %v2399 = vpop.f32.mrf.mxu0
        %2400 = vmatprep.mubr.bf16.mxu0 %v1052
        %2401 = vmatmul.mubr.bf16.gmra.mxu0 %v828
        %v2402 = vpop.f32.mrf.mxu0
        %v2403 = vadd.f32 %v2242, %v2402
        %v2404 = vpop.f32.mrf.mxu0
        %v2405 = vpop.f32.mrf.mxu0
        %v2406 = vadd.f32 %v2245, %v2405
        %v2407 = vpop.f32.mrf.mxu0
        %2408 = vmatprep.mubr.bf16.mxu0 %v1064
        %2409 = vmatmul.mubr.bf16.gmra.mxu0 %v829
        %v2410 = vpop.f32.mrf.mxu0
        %v2411 = vadd.f32 %v2250, %v2410
        %v2412 = vpop.f32.mrf.mxu0
        %v2413 = vpop.f32.mrf.mxu0
        %v2414 = vadd.f32 %v2253, %v2413
        %v2415 = vpop.f32.mrf.mxu0
        %2416 = vmatprep.mubr.bf16.mxu0 %v1076
        %2417 = vmatmul.mubr.bf16.gmra.mxu0 %v830
        %v2418 = vpop.f32.mrf.mxu0
        %v2419 = vadd.f32 %v2258, %v2418
        %v2420 = vpop.f32.mrf.mxu0
        %v2421 = vpop.f32.mrf.mxu0
        %v2422 = vadd.f32 %v2261, %v2421
        %v2423 = vpop.f32.mrf.mxu0
        %2424 = vmatprep.mubr.bf16.mxu0 %v1088
        %2425 = vmatmul.mubr.bf16.gmra.mxu0 %v831
        %v2426 = vpop.f32.mrf.mxu0
        %v2427 = vadd.f32 %v2266, %v2426
        %v2428 = vpop.f32.mrf.mxu0
        %v2429 = vpop.f32.mrf.mxu0
        %v2430 = vadd.f32 %v2269, %v2429
        %v2431 = vpop.f32.mrf.mxu0
        %2432 = vmatprep.mubr.bf16.mxu0 %v1190
        %2433 = vmatmul.mubr.bf16.gmra.mxu0 %v1174
        %v2434 = vpop.f32.mrf.mxu0
        %v2435 = vadd.f32 %v2274, %v2434
        %v2436 = vpop.f32.mrf.mxu0
        %v2437 = vpop.f32.mrf.mxu0
        %v2438 = vadd.f32 %v2277, %v2437
        %v2439 = vpop.f32.mrf.mxu0
        %2440 = vmatprep.mubr.bf16.mxu0 %v1216
        %2441 = vmatmul.mubr.bf16.gmra.mxu0 %v1200
        %v2442 = vpop.f32.mrf.mxu0
        %v2443 = vadd.f32 %v2282, %v2442
        %v2444 = vpop.f32.mrf.mxu0
        %v2445 = vpop.f32.mrf.mxu0
        %v2446 = vadd.f32 %v2285, %v2445
        %v2447 = vpop.f32.mrf.mxu0
        %2448 = vdwg.mxu0
        %2449 = vmatprep.subr.bf16.mxu0 0
        %2450 = vmatpush1.bf16.msra.mxu0 %v1732
        %2451 = vmatprep.subr.bf16.mxu0 0
        %2452 = vmatpush1.bf16.msra.mxu0 %v1731
        %2453 = vmatprep.subr.bf16.mxu0 0
        %2454 = vmatpush1.bf16.msra.mxu0 %v1730
        %2455 = vmatprep.subr.bf16.mxu0 0
        %2456 = vmatpush1.bf16.msra.mxu0 %v1729
        %2457 = vmatprep.subr.bf16.mxu0 0
        %2458 = vmatpush1.bf16.msra.mxu0 %v1728
        %2459 = vmatprep.subr.bf16.mxu0 0
        %2460 = vmatpush1.bf16.msra.mxu0 %v1727
        %2461 = vmatprep.subr.bf16.mxu0 0
        %2462 = vmatpush1.bf16.msra.mxu0 %v1726
        %2463 = vmatprep.subr.bf16.mxu0 0
        %2464 = vmatpush1.bf16.msra.mxu0 %v1725
        %2465 = vmatprep.subr.bf16.mxu0 0
        %2466 = vmatpush2.bf16.msra.mxu0 0
        %2467 = vmatprep.subr.bf16.mxu0 0
        %2468 = vmatpush2.bf16.msra.mxu0 0
        %2469 = vmatprep.subr.bf16.mxu0 0
        %2470 = vmatpush2.bf16.msra.mxu0 0
        %2471 = vmatprep.subr.bf16.mxu0 0
        %2472 = vmatpush2.bf16.msra.mxu0 0
        %2473 = vmatprep.subr.bf16.mxu0 0
        %2474 = vmatpush2.bf16.msra.mxu0 0
        %2475 = vmatprep.subr.bf16.mxu0 0
        %2476 = vmatpush2.bf16.msra.mxu0 0
        %2477 = vmatprep.subr.bf16.mxu0 0
        %2478 = vmatpush2.bf16.msra.mxu0 0
        %2479 = vmatprep.subr.bf16.mxu0 0
        %2480 = vmatpush2.bf16.msra.mxu0 0
        %2481 = vmatprep.mubr.bf16.mxu0 0
        %2482 = vmatmul.mubr.bf16.gmra.mxu0 %v1114
        %v2483 = vpop.f32.mrf.mxu0
        %v2484 = vadd.f32 %v2323, %v2483
        %v2485 = vpop.f32.mrf.mxu0
        %v2486 = vpop.f32.mrf.mxu0
        %v2487 = vadd.f32 %v2326, %v2486
        %v2488 = vpop.f32.mrf.mxu0
        %2489 = vmatprep.mubr.bf16.mxu0 0
        %2490 = vmatmul.mubr.bf16.gmra.mxu0 %v1117
        %v2491 = vpop.f32.mrf.mxu0
        %v2492 = vadd.f32 %v2331, %v2491
        %v2493 = vpop.f32.mrf.mxu0
        %v2494 = vpop.f32.mrf.mxu0
        %v2495 = vadd.f32 %v2334, %v2494
        %v2496 = vpop.f32.mrf.mxu0
        %2497 = vmatprep.mubr.bf16.mxu0 0
        %2498 = vmatmul.mubr.bf16.gmra.mxu0 %v1120
        %v2499 = vpop.f32.mrf.mxu0
        %v2500 = vadd.f32 %v2339, %v2499
        %v2501 = vpop.f32.mrf.mxu0
        %v2502 = vpop.f32.mrf.mxu0
        %v2503 = vadd.f32 %v2342, %v2502
        %v2504 = vpop.f32.mrf.mxu0
        %2505 = vmatprep.mubr.bf16.mxu0 0
        %2506 = vmatmul.mubr.bf16.gmra.mxu0 %v1123
        %v2507 = vpop.f32.mrf.mxu0
        %v2508 = vadd.f32 %v2347, %v2507
        %v2509 = vpop.f32.mrf.mxu0
        %v2510 = vpop.f32.mrf.mxu0
        %v2511 = vadd.f32 %v2350, %v2510
        %v2512 = vpop.f32.mrf.mxu0
        %2513 = vmatprep.mubr.bf16.mxu0 0
        %2514 = vmatmul.mubr.bf16.gmra.mxu0 %v1126
        %v2515 = vpop.f32.mrf.mxu0
        %v2516 = vadd.f32 %v2355, %v2515
        %v2517 = vpop.f32.mrf.mxu0
        %v2518 = vpop.f32.mrf.mxu0
        %v2519 = vadd.f32 %v2358, %v2518
        %v2520 = vpop.f32.mrf.mxu0
        %2521 = vmatprep.mubr.bf16.mxu0 0
        %2522 = vmatmul.mubr.bf16.gmra.mxu0 %v1129
        %v2523 = vpop.f32.mrf.mxu0
        %v2524 = vadd.f32 %v2363, %v2523
        %v2525 = vpop.f32.mrf.mxu0
        %v2526 = vpop.f32.mrf.mxu0
        %v2527 = vadd.f32 %v2366, %v2526
        %v2528 = vpop.f32.mrf.mxu0
        %2529 = vmatprep.mubr.bf16.mxu0 0
        %2530 = vmatmul.mubr.bf16.gmra.mxu0 %v1132
        %v2531 = vpop.f32.mrf.mxu0
        %v2532 = vadd.f32 %v2371, %v2531
        %v2533 = vpop.f32.mrf.mxu0
        %v2534 = vpop.f32.mrf.mxu0
        %v2535 = vadd.f32 %v2374, %v2534
        %v2536 = vpop.f32.mrf.mxu0
        %2537 = vmatprep.mubr.bf16.mxu0 0
        %2538 = vmatmul.mubr.bf16.gmra.mxu0 %v1135
        %v2539 = vpop.f32.mrf.mxu0
        %v2540 = vadd.f32 %v2379, %v2539
        %v2541 = vpop.f32.mrf.mxu0
        %v2542 = vpop.f32.mrf.mxu0
        %v2543 = vadd.f32 %v2382, %v2542
        %v2544 = vpop.f32.mrf.mxu0
        %2545 = vmatprep.mubr.bf16.mxu0 0
        %2546 = vmatmul.mubr.bf16.gmra.mxu0 %v1138
        %v2547 = vpop.f32.mrf.mxu0
        %v2548 = vadd.f32 %v2387, %v2547
        %v2549 = vpop.f32.mrf.mxu0
        %v2550 = vpop.f32.mrf.mxu0
        %v2551 = vadd.f32 %v2390, %v2550
        %v2552 = vpop.f32.mrf.mxu0
        %2553 = vmatprep.mubr.bf16.mxu0 0
        %2554 = vmatmul.mubr.bf16.gmra.mxu0 %v1141
        %v2555 = vpop.f32.mrf.mxu0
        %v2556 = vadd.f32 %v2395, %v2555
        %v2557 = vpop.f32.mrf.mxu0
        %v2558 = vpop.f32.mrf.mxu0
        %v2559 = vadd.f32 %v2398, %v2558
        %v2560 = vpop.f32.mrf.mxu0
        %2561 = vmatprep.mubr.bf16.mxu0 0
        %2562 = vmatmul.mubr.bf16.gmra.mxu0 %v1144
        %v2563 = vpop.f32.mrf.mxu0
        %v2564 = vadd.f32 %v2403, %v2563
        %v2565 = vpop.f32.mrf.mxu0
        %v2566 = vpop.f32.mrf.mxu0
        %v2567 = vadd.f32 %v2406, %v2566
        %v2568 = vpop.f32.mrf.mxu0
        %2569 = vmatprep.mubr.bf16.mxu0 0
        %2570 = vmatmul.mubr.bf16.gmra.mxu0 %v1147
        %v2571 = vpop.f32.mrf.mxu0
        %v2572 = vadd.f32 %v2411, %v2571
        %v2573 = vpop.f32.mrf.mxu0
        %v2574 = vpop.f32.mrf.mxu0
        %v2575 = vadd.f32 %v2414, %v2574
        %v2576 = vpop.f32.mrf.mxu0
        %2577 = vmatprep.mubr.bf16.mxu0 0
        %2578 = vmatmul.mubr.bf16.gmra.mxu0 %v1150
        %v2579 = vpop.f32.mrf.mxu0
        %v2580 = vadd.f32 %v2419, %v2579
        %v2581 = vpop.f32.mrf.mxu0
        %v2582 = vpop.f32.mrf.mxu0
        %v2583 = vadd.f32 %v2422, %v2582
        %v2584 = vpop.f32.mrf.mxu0
        %2585 = vmatprep.mubr.bf16.mxu0 0
        %2586 = vmatmul.mubr.bf16.gmra.mxu0 %v1153
        %v2587 = vpop.f32.mrf.mxu0
        %v2588 = vadd.f32 %v2427, %v2587
        %v2589 = vpop.f32.mrf.mxu0
        %v2590 = vpop.f32.mrf.mxu0
        %v2591 = vadd.f32 %v2430, %v2590
        %v2592 = vpop.f32.mrf.mxu0
        %2593 = vmatprep.mubr.bf16.mxu0 0
        %2594 = vmatmul.mubr.bf16.gmra.mxu0 %v1194
        %v2595 = vpop.f32.mrf.mxu0
        %v2596 = vadd.f32 %v2435, %v2595
        %v2597 = vpop.f32.mrf.mxu0
        %v2598 = vpop.f32.mrf.mxu0
        %v2599 = vadd.f32 %v2438, %v2598
        %v2600 = vpop.f32.mrf.mxu0
        %2601 = vmatprep.mubr.bf16.mxu0 0
        %2602 = vmatmul.mubr.bf16.gmra.mxu0 %v1220
        %v2603 = vpop.f32.mrf.mxu0
        %v2604 = vadd.f32 %v2443, %v2603
        %v2605 = vpop.f32.mrf.mxu0
        %v2606 = vpop.f32.mrf.mxu0
        %v2607 = vadd.f32 %v2446, %v2606
        %v2608 = vpop.f32.mrf.mxu0
        %2609 = vdwg.mxu0
        %v2610 = vmax.f32 %v2484, 0.0
        %v2611 = vmax.f32 %v2487, 0.0
        %v2612 = vmax.f32 %v2492, 0.0
        %v2613 = vmax.f32 %v2495, 0.0
        %v2614 = vmax.f32 %v2500, 0.0
        %v2615 = vmax.f32 %v2503, 0.0
        %v2616 = vmax.f32 %v2508, 0.0
        %v2617 = vmax.f32 %v2511, 0.0
        %v2618 = vmax.f32 %v2516, 0.0
        %v2619 = vmax.f32 %v2519, 0.0
        %v2620 = vmax.f32 %v2524, 0.0
        %v2621 = vmax.f32 %v2527, 0.0
        %v2622 = vmax.f32 %v2532, 0.0
        %v2623 = vmax.f32 %v2535, 0.0
        %v2624 = vmax.f32 %v2540, 0.0
        %v2625 = vmax.f32 %v2543, 0.0
        %v2626 = vmax.f32 %v2548, 0.0
        %v2627 = vmax.f32 %v2551, 0.0
        %v2628 = vmax.f32 %v2556, 0.0
        %v2629 = vmax.f32 %v2559, 0.0
        %v2630 = vmax.f32 %v2564, 0.0
        %v2631 = vmax.f32 %v2567, 0.0
        %v2632 = vmax.f32 %v2572, 0.0
        %v2633 = vmax.f32 %v2575, 0.0
        %v2634 = vmax.f32 %v2580, 0.0
        %v2635 = vmax.f32 %v2583, 0.0
        %v2636 = vmax.f32 %v2588, 0.0
        %v2637 = vmax.f32 %v2591, 0.0
        %v2638 = vmax.f32 %v2596, 0.0
        %v2639 = vmax.f32 %v2599, 0.0
        %v2640 = vmax.f32 %v2604, 0.0
        %v2641 = vmax.f32 %v2607, 0.0
        %2642 = vst [vmem:[%s163] sm:$0xff] %v2610
        %2643 = vst [vmem:[%s163 + $0x8] sm:$0xff] %v2611
        %2644 = vst [vmem:[%s163 + $0x10] sm:$0xff] %v2612
        %2645 = vst [vmem:[%s163 + $0x18] sm:$0xff] %v2613
        %2646 = vst [vmem:[%s163 + $0x20] sm:$0xff] %v2614
        %2647 = vst [vmem:[%s163 + $0x28] sm:$0xff] %v2615
        %2648 = vst [vmem:[%s163 + $0x30] sm:$0xff] %v2616
        %2649 = vst [vmem:[%s163 + $0x38] sm:$0xff] %v2617
        %2650 = vst [vmem:[%s163 + $0x40] sm:$0xff] %v2618
        %2651 = vst [vmem:[%s163 + $0x48] sm:$0xff] %v2619
        %2652 = vst [vmem:[%s163 + $0x50] sm:$0xff] %v2620
        %2653 = vst [vmem:[%s163 + $0x58] sm:$0xff] %v2621
        %2654 = vst [vmem:[%s163 + $0x60] sm:$0xff] %v2622
        %2655 = vst [vmem:[%s163 + $0x68] sm:$0xff] %v2623
        %2656 = vst [vmem:[%s163 + $0x70] sm:$0xff] %v2624
        %2657 = vst [vmem:[%s163 + $0x78] sm:$0xff] %v2625
        %2658 = vst [vmem:[%s163 + $0x80] sm:$0xff] %v2626
        %2659 = vst [vmem:[%s163 + $0x88] sm:$0xff] %v2627
        %2660 = vst [vmem:[%s163 + $0x90] sm:$0xff] %v2628
        %2661 = vst [vmem:[%s163 + $0x98] sm:$0xff] %v2629
        %2662 = vst [vmem:[%s163 + $0xa0] sm:$0xff] %v2630
        %2663 = vst [vmem:[%s163 + $0xa8] sm:$0xff] %v2631
        %2664 = vst [vmem:[%s163 + $0xb0] sm:$0xff] %v2632
        %2665 = vst [vmem:[%s163 + $0xb8] sm:$0xff] %v2633
        %2666 = vst [vmem:[%s163 + $0xc0] sm:$0xff] %v2634
        %2667 = vst [vmem:[%s163 + $0xc8] sm:$0xff] %v2635
        %2668 = vst [vmem:[%s163 + $0xd0] sm:$0xff] %v2636
        %2669 = vst [vmem:[%s163 + $0xd8] sm:$0xff] %v2637
        %2670 = vst [vmem:[%s163 + $0xe0] sm:$0xff] %v2638
        %2671 = vst [vmem:[%s163 + $0xe8] sm:$0xff] %v2639
        %2672 = vst [vmem:[%s163 + $0xf0] sm:$0xff] %v2640
        %2673 = vst [vmem:[%s163 + $0xf8] sm:$0xff] %v2641
        %s2674 = sand.u32 %s93, 1
        %s2675 = scalar_lea.sflag [#allocation4], %s2674
        %s2676 = sand.u32 %s93, 1
        %s2677 = smul.addr %s2676, 256
        %s2678 = scalar_lea.vmem [#allocation3], %s2677
        // Predicated region
        $region33: #{double_conv_forward.3} parent=31 // pred_check
          %p2679 = pneg %p103
        $region34: #{double_conv_forward.3} parent=31 // pred_check_branch
          %2681 = sbr.rel (%p2679) target = $region36
        $region35: #{double_conv_forward.3} parent=31 // pred_region
          %s2682 = smul.u32 32, %s17
          %s2684 = ssub.s32 4096, 4096
          %2685 = vsyncadd %s2675, %s2684
          %s2686 = smul.addr %s2682, 128
          %s2687 = scalar_lea.hbm %s3, %s2686
          %s2688 = sshll.u32 %s2678, 4
          %s2689 = int_to_ptr.vmem [resolvable:$true] %s2688
          %2694 = dma.vmem_to_hbm [thread:$0]  %s2689, 4096, %s2687, %s2675, 128, 128, 8
        $region36: #{double_conv_forward.3} parent=31 // pred_fallthru
          _
      $region32: #{double_conv_forward.3} parent=5 // pred_fallthru
        _
      %p2695 = scmp.le.s32.totalorder 2, %s12
      // Predicated region
      $region37: #{double_conv_forward.3} parent=5 // pred_check
        %p2696 = pneg %p2695
      $region38: #{double_conv_forward.3} parent=5 // pred_check_branch
        %2698 = sbr.rel (%p2696) target = $region40
      $region39: #{double_conv_forward.3} parent=5 // pred_region
        %s2699 = ssub.s32 %s12, 2
        // Predicated region
        $region41: #{double_conv_forward.3} parent=39 // pred_check
          %p2700 = pneg %p109
        $region42: #{double_conv_forward.3} parent=39 // pred_check_branch
          %2702 = sbr.rel (%p2700) target = $region44
        $region43: #{double_conv_forward.3} parent=39 // pred_region
          %s2703 = sand.u32 %s94, 1
          %s2704 = scalar_lea.sflag [#allocation4], %s2703
          %s2705 = sand.u32 %s94, 1
          %s2706 = smul.addr %s2705, 256
          %s2707 = scalar_lea.vmem [#allocation3], %s2706
          %2708 = dma.done %s2704, 4096
        $region44: #{double_conv_forward.3} parent=39 // pred_fallthru
          _
      $region40: #{double_conv_forward.3} parent=5 // pred_fallthru
        _
    $region6: #{double_conv_forward.3} parent=1 // loop_footer
      %s16 = sadd.s32 1, %s12
    $region7: #{double_conv_forward.3} parent=1 // loop_footer_branch
      %11 = sbr.rel target = $region3
    $region8: #{double_conv_forward.3} parent=1 // loop_exit
      _
    %2709 = vsyncpa [#allocation4], 1
    %s2710 = scalar_lea.sflag [#allocation4], 1
    %2711 = vsyncpa %s2710, 1

</llo_original>
